<compile_context>
chip_gen: v7x
topology: tpu7x:2x2x1
jax: 0.10.0
libtpu: 0.0.40
codegen_flags: <defaults>
</compile_context>

<pallas_src>
import jax
import jax.numpy as jnp
import numpy as np
from jax.experimental import pallas as pl
from jax.experimental.pallas import tpu as pltpu


def conv_relu_pool_kernel(p_ref, w_ref, b_ref, o_ref):
    # p_ref: [4, TILE, K]  (4 = the four positions of a 2x2 pool window)
    # w_ref: [K, Ch], b_ref: [1, Ch], o_ref: [TILE, Ch]
    tile = o_ref.shape[0]
    k = p_ref.shape[2]

    # Layout-free leading-dim merge: (4, TILE, K) -> (4*TILE, K), then ONE MXU matmul.
    p = p_ref[...].reshape(4 * tile, k)
    y = jnp.dot(p, w_ref[...], preferred_element_type=jnp.float32)   # (4*TILE, Ch)

    # MaxPool2d(2, 2): elementwise max over the four window positions (aligned
    # sublane slices at multiples of TILE).
    m = jnp.maximum(jnp.maximum(y[:tile], y[tile:2 * tile]),
                    jnp.maximum(y[2 * tile:3 * tile], y[3 * tile:]))

    # Single bias add + ReLU (bias is window-invariant; ReLU/max are monotone).
    o_ref[...] = jnp.maximum(m + b_ref[...], 0.0).astype(o_ref.dtype)


def linear_kernel(x_ref, w_ref, b_ref, o_ref):
    o_ref[...] = (jnp.dot(x_ref[...], w_ref[...],
                          preferred_element_type=jnp.float32)
                  + b_ref[...]).astype(o_ref.dtype)


def _im2col_pool_grouped(x):
    """x: [B, Cin, H, W] NCHW -> [4, B*(H//2)*(W//2), Cin*9], feature order (cin, kh, kw)."""
    B, Cin, H, W = x.shape
    xp = jnp.pad(x, ((0, 0), (0, 0), (1, 1), (1, 1)))
    cols = []
    for kh in range(3):
        for kw in range(3):
            cols.append(xp[:, :, kh:kh + H, kw:kw + W])
    # [B, Cin, 3, 3, H, W]
    patches = jnp.stack(cols, axis=2).reshape(B, Cin, 3, 3, H, W)
    # -> [B, H, W, Cin*9]
    patches = patches.transpose(0, 4, 5, 1, 2, 3).reshape(B, H, W, Cin * 9)
    K = Cin * 9
    # group by 2x2 pool window: [B, H/2, 2, W/2, 2, K] -> [2, 2, B, H/2, W/2, K]
    patches = patches.reshape(B, H // 2, 2, W // 2, 2, K)
    patches = patches.transpose(2, 4, 0, 1, 3, 5)
    return patches.reshape(4, B * (H // 2) * (W // 2), K)


def prepare_params(conv_w, conv_b, lin_w, lin_b, Hp, Wp):
    """One-time weight re-layouts (hoisted out of the forward path)."""
    Ch, Cin = conv_w.shape[0], conv_w.shape[1]
    Out = lin_w.shape[0]
    K = Cin * 9
    w_mat = conv_w.reshape(Ch, K).T                                   # [K, Ch]
    b_mat = conv_b.reshape(1, Ch)
    # PyTorch flattens NCHW -> (c, h, w); pooled rows flatten as (h, w, c) -> permute.
    lw = (lin_w.reshape(Out, Ch, Hp, Wp).transpose(0, 2, 3, 1)
               .reshape(Out, Hp * Wp * Ch).T)                         # [F, Out]
    lb = lin_b.reshape(1, Out)
    return w_mat, b_mat, lw, lb


@jax.jit
def cnn_forward(x, w_mat, b_mat, lw, lb):
    """x: [B, Cin, H, W] NCHW; w_mat: [Cin*9, Ch]; lw: [Hp*Wp*Ch, Out] (pre-permuted)."""
    B, Cin, H, W = x.shape
    Ch = w_mat.shape[1]
    Out = lw.shape[1]
    Hp, Wp = H // 2, W // 2
    K = Cin * 9
    TILE = Hp * Wp                       # one image per grid step
    rows = B * TILE

    patches = _im2col_pool_grouped(x)    # [4, rows, K]

    conv_cost = pl.CostEstimate(
        flops=2 * 4 * rows * K * Ch,
        transcendentals=0,
        bytes_accessed=4 * rows * K * 4 + K * Ch * 4 + Ch * 4 + rows * Ch * 4)

    pooled = pl.pallas_call(
        conv_relu_pool_kernel,
        out_shape=jax.ShapeDtypeStruct((rows, Ch), jnp.float32),
        grid=(B,),
        in_specs=[
            pl.BlockSpec((4, TILE, K), lambda i: (0, i, 0)),
            pl.BlockSpec((K, Ch), lambda i: (0, 0)),
            pl.BlockSpec((1, Ch), lambda i: (0, 0)),
        ],
        out_specs=pl.BlockSpec((TILE, Ch), lambda i: (i, 0)),
        compiler_params=pltpu.CompilerParams(dimension_semantics=("parallel",)),
        cost_estimate=conv_cost,
    )(patches, w_mat, b_mat)             # [rows, Ch], rows ordered (b, h, w)

    # Free row-major reshape: features per image in (h, w, c) order.
    F = Hp * Wp * Ch
    feats = pooled.reshape(B, F)

    lin_cost = pl.CostEstimate(
        flops=2 * B * F * Out,
        transcendentals=0,
        bytes_accessed=B * F * 4 + F * Out * 4 + Out * 4 + B * Out * 4)

    out = pl.pallas_call(
        linear_kernel,
        out_shape=jax.ShapeDtypeStruct((B, Out), jnp.float32),
        grid=(1,),
        in_specs=[
            pl.BlockSpec((B, F), lambda i: (0, 0)),
            pl.BlockSpec((F, Out), lambda i: (0, 0)),
            pl.BlockSpec((1, Out), lambda i: (0, 0)),
        ],
        out_specs=pl.BlockSpec((B, Out), lambda i: (0, 0)),
        cost_estimate=lin_cost,
    )(feats, lw, lb)
    return out


def reference(x, conv_w, conv_b, lin_w, lin_b):
    """Pure-JAX reference with exact PyTorch semantics (NCHW, (c,h,w) flatten)."""
    y = jax.lax.conv_general_dilated(
        x, conv_w, window_strides=(1, 1), padding=((1, 1), (1, 1)),
        dimension_numbers=("NCHW", "OIHW", "NCHW"))
    y = y + conv_b[None, :, None, None]
    y = jnp.maximum(y, 0.0)
    y = jax.lax.reduce_window(y, -jnp.inf, jax.lax.max,
                              (1, 1, 2, 2), (1, 1, 2, 2), "VALID")
    y = y.reshape(y.shape[0], -1)              # flatten (c, h, w)
    return y @ lin_w.T + lin_b


if __name__ == "__main__":
    in_channels, hidden_units, out_channels = 4, 8, 10
    B, H, W = 2, 32, 32                         # Linear(hidden*16*16) => 32x32 input

    key = jax.random.PRNGKey(0)
    k1, k2, k3, k4, k5 = jax.random.split(key, 5)
    x = jax.random.normal(k1, (B, in_channels, H, W), jnp.float32)
    conv_w = jax.random.normal(k2, (hidden_units, in_channels, 3, 3), jnp.float32) * 0.1
    conv_b = jax.random.normal(k3, (hidden_units,), jnp.float32) * 0.1
    lin_w = jax.random.normal(k4, (out_channels, hidden_units * 16 * 16), jnp.float32) * 0.02
    lin_b = jax.random.normal(k5, (out_channels,), jnp.float32) * 0.02

    # One-time weight re-layouts (hoisted out of the forward path).
    w_mat, b_mat, lw, lb = prepare_params(conv_w, conv_b, lin_w, lin_b, H // 2, W // 2)

    out = jax.block_until_ready(cnn_forward(x, w_mat, b_mat, lw, lb))
    ref = jax.block_until_ready(reference(x, conv_w, conv_b, lin_w, lin_b))

    assert out.shape == (B, out_channels), out.shape
    np.testing.assert_allclose(np.asarray(out), np.asarray(ref), rtol=1e-4, atol=1e-4)
    print("KERNEL_OK")
</pallas_src>

<mosaic_0001>
module attributes {stable_mosaic.version = 11 : i64} {
  func.func @conv_relu_pool_kernel(%arg0: i32, %arg1: memref<4x256x36xf32, #tpu.memory_space<vmem>>, %arg2: memref<36x8xf32, #tpu.memory_space<vmem>>, %arg3: memref<1x8xf32, #tpu.memory_space<vmem>>, %arg4: memref<256x8xf32, #tpu.memory_space<vmem>>) attributes {dimension_semantics = [#tpu.dimension_semantics<parallel>], iteration_bounds = array<i64: 2>, scalar_prefetch = 0 : i64, scratch_operands = 0 : i64, tpu.core_type = #tpu.core_type<tc>, window_params = [{transform_indices = @transform_0, window_bounds = array<i64: 4, 256, 36>}, {pipeline_mode = #tpu.pipeline_mode<synchronous>, transform_indices = @transform_1, window_bounds = array<i64: 36, 8>}, {pipeline_mode = #tpu.pipeline_mode<synchronous>, transform_indices = @transform_2, window_bounds = array<i64: 1, 8>}, {transform_indices = @transform_3, window_bounds = array<i64: 256, 8>}]} {
    %c0 = arith.constant 0 : index
    %c0_0 = arith.constant 0 : index
    %c0_1 = arith.constant 0 : index
    %0 = vector.load %arg1[%c0, %c0_0, %c0_1] : memref<4x256x36xf32, #tpu.memory_space<vmem>>, vector<4x256x36xf32>
    %1 = vector.shape_cast %0 : vector<4x256x36xf32> to vector<1024x36xf32>
    %c0_2 = arith.constant 0 : index
    %c0_3 = arith.constant 0 : index
    %2 = vector.load %arg2[%c0_2, %c0_3] : memref<36x8xf32, #tpu.memory_space<vmem>>, vector<36x8xf32>
    %cst = arith.constant dense<0.000000e+00> : vector<1024x8xf32>
    %3 = tpu.matmul %1, %2, %cst {dimension_numbers = #tpu.dot_dimension_numbers<[1], [0], [0], [1], [0, 0, 1, 1], [], []>} : vector<1024x36xf32>, vector<36x8xf32>, vector<1024x8xf32> -> vector<1024x8xf32>
    %4 = vector.extract_strided_slice %3 {offsets = [0, 0], sizes = [256, 8], strides = [1, 1]} : vector<1024x8xf32> to vector<256x8xf32>
    %5 = vector.extract_strided_slice %3 {offsets = [256, 0], sizes = [256, 8], strides = [1, 1]} : vector<1024x8xf32> to vector<256x8xf32>
    %6 = arith.maximumf %4, %5 : vector<256x8xf32>
    %7 = vector.extract_strided_slice %3 {offsets = [512, 0], sizes = [256, 8], strides = [1, 1]} : vector<1024x8xf32> to vector<256x8xf32>
    %8 = vector.extract_strided_slice %3 {offsets = [768, 0], sizes = [256, 8], strides = [1, 1]} : vector<1024x8xf32> to vector<256x8xf32>
    %9 = arith.maximumf %7, %8 : vector<256x8xf32>
    %10 = arith.maximumf %6, %9 : vector<256x8xf32>
    %c0_4 = arith.constant 0 : index
    %c0_5 = arith.constant 0 : index
    %11 = vector.load %arg3[%c0_4, %c0_5] : memref<1x8xf32, #tpu.memory_space<vmem>>, vector<1x8xf32>
    %12 = vector.broadcast %11 : vector<1x8xf32> to vector<256x8xf32>
    %13 = arith.addf %10, %12 : vector<256x8xf32>
    %cst_6 = arith.constant 0.000000e+00 : f32
    %14 = vector.broadcast %cst_6 : f32 to vector<256x8xf32>
    %15 = arith.maximumf %13, %14 : vector<256x8xf32>
    %c0_7 = arith.constant 0 : index
    %c0_8 = arith.constant 0 : index
    %16 = vector.load %arg4[%c0_7, %c0_8] : memref<256x8xf32, #tpu.memory_space<vmem>>, vector<256x8xf32>
    tpu.vector_store %arg4[%c0_7, %c0_8], %15 {strides = array<i32>} : memref<256x8xf32, #tpu.memory_space<vmem>>, vector<256x8xf32>,
    return
  }
  func.func @transform_0(%arg0: i32) -> (i32, i32, i32) {
    %c0_i32 = arith.constant 0 : i32
    %c0_i32_0 = arith.constant 0 : i32
    %c0_i32_1 = arith.constant 0 : i32
    return %c0_i32, %arg0, %c0_i32_0 : i32, i32, i32
  }
  func.func @transform_1(%arg0: i32) -> (i32, i32) {
    %c0_i32 = arith.constant 0 : i32
    %c0_i32_0 = arith.constant 0 : i32
    %c0_i32_1 = arith.constant 0 : i32
    return %c0_i32, %c0_i32_0 : i32, i32
  }
  func.func @transform_2(%arg0: i32) -> (i32, i32) {
    %c0_i32 = arith.constant 0 : i32
    %c0_i32_0 = arith.constant 0 : i32
    %c0_i32_1 = arith.constant 0 : i32
    return %c0_i32, %c0_i32_0 : i32, i32
  }
  func.func @transform_3(%arg0: i32) -> (i32, i32) {
    %c0_i32 = arith.constant 0 : i32
    %c0_i32_0 = arith.constant 0 : i32
    return %arg0, %c0_i32 : i32, i32
  }
}

module attributes {stable_mosaic.version = 11 : i64} {
  func.func @linear_kernel(%arg0: i32, %arg1: memref<2x2048xf32, #tpu.memory_space<vmem>>, %arg2: memref<2048x10xf32, #tpu.memory_space<vmem>>, %arg3: memref<1x10xf32, #tpu.memory_space<vmem>>, %arg4: memref<2x10xf32, #tpu.memory_space<vmem>>) attributes {dimension_semantics = [#tpu.dimension_semantics<arbitrary>], iteration_bounds = array<i64: 1>, scalar_prefetch = 0 : i64, scratch_operands = 0 : i64, tpu.core_type = #tpu.core_type<tc>, window_params = [{pipeline_mode = #tpu.pipeline_mode<synchronous>, transform_indices = @transform_0, window_bounds = array<i64: 2, 2048>}, {pipeline_mode = #tpu.pipeline_mode<synchronous>, transform_indices = @transform_1, window_bounds = array<i64: 2048, 10>}, {pipeline_mode = #tpu.pipeline_mode<synchronous>, transform_indices = @transform_2, window_bounds = array<i64: 1, 10>}, {pipeline_mode = #tpu.pipeline_mode<synchronous>, transform_indices = @transform_3, window_bounds = array<i64: 2, 10>}]} {
    %c0 = arith.constant 0 : index
    %c0_0 = arith.constant 0 : index
    %0 = vector.load %arg1[%c0, %c0_0] : memref<2x2048xf32, #tpu.memory_space<vmem>>, vector<2x2048xf32>
    %c0_1 = arith.constant 0 : index
    %c0_2 = arith.constant 0 : index
    %1 = vector.load %arg2[%c0_1, %c0_2] : memref<2048x10xf32, #tpu.memory_space<vmem>>, vector<2048x10xf32>
    %cst = arith.constant dense<0.000000e+00> : vector<2x10xf32>
    %2 = tpu.matmul %0, %1, %cst {dimension_numbers = #tpu.dot_dimension_numbers<[1], [0], [0], [1], [0, 0, 1, 1], [], []>} : vector<2x2048xf32>, vector<2048x10xf32>, vector<2x10xf32> -> vector<2x10xf32>
    %c0_3 = arith.constant 0 : index
    %c0_4 = arith.constant 0 : index
    %3 = vector.load %arg3[%c0_3, %c0_4] : memref<1x10xf32, #tpu.memory_space<vmem>>, vector<1x10xf32>
    %4 = vector.broadcast %3 : vector<1x10xf32> to vector<2x10xf32>
    %5 = arith.addf %2, %4 : vector<2x10xf32>
    %c0_5 = arith.constant 0 : index
    %c0_6 = arith.constant 0 : index
    %6 = vector.load %arg4[%c0_5, %c0_6] : memref<2x10xf32, #tpu.memory_space<vmem>>, vector<2x10xf32>
    tpu.vector_store %arg4[%c0_5, %c0_6], %5 {strides = array<i32>} : memref<2x10xf32, #tpu.memory_space<vmem>>, vector<2x10xf32>,
    return
  }
  func.func @transform_0(%arg0: i32) -> (i32, i32) {
    %c0_i32 = arith.constant 0 : i32
    %c0_i32_0 = arith.constant 0 : i32
    %c0_i32_1 = arith.constant 0 : i32
    return %c0_i32, %c0_i32_0 : i32, i32
  }
  func.func @transform_1(%arg0: i32) -> (i32, i32) {
    %c0_i32 = arith.constant 0 : i32
    %c0_i32_0 = arith.constant 0 : i32
    %c0_i32_1 = arith.constant 0 : i32
    return %c0_i32, %c0_i32_0 : i32, i32
  }
  func.func @transform_2(%arg0: i32) -> (i32, i32) {
    %c0_i32 = arith.constant 0 : i32
    %c0_i32_0 = arith.constant 0 : i32
    %c0_i32_1 = arith.constant 0 : i32
    return %c0_i32, %c0_i32_0 : i32, i32
  }
  func.func @transform_3(%arg0: i32) -> (i32, i32) {
    %c0_i32 = arith.constant 0 : i32
    %c0_i32_0 = arith.constant 0 : i32
    %c0_i32_1 = arith.constant 0 : i32
    return %c0_i32, %c0_i32_0 : i32, i32
  }
}

</mosaic_0001>

<llo_original>
// kernel: cnn_forward.2
$region0: #{cnn_forward.2}
  #allocation0 [shape = 'u32[]', space=smem, size = 0x4, offset = 0x4, fixed_abs, tag = 'smem constant byte address 0x4 - core index']
  #allocation1 [shape = 'u32[144,128]{1,0:T(1,128)}', space=vmem, size = 0x12000, scoped, tag = 'internal scratch']
  %s0 = inlined_call_operand.vmem [shape: f32[4,512,36], index: 0, kind: input, shape index: {}]
  %s1 = inlined_call_operand.vmem [shape: f32[36,8], index: 1, kind: input, shape index: {}]
  %s2 = inlined_call_operand.vmem [shape: f32[1,8], index: 2, kind: input, shape index: {}]
  %s3 = inlined_call_operand.vmem [shape: f32[512,8], index: 3, kind: output, shape index: {}]
  %s4 = sld [smem:[#allocation0]]
  $region83: #{cnn_forward.2} parent=0
    _
  %s6 = ssub.s32 1, %s4
  %s7 = scalar_select 0, %s6, %s4
  $region1: #{cnn_forward.2} parent=0
    #allocation2 [shape = 'u8[1048576]{0}', space=vmem, size = 0x100000, scoped, tag = 'input window, operand 0']
    loop: start=0, step=1, limit=4
    $region2: #{cnn_forward.2} parent=1 // loop_pre_header
      _
    $region3: #{cnn_forward.2} parent=1 // loop_header
      %s9 = sphi 0, %s13
      %p10 = scmp.ge.s32.totalorder %s9, 4
      %s19 = sphi 0, %s21
      %s22 = sphi 0, %s19
      %s23 = sphi 0, %s22
      %s39 = sphi 0, %s23
      %s43 = sphi 0, %s43
      %s45 = sphi 0, %s43
      %s46 = sphi 0, %s45
      %s60 = sphi 0, %s46
      %s64 = sphi 0, %s64
      %s66 = sphi 0, %s64
      %s67 = sphi 0, %s66
      %s81 = sphi 0, %s67
      %s87 = sphi 0, %s89
      %s90 = sphi 0, %s87
      %s91 = sphi 0, %s90
      %s107 = sphi 0, %s91
    $region4: #{cnn_forward.2} parent=1 // loop_header_branch
      %12 = sbr.rel (%p10) target = $region8
    $region5: #{cnn_forward.2} parent=1 // loop_body
      %s14 = ssub.s32 %s9, 1
      %s15 = ssub.s32 %s9, 2
      %s16 = sadd.s32 %s9, 1
      %s17 = ssub.s32 %s9, %s16
      %p18 = scmp.eq.s32.totalorder %s17, 0
      %s20 = sadd.s32 %s19, 1
      %s21 = scalar_select %p18, %s19, %s20
      %p24 = pneg %p18
      %p25 = scmp.eq.s32.totalorder %s9, 1
      %p26 = por %p24, %p25
      %p27 = scmp.ne.s32.totalorder %s19, %s22
      %p28 = scmp.eq.s32.totalorder %s9, 0
      %p29 = por %p27, %p28
      %p30 = scmp.ne.s32.totalorder %s19, %s22
      %p31 = scmp.eq.s32.totalorder %s14, 1
      %p32 = por %p30, %p31
      %p33 = scmp.ne.s32.totalorder %s22, %s23
      %p34 = scmp.eq.s32.totalorder %s14, 0
      %p35 = por %p33, %p34
      %p36 = scmp.ne.s32.totalorder %s22, %s23
      %p37 = scmp.eq.s32.totalorder %s15, 1
      %p38 = por %p36, %p37
      %p40 = scmp.ne.s32.totalorder %s23, %s39
      %p41 = scmp.eq.s32.totalorder %s15, 0
      %p42 = por %p40, %p41
      %s44 = sadd.s32 %s43, 1
      %p47 = scmp.eq.s32.totalorder %s9, 1
      %p48 = scmp.ne.s32.totalorder %s43, %s45
      %p49 = scmp.eq.s32.totalorder %s9, 0
      %p50 = por %p48, %p49
      %p51 = scmp.ne.s32.totalorder %s43, %s45
      %p52 = scmp.eq.s32.totalorder %s14, 1
      %p53 = por %p51, %p52
      %p54 = scmp.ne.s32.totalorder %s45, %s46
      %p55 = scmp.eq.s32.totalorder %s14, 0
      %p56 = por %p54, %p55
      %p57 = scmp.ne.s32.totalorder %s45, %s46
      %p58 = scmp.eq.s32.totalorder %s15, 1
      %p59 = por %p57, %p58
      %p61 = scmp.ne.s32.totalorder %s46, %s60
      %p62 = scmp.eq.s32.totalorder %s15, 0
      %p63 = por %p61, %p62
      %s65 = sadd.s32 %s64, 1
      %p68 = scmp.eq.s32.totalorder %s9, 1
      %p69 = scmp.ne.s32.totalorder %s64, %s66
      %p70 = scmp.eq.s32.totalorder %s9, 0
      %p71 = por %p69, %p70
      %p72 = scmp.ne.s32.totalorder %s64, %s66
      %p73 = scmp.eq.s32.totalorder %s14, 1
      %p74 = por %p72, %p73
      %p75 = scmp.ne.s32.totalorder %s66, %s67
      %p76 = scmp.eq.s32.totalorder %s14, 0
      %p77 = por %p75, %p76
      %p78 = scmp.ne.s32.totalorder %s66, %s67
      %p79 = scmp.eq.s32.totalorder %s15, 1
      %p80 = por %p78, %p79
      %p82 = scmp.ne.s32.totalorder %s67, %s81
      %p83 = scmp.eq.s32.totalorder %s15, 0
      %p84 = por %p82, %p83
      %s85 = ssub.s32 %s9, %s16
      %p86 = scmp.eq.s32.totalorder %s85, 0
      %s88 = sadd.s32 %s87, 1
      %s89 = scalar_select %p86, %s87, %s88
      %p92 = pneg %p86
      %p93 = scmp.eq.s32.totalorder %s9, 1
      %p94 = por %p92, %p93
      %p95 = scmp.ne.s32.totalorder %s87, %s90
      %p96 = scmp.eq.s32.totalorder %s9, 0
      %p97 = por %p95, %p96
      %p98 = scmp.ne.s32.totalorder %s87, %s90
      %p99 = scmp.eq.s32.totalorder %s14, 1
      %p100 = por %p98, %p99
      %p101 = scmp.ne.s32.totalorder %s90, %s91
      %p102 = scmp.eq.s32.totalorder %s14, 0
      %p103 = por %p101, %p102
      %p104 = scmp.ne.s32.totalorder %s90, %s91
      %p105 = scmp.eq.s32.totalorder %s15, 1
      %p106 = por %p104, %p105
      %p108 = scmp.ne.s32.totalorder %s91, %s107
      %p109 = scmp.eq.s32.totalorder %s15, 0
      %p110 = por %p108, %p109
      %p111 = scmp.le.s32.totalorder 1, %s9
      %p112 = scmp.lt.s32.totalorder %s9, 3
      %p113 = pnand %p111, %p112
      %p114 = pneg %p113
      // Predicated region
      $region9: #{cnn_forward.2} parent=5 // pred_check
        _
      $region10: #{cnn_forward.2} parent=5 // pred_check_branch
        %116 = sbr.rel (%p113) target = $region12
      $region11: #{cnn_forward.2} parent=5 // pred_region
        %s117 = ssub.s32 %s9, 1
        // Predicated region
        $region13: #{cnn_forward.2} parent=11 // pred_check
          %p118 = pneg %p56
        $region14: #{cnn_forward.2} parent=11 // pred_check_branch
          %120 = sbr.rel (%p118) target = $region16
        $region15: #{cnn_forward.2} parent=11 // pred_region
          _
        $region16: #{cnn_forward.2} parent=11 // pred_fallthru
          _
        // Predicated region
        $region17: #{cnn_forward.2} parent=11 // pred_check
          %p121 = pneg %p77
        $region18: #{cnn_forward.2} parent=11 // pred_check_branch
          %123 = sbr.rel (%p121) target = $region20
        $region19: #{cnn_forward.2} parent=11 // pred_region
          _
        $region20: #{cnn_forward.2} parent=11 // pred_fallthru
          _
      $region12: #{cnn_forward.2} parent=5 // pred_fallthru
        _
      %p124 = scmp.lt.s32.totalorder %s9, 2
      // Predicated region
      $region21: #{cnn_forward.2} parent=5 // pred_check
        %p125 = pneg %p124
      $region22: #{cnn_forward.2} parent=5 // pred_check_branch
        %127 = sbr.rel (%p125) target = $region24
      $region23: #{cnn_forward.2} parent=5 // pred_region
        // Predicated region
        $region25: #{cnn_forward.2} parent=23 // pred_check
          %p128 = pneg %p29
        $region26: #{cnn_forward.2} parent=23 // pred_check_branch
          %130 = sbr.rel (%p128) target = $region28
        $region27: #{cnn_forward.2} parent=23 // pred_region
          %s131 = sand.u32 %s19, 1
          %s132 = sand.u32 %s19, 1
          %s133 = smul.addr %s132, 1024
          %s134 = scalar_lea.vmem [#allocation2], %s133
          %s135 = smul.u32 32, %s9
          %s136 = smul.addr %s135, 8
          %s137 = scalar_lea.vmem %s0, %s136
          // Predicated region
          $region29: #{cnn_forward.2} parent=27 // pred_check
            _
          $region30: #{cnn_forward.2} parent=27 // pred_check_branch
            %139 = sbr.rel (0) target = $region32
          $region31: #{cnn_forward.2} parent=27 // pred_region
            // Predicated region
            $region33: #{cnn_forward.2} parent=31 // pred_check
              _
            $region34: #{cnn_forward.2} parent=31 // pred_check_branch
              %141 = sbr.rel (0) target = $region36
            $region35: #{cnn_forward.2} parent=31 // pred_region
              // Predicated region
              $region48: #{cnn_forward.2} parent=35 // pred_check
                _
              $region49: #{cnn_forward.2} parent=35 // pred_check_branch
                %410 = sbr.rel (0) target = $region51
              $region50: #{cnn_forward.2} parent=35 // pred_region
                loop: start=0, step=1, limit=1
                $region52: #{cnn_forward.2} parent=50 // loop_pre_header
                  _
                $region53: #{cnn_forward.2} parent=50 // loop_header
                  %s412 = sphi 0, %s416
                  %p413 = scmp.ge.s32.totalorder %s412, 1
                  %s417 = sphi %s137, %s137
                  %s418 = sphi %s134, %s134
                $region54: #{cnn_forward.2} parent=50 // loop_header_branch
                  %415 = sbr.rel (%p413) target = $region58
                $region55: #{cnn_forward.2} parent=50 // loop_body
                  %v419 = vld [vmem:[%s417] sm:$0xff]
                  %420 = vst [vmem:[%s418] sm:$0xff] %v419
                  %v421 = vld [vmem:[%s417 + $0x8] sm:$0xff]
                  %422 = vst [vmem:[%s418 + $0x8] sm:$0xff] %v421
                  %v423 = vld [vmem:[%s417 + $0x10] sm:$0xff]
                  %424 = vst [vmem:[%s418 + $0x10] sm:$0xff] %v423
                  %v425 = vld [vmem:[%s417 + $0x18] sm:$0xff]
                  %426 = vst [vmem:[%s418 + $0x18] sm:$0xff] %v425
                  %v427 = vld [vmem:[%s417 + $0x20] sm:$0xff]
                  %428 = vst [vmem:[%s418 + $0x20] sm:$0xff] %v427
                  %v429 = vld [vmem:[%s417 + $0x28] sm:$0xff]
                  %430 = vst [vmem:[%s418 + $0x28] sm:$0xff] %v429
                  %v431 = vld [vmem:[%s417 + $0x30] sm:$0xff]
                  %432 = vst [vmem:[%s418 + $0x30] sm:$0xff] %v431
                  %v433 = vld [vmem:[%s417 + $0x38] sm:$0xff]
                  %434 = vst [vmem:[%s418 + $0x38] sm:$0xff] %v433
                  %v435 = vld [vmem:[%s417 + $0x40] sm:$0xff]
                  %436 = vst [vmem:[%s418 + $0x40] sm:$0xff] %v435
                  %v437 = vld [vmem:[%s417 + $0x48] sm:$0xff]
                  %438 = vst [vmem:[%s418 + $0x48] sm:$0xff] %v437
                  %v439 = vld [vmem:[%s417 + $0x50] sm:$0xff]
                  %440 = vst [vmem:[%s418 + $0x50] sm:$0xff] %v439
                  %v441 = vld [vmem:[%s417 + $0x58] sm:$0xff]
                  %442 = vst [vmem:[%s418 + $0x58] sm:$0xff] %v441
                  %v443 = vld [vmem:[%s417 + $0x60] sm:$0xff]
                  %444 = vst [vmem:[%s418 + $0x60] sm:$0xff] %v443
                  %v445 = vld [vmem:[%s417 + $0x68] sm:$0xff]
                  %446 = vst [vmem:[%s418 + $0x68] sm:$0xff] %v445
                  %v447 = vld [vmem:[%s417 + $0x70] sm:$0xff]
                  %448 = vst [vmem:[%s418 + $0x70] sm:$0xff] %v447
                  %v449 = vld [vmem:[%s417 + $0x78] sm:$0xff]
                  %450 = vst [vmem:[%s418 + $0x78] sm:$0xff] %v449
                  %v451 = vld [vmem:[%s417 + $0x80] sm:$0xff]
                  %452 = vst [vmem:[%s418 + $0x80] sm:$0xff] %v451
                  %v453 = vld [vmem:[%s417 + $0x88] sm:$0xff]
                  %454 = vst [vmem:[%s418 + $0x88] sm:$0xff] %v453
                  %v455 = vld [vmem:[%s417 + $0x90] sm:$0xff]
                  %456 = vst [vmem:[%s418 + $0x90] sm:$0xff] %v455
                  %v457 = vld [vmem:[%s417 + $0x98] sm:$0xff]
                  %458 = vst [vmem:[%s418 + $0x98] sm:$0xff] %v457
                  %v459 = vld [vmem:[%s417 + $0xa0] sm:$0xff]
                  %460 = vst [vmem:[%s418 + $0xa0] sm:$0xff] %v459
                  %v461 = vld [vmem:[%s417 + $0xa8] sm:$0xff]
                  %462 = vst [vmem:[%s418 + $0xa8] sm:$0xff] %v461
                  %v463 = vld [vmem:[%s417 + $0xb0] sm:$0xff]
                  %464 = vst [vmem:[%s418 + $0xb0] sm:$0xff] %v463
                  %v465 = vld [vmem:[%s417 + $0xb8] sm:$0xff]
                  %466 = vst [vmem:[%s418 + $0xb8] sm:$0xff] %v465
                  %v467 = vld [vmem:[%s417 + $0xc0] sm:$0xff]
                  %468 = vst [vmem:[%s418 + $0xc0] sm:$0xff] %v467
                  %v469 = vld [vmem:[%s417 + $0xc8] sm:$0xff]
                  %470 = vst [vmem:[%s418 + $0xc8] sm:$0xff] %v469
                  %v471 = vld [vmem:[%s417 + $0xd0] sm:$0xff]
                  %472 = vst [vmem:[%s418 + $0xd0] sm:$0xff] %v471
                  %v473 = vld [vmem:[%s417 + $0xd8] sm:$0xff]
                  %474 = vst [vmem:[%s418 + $0xd8] sm:$0xff] %v473
                  %v475 = vld [vmem:[%s417 + $0xe0] sm:$0xff]
                  %476 = vst [vmem:[%s418 + $0xe0] sm:$0xff] %v475
                  %v477 = vld [vmem:[%s417 + $0xe8] sm:$0xff]
                  %478 = vst [vmem:[%s418 + $0xe8] sm:$0xff] %v477
                  %v479 = vld [vmem:[%s417 + $0xf0] sm:$0xff]
                  %480 = vst [vmem:[%s418 + $0xf0] sm:$0xff] %v479
                  %v481 = vld [vmem:[%s417 + $0xf8] sm:$0xff]
                  %482 = vst [vmem:[%s418 + $0xf8] sm:$0xff] %v481
                  %v483 = vld [vmem:[%s417 + $0x200] sm:$0xff]
                  %484 = vst [vmem:[%s418 + $0x100] sm:$0xff] %v483
                  %v485 = vld [vmem:[%s417 + $0x208] sm:$0xff]
                  %486 = vst [vmem:[%s418 + $0x108] sm:$0xff] %v485
                  %v487 = vld [vmem:[%s417 + $0x210] sm:$0xff]
                  %488 = vst [vmem:[%s418 + $0x110] sm:$0xff] %v487
                  %v489 = vld [vmem:[%s417 + $0x218] sm:$0xff]
                  %490 = vst [vmem:[%s418 + $0x118] sm:$0xff] %v489
                  %v491 = vld [vmem:[%s417 + $0x220] sm:$0xff]
                  %492 = vst [vmem:[%s418 + $0x120] sm:$0xff] %v491
                  %v493 = vld [vmem:[%s417 + $0x228] sm:$0xff]
                  %494 = vst [vmem:[%s418 + $0x128] sm:$0xff] %v493
                  %v495 = vld [vmem:[%s417 + $0x230] sm:$0xff]
                  %496 = vst [vmem:[%s418 + $0x130] sm:$0xff] %v495
                  %v497 = vld [vmem:[%s417 + $0x238] sm:$0xff]
                  %498 = vst [vmem:[%s418 + $0x138] sm:$0xff] %v497
                  %v499 = vld [vmem:[%s417 + $0x240] sm:$0xff]
                  %500 = vst [vmem:[%s418 + $0x140] sm:$0xff] %v499
                  %v501 = vld [vmem:[%s417 + $0x248] sm:$0xff]
                  %502 = vst [vmem:[%s418 + $0x148] sm:$0xff] %v501
                  %v503 = vld [vmem:[%s417 + $0x250] sm:$0xff]
                  %504 = vst [vmem:[%s418 + $0x150] sm:$0xff] %v503
                  %v505 = vld [vmem:[%s417 + $0x258] sm:$0xff]
                  %506 = vst [vmem:[%s418 + $0x158] sm:$0xff] %v505
                  %v507 = vld [vmem:[%s417 + $0x260] sm:$0xff]
                  %508 = vst [vmem:[%s418 + $0x160] sm:$0xff] %v507
                  %v509 = vld [vmem:[%s417 + $0x268] sm:$0xff]
                  %510 = vst [vmem:[%s418 + $0x168] sm:$0xff] %v509
                  %v511 = vld [vmem:[%s417 + $0x270] sm:$0xff]
                  %512 = vst [vmem:[%s418 + $0x170] sm:$0xff] %v511
                  %v513 = vld [vmem:[%s417 + $0x278] sm:$0xff]
                  %514 = vst [vmem:[%s418 + $0x178] sm:$0xff] %v513
                  %v515 = vld [vmem:[%s417 + $0x280] sm:$0xff]
                  %516 = vst [vmem:[%s418 + $0x180] sm:$0xff] %v515
                  %v517 = vld [vmem:[%s417 + $0x288] sm:$0xff]
                  %518 = vst [vmem:[%s418 + $0x188] sm:$0xff] %v517
                  %v519 = vld [vmem:[%s417 + $0x290] sm:$0xff]
                  %520 = vst [vmem:[%s418 + $0x190] sm:$0xff] %v519
                  %v521 = vld [vmem:[%s417 + $0x298] sm:$0xff]
                  %522 = vst [vmem:[%s418 + $0x198] sm:$0xff] %v521
                  %v523 = vld [vmem:[%s417 + $0x2a0] sm:$0xff]
                  %524 = vst [vmem:[%s418 + $0x1a0] sm:$0xff] %v523
                  %v525 = vld [vmem:[%s417 + $0x2a8] sm:$0xff]
                  %526 = vst [vmem:[%s418 + $0x1a8] sm:$0xff] %v525
                  %v527 = vld [vmem:[%s417 + $0x2b0] sm:$0xff]
                  %528 = vst [vmem:[%s418 + $0x1b0] sm:$0xff] %v527
                  %v529 = vld [vmem:[%s417 + $0x2b8] sm:$0xff]
                  %530 = vst [vmem:[%s418 + $0x1b8] sm:$0xff] %v529
                  %v531 = vld [vmem:[%s417 + $0x2c0] sm:$0xff]
                  %532 = vst [vmem:[%s418 + $0x1c0] sm:$0xff] %v531
                  %v533 = vld [vmem:[%s417 + $0x2c8] sm:$0xff]
                  %534 = vst [vmem:[%s418 + $0x1c8] sm:$0xff] %v533
                  %v535 = vld [vmem:[%s417 + $0x2d0] sm:$0xff]
                  %536 = vst [vmem:[%s418 + $0x1d0] sm:$0xff] %v535
                  %v537 = vld [vmem:[%s417 + $0x2d8] sm:$0xff]
                  %538 = vst [vmem:[%s418 + $0x1d8] sm:$0xff] %v537
                  %v539 = vld [vmem:[%s417 + $0x2e0] sm:$0xff]
                  %540 = vst [vmem:[%s418 + $0x1e0] sm:$0xff] %v539
                  %v541 = vld [vmem:[%s417 + $0x2e8] sm:$0xff]
                  %542 = vst [vmem:[%s418 + $0x1e8] sm:$0xff] %v541
                  %v543 = vld [vmem:[%s417 + $0x2f0] sm:$0xff]
                  %544 = vst [vmem:[%s418 + $0x1f0] sm:$0xff] %v543
                  %v545 = vld [vmem:[%s417 + $0x2f8] sm:$0xff]
                  %546 = vst [vmem:[%s418 + $0x1f8] sm:$0xff] %v545
                  %v547 = vld [vmem:[%s417 + $0x400] sm:$0xff]
                  %548 = vst [vmem:[%s418 + $0x200] sm:$0xff] %v547
                  %v549 = vld [vmem:[%s417 + $0x408] sm:$0xff]
                  %550 = vst [vmem:[%s418 + $0x208] sm:$0xff] %v549
                  %v551 = vld [vmem:[%s417 + $0x410] sm:$0xff]
                  %552 = vst [vmem:[%s418 + $0x210] sm:$0xff] %v551
                  %v553 = vld [vmem:[%s417 + $0x418] sm:$0xff]
                  %554 = vst [vmem:[%s418 + $0x218] sm:$0xff] %v553
                  %v555 = vld [vmem:[%s417 + $0x420] sm:$0xff]
                  %556 = vst [vmem:[%s418 + $0x220] sm:$0xff] %v555
                  %v557 = vld [vmem:[%s417 + $0x428] sm:$0xff]
                  %558 = vst [vmem:[%s418 + $0x228] sm:$0xff] %v557
                  %v559 = vld [vmem:[%s417 + $0x430] sm:$0xff]
                  %560 = vst [vmem:[%s418 + $0x230] sm:$0xff] %v559
                  %v561 = vld [vmem:[%s417 + $0x438] sm:$0xff]
                  %562 = vst [vmem:[%s418 + $0x238] sm:$0xff] %v561
                  %v563 = vld [vmem:[%s417 + $0x440] sm:$0xff]
                  %564 = vst [vmem:[%s418 + $0x240] sm:$0xff] %v563
                  %v565 = vld [vmem:[%s417 + $0x448] sm:$0xff]
                  %566 = vst [vmem:[%s418 + $0x248] sm:$0xff] %v565
                  %v567 = vld [vmem:[%s417 + $0x450] sm:$0xff]
                  %568 = vst [vmem:[%s418 + $0x250] sm:$0xff] %v567
                  %v569 = vld [vmem:[%s417 + $0x458] sm:$0xff]
                  %570 = vst [vmem:[%s418 + $0x258] sm:$0xff] %v569
                  %v571 = vld [vmem:[%s417 + $0x460] sm:$0xff]
                  %572 = vst [vmem:[%s418 + $0x260] sm:$0xff] %v571
                  %v573 = vld [vmem:[%s417 + $0x468] sm:$0xff]
                  %574 = vst [vmem:[%s418 + $0x268] sm:$0xff] %v573
                  %v575 = vld [vmem:[%s417 + $0x470] sm:$0xff]
                  %576 = vst [vmem:[%s418 + $0x270] sm:$0xff] %v575
                  %v577 = vld [vmem:[%s417 + $0x478] sm:$0xff]
                  %578 = vst [vmem:[%s418 + $0x278] sm:$0xff] %v577
                  %v579 = vld [vmem:[%s417 + $0x480] sm:$0xff]
                  %580 = vst [vmem:[%s418 + $0x280] sm:$0xff] %v579
                  %v581 = vld [vmem:[%s417 + $0x488] sm:$0xff]
                  %582 = vst [vmem:[%s418 + $0x288] sm:$0xff] %v581
                  %v583 = vld [vmem:[%s417 + $0x490] sm:$0xff]
                  %584 = vst [vmem:[%s418 + $0x290] sm:$0xff] %v583
                  %v585 = vld [vmem:[%s417 + $0x498] sm:$0xff]
                  %586 = vst [vmem:[%s418 + $0x298] sm:$0xff] %v585
                  %v587 = vld [vmem:[%s417 + $0x4a0] sm:$0xff]
                  %588 = vst [vmem:[%s418 + $0x2a0] sm:$0xff] %v587
                  %v589 = vld [vmem:[%s417 + $0x4a8] sm:$0xff]
                  %590 = vst [vmem:[%s418 + $0x2a8] sm:$0xff] %v589
                  %v591 = vld [vmem:[%s417 + $0x4b0] sm:$0xff]
                  %592 = vst [vmem:[%s418 + $0x2b0] sm:$0xff] %v591
                  %v593 = vld [vmem:[%s417 + $0x4b8] sm:$0xff]
                  %594 = vst [vmem:[%s418 + $0x2b8] sm:$0xff] %v593
                  %v595 = vld [vmem:[%s417 + $0x4c0] sm:$0xff]
                  %596 = vst [vmem:[%s418 + $0x2c0] sm:$0xff] %v595
                  %v597 = vld [vmem:[%s417 + $0x4c8] sm:$0xff]
                  %598 = vst [vmem:[%s418 + $0x2c8] sm:$0xff] %v597
                  %v599 = vld [vmem:[%s417 + $0x4d0] sm:$0xff]
                  %600 = vst [vmem:[%s418 + $0x2d0] sm:$0xff] %v599
                  %v601 = vld [vmem:[%s417 + $0x4d8] sm:$0xff]
                  %602 = vst [vmem:[%s418 + $0x2d8] sm:$0xff] %v601
                  %v603 = vld [vmem:[%s417 + $0x4e0] sm:$0xff]
                  %604 = vst [vmem:[%s418 + $0x2e0] sm:$0xff] %v603
                  %v605 = vld [vmem:[%s417 + $0x4e8] sm:$0xff]
                  %606 = vst [vmem:[%s418 + $0x2e8] sm:$0xff] %v605
                  %v607 = vld [vmem:[%s417 + $0x4f0] sm:$0xff]
                  %608 = vst [vmem:[%s418 + $0x2f0] sm:$0xff] %v607
                  %v609 = vld [vmem:[%s417 + $0x4f8] sm:$0xff]
                  %610 = vst [vmem:[%s418 + $0x2f8] sm:$0xff] %v609
                  %v611 = vld [vmem:[%s417 + $0x600] sm:$0xff]
                  %612 = vst [vmem:[%s418 + $0x300] sm:$0xff] %v611
                  %v613 = vld [vmem:[%s417 + $0x608] sm:$0xff]
                  %614 = vst [vmem:[%s418 + $0x308] sm:$0xff] %v613
                  %v615 = vld [vmem:[%s417 + $0x610] sm:$0xff]
                  %616 = vst [vmem:[%s418 + $0x310] sm:$0xff] %v615
                  %v617 = vld [vmem:[%s417 + $0x618] sm:$0xff]
                  %618 = vst [vmem:[%s418 + $0x318] sm:$0xff] %v617
                  %v619 = vld [vmem:[%s417 + $0x620] sm:$0xff]
                  %620 = vst [vmem:[%s418 + $0x320] sm:$0xff] %v619
                  %v621 = vld [vmem:[%s417 + $0x628] sm:$0xff]
                  %622 = vst [vmem:[%s418 + $0x328] sm:$0xff] %v621
                  %v623 = vld [vmem:[%s417 + $0x630] sm:$0xff]
                  %624 = vst [vmem:[%s418 + $0x330] sm:$0xff] %v623
                  %v625 = vld [vmem:[%s417 + $0x638] sm:$0xff]
                  %626 = vst [vmem:[%s418 + $0x338] sm:$0xff] %v625
                  %v627 = vld [vmem:[%s417 + $0x640] sm:$0xff]
                  %628 = vst [vmem:[%s418 + $0x340] sm:$0xff] %v627
                  %v629 = vld [vmem:[%s417 + $0x648] sm:$0xff]
                  %630 = vst [vmem:[%s418 + $0x348] sm:$0xff] %v629
                  %v631 = vld [vmem:[%s417 + $0x650] sm:$0xff]
                  %632 = vst [vmem:[%s418 + $0x350] sm:$0xff] %v631
                  %v633 = vld [vmem:[%s417 + $0x658] sm:$0xff]
                  %634 = vst [vmem:[%s418 + $0x358] sm:$0xff] %v633
                  %v635 = vld [vmem:[%s417 + $0x660] sm:$0xff]
                  %636 = vst [vmem:[%s418 + $0x360] sm:$0xff] %v635
                  %v637 = vld [vmem:[%s417 + $0x668] sm:$0xff]
                  %638 = vst [vmem:[%s418 + $0x368] sm:$0xff] %v637
                  %v639 = vld [vmem:[%s417 + $0x670] sm:$0xff]
                  %640 = vst [vmem:[%s418 + $0x370] sm:$0xff] %v639
                  %v641 = vld [vmem:[%s417 + $0x678] sm:$0xff]
                  %642 = vst [vmem:[%s418 + $0x378] sm:$0xff] %v641
                  %v643 = vld [vmem:[%s417 + $0x680] sm:$0xff]
                  %644 = vst [vmem:[%s418 + $0x380] sm:$0xff] %v643
                  %v645 = vld [vmem:[%s417 + $0x688] sm:$0xff]
                  %646 = vst [vmem:[%s418 + $0x388] sm:$0xff] %v645
                  %v647 = vld [vmem:[%s417 + $0x690] sm:$0xff]
                  %648 = vst [vmem:[%s418 + $0x390] sm:$0xff] %v647
                  %v649 = vld [vmem:[%s417 + $0x698] sm:$0xff]
                  %650 = vst [vmem:[%s418 + $0x398] sm:$0xff] %v649
                  %v651 = vld [vmem:[%s417 + $0x6a0] sm:$0xff]
                  %652 = vst [vmem:[%s418 + $0x3a0] sm:$0xff] %v651
                  %v653 = vld [vmem:[%s417 + $0x6a8] sm:$0xff]
                  %654 = vst [vmem:[%s418 + $0x3a8] sm:$0xff] %v653
                  %v655 = vld [vmem:[%s417 + $0x6b0] sm:$0xff]
                  %656 = vst [vmem:[%s418 + $0x3b0] sm:$0xff] %v655
                  %v657 = vld [vmem:[%s417 + $0x6b8] sm:$0xff]
                  %658 = vst [vmem:[%s418 + $0x3b8] sm:$0xff] %v657
                  %v659 = vld [vmem:[%s417 + $0x6c0] sm:$0xff]
                  %660 = vst [vmem:[%s418 + $0x3c0] sm:$0xff] %v659
                  %v661 = vld [vmem:[%s417 + $0x6c8] sm:$0xff]
                  %662 = vst [vmem:[%s418 + $0x3c8] sm:$0xff] %v661
                  %v663 = vld [vmem:[%s417 + $0x6d0] sm:$0xff]
                  %664 = vst [vmem:[%s418 + $0x3d0] sm:$0xff] %v663
                  %v665 = vld [vmem:[%s417 + $0x6d8] sm:$0xff]
                  %666 = vst [vmem:[%s418 + $0x3d8] sm:$0xff] %v665
                  %v667 = vld [vmem:[%s417 + $0x6e0] sm:$0xff]
                  %668 = vst [vmem:[%s418 + $0x3e0] sm:$0xff] %v667
                  %v669 = vld [vmem:[%s417 + $0x6e8] sm:$0xff]
                  %670 = vst [vmem:[%s418 + $0x3e8] sm:$0xff] %v669
                  %v671 = vld [vmem:[%s417 + $0x6f0] sm:$0xff]
                  %672 = vst [vmem:[%s418 + $0x3f0] sm:$0xff] %v671
                  %v673 = vld [vmem:[%s417 + $0x6f8] sm:$0xff]
                  %674 = vst [vmem:[%s418 + $0x3f8] sm:$0xff] %v673
                $region56: #{cnn_forward.2} parent=50 // loop_footer
                  %s416 = sadd.s32 1, %s412
                $region57: #{cnn_forward.2} parent=50 // loop_footer_branch
                  %411 = sbr.rel target = $region53
                $region58: #{cnn_forward.2} parent=50 // loop_exit
                  _
              $region51: #{cnn_forward.2} parent=35 // pred_fallthru
                _
              // Predicated region
              $region59: #{cnn_forward.2} parent=35 // pred_check
                _
              $region60: #{cnn_forward.2} parent=35 // pred_check_branch
                %676 = sbr.rel target = $region62
              $region61: #{cnn_forward.2} parent=35 // pred_region
                _
              $region62: #{cnn_forward.2} parent=35 // pred_fallthru
                _
            $region36: #{cnn_forward.2} parent=31 // pred_fallthru
              _
            // Predicated region
            $region37: #{cnn_forward.2} parent=31 // pred_check
              _
            $region38: #{cnn_forward.2} parent=31 // pred_check_branch
              %143 = sbr.rel target = $region40
            $region39: #{cnn_forward.2} parent=31 // pred_region
              loop: start=0, step=1, limit=1
              $region41: #{cnn_forward.2} parent=39 // loop_pre_header
                _
              $region42: #{cnn_forward.2} parent=39 // loop_header
                %s146 = sphi 0, %s150
                %p147 = scmp.ge.s32.totalorder %s146, 1
                %s151 = sphi %s137, %s137
                %s152 = sphi %s134, %s134
              $region43: #{cnn_forward.2} parent=39 // loop_header_branch
                %149 = sbr.rel (%p147) target = $region47
              $region44: #{cnn_forward.2} parent=39 // loop_body
                %v153 = vld [vmem:[%s151] sm:$0xff]
                %154 = vst [vmem:[%s152] sm:$0xff] %v153
                %v155 = vld [vmem:[%s151 + $0x8] sm:$0xff]
                %156 = vst [vmem:[%s152 + $0x8] sm:$0xff] %v155
                %v157 = vld [vmem:[%s151 + $0x10] sm:$0xff]
                %158 = vst [vmem:[%s152 + $0x10] sm:$0xff] %v157
                %v159 = vld [vmem:[%s151 + $0x18] sm:$0xff]
                %160 = vst [vmem:[%s152 + $0x18] sm:$0xff] %v159
                %v161 = vld [vmem:[%s151 + $0x20] sm:$0xff]
                %162 = vst [vmem:[%s152 + $0x20] sm:$0xff] %v161
                %v163 = vld [vmem:[%s151 + $0x28] sm:$0xff]
                %164 = vst [vmem:[%s152 + $0x28] sm:$0xff] %v163
                %v165 = vld [vmem:[%s151 + $0x30] sm:$0xff]
                %166 = vst [vmem:[%s152 + $0x30] sm:$0xff] %v165
                %v167 = vld [vmem:[%s151 + $0x38] sm:$0xff]
                %168 = vst [vmem:[%s152 + $0x38] sm:$0xff] %v167
                %v169 = vld [vmem:[%s151 + $0x40] sm:$0xff]
                %170 = vst [vmem:[%s152 + $0x40] sm:$0xff] %v169
                %v171 = vld [vmem:[%s151 + $0x48] sm:$0xff]
                %172 = vst [vmem:[%s152 + $0x48] sm:$0xff] %v171
                %v173 = vld [vmem:[%s151 + $0x50] sm:$0xff]
                %174 = vst [vmem:[%s152 + $0x50] sm:$0xff] %v173
                %v175 = vld [vmem:[%s151 + $0x58] sm:$0xff]
                %176 = vst [vmem:[%s152 + $0x58] sm:$0xff] %v175
                %v177 = vld [vmem:[%s151 + $0x60] sm:$0xff]
                %178 = vst [vmem:[%s152 + $0x60] sm:$0xff] %v177
                %v179 = vld [vmem:[%s151 + $0x68] sm:$0xff]
                %180 = vst [vmem:[%s152 + $0x68] sm:$0xff] %v179
                %v181 = vld [vmem:[%s151 + $0x70] sm:$0xff]
                %182 = vst [vmem:[%s152 + $0x70] sm:$0xff] %v181
                %v183 = vld [vmem:[%s151 + $0x78] sm:$0xff]
                %184 = vst [vmem:[%s152 + $0x78] sm:$0xff] %v183
                %v185 = vld [vmem:[%s151 + $0x80] sm:$0xff]
                %186 = vst [vmem:[%s152 + $0x80] sm:$0xff] %v185
                %v187 = vld [vmem:[%s151 + $0x88] sm:$0xff]
                %188 = vst [vmem:[%s152 + $0x88] sm:$0xff] %v187
                %v189 = vld [vmem:[%s151 + $0x90] sm:$0xff]
                %190 = vst [vmem:[%s152 + $0x90] sm:$0xff] %v189
                %v191 = vld [vmem:[%s151 + $0x98] sm:$0xff]
                %192 = vst [vmem:[%s152 + $0x98] sm:$0xff] %v191
                %v193 = vld [vmem:[%s151 + $0xa0] sm:$0xff]
                %194 = vst [vmem:[%s152 + $0xa0] sm:$0xff] %v193
                %v195 = vld [vmem:[%s151 + $0xa8] sm:$0xff]
                %196 = vst [vmem:[%s152 + $0xa8] sm:$0xff] %v195
                %v197 = vld [vmem:[%s151 + $0xb0] sm:$0xff]
                %198 = vst [vmem:[%s152 + $0xb0] sm:$0xff] %v197
                %v199 = vld [vmem:[%s151 + $0xb8] sm:$0xff]
                %200 = vst [vmem:[%s152 + $0xb8] sm:$0xff] %v199
                %v201 = vld [vmem:[%s151 + $0xc0] sm:$0xff]
                %202 = vst [vmem:[%s152 + $0xc0] sm:$0xff] %v201
                %v203 = vld [vmem:[%s151 + $0xc8] sm:$0xff]
                %204 = vst [vmem:[%s152 + $0xc8] sm:$0xff] %v203
                %v205 = vld [vmem:[%s151 + $0xd0] sm:$0xff]
                %206 = vst [vmem:[%s152 + $0xd0] sm:$0xff] %v205
                %v207 = vld [vmem:[%s151 + $0xd8] sm:$0xff]
                %208 = vst [vmem:[%s152 + $0xd8] sm:$0xff] %v207
                %v209 = vld [vmem:[%s151 + $0xe0] sm:$0xff]
                %210 = vst [vmem:[%s152 + $0xe0] sm:$0xff] %v209
                %v211 = vld [vmem:[%s151 + $0xe8] sm:$0xff]
                %212 = vst [vmem:[%s152 + $0xe8] sm:$0xff] %v211
                %v213 = vld [vmem:[%s151 + $0xf0] sm:$0xff]
                %214 = vst [vmem:[%s152 + $0xf0] sm:$0xff] %v213
                %v215 = vld [vmem:[%s151 + $0xf8] sm:$0xff]
                %216 = vst [vmem:[%s152 + $0xf8] sm:$0xff] %v215
                %v217 = vld [vmem:[%s151 + $0x200] sm:$0xff]
                %218 = vst [vmem:[%s152 + $0x100] sm:$0xff] %v217
                %v219 = vld [vmem:[%s151 + $0x208] sm:$0xff]
                %220 = vst [vmem:[%s152 + $0x108] sm:$0xff] %v219
                %v221 = vld [vmem:[%s151 + $0x210] sm:$0xff]
                %222 = vst [vmem:[%s152 + $0x110] sm:$0xff] %v221
                %v223 = vld [vmem:[%s151 + $0x218] sm:$0xff]
                %224 = vst [vmem:[%s152 + $0x118] sm:$0xff] %v223
                %v225 = vld [vmem:[%s151 + $0x220] sm:$0xff]
                %226 = vst [vmem:[%s152 + $0x120] sm:$0xff] %v225
                %v227 = vld [vmem:[%s151 + $0x228] sm:$0xff]
                %228 = vst [vmem:[%s152 + $0x128] sm:$0xff] %v227
                %v229 = vld [vmem:[%s151 + $0x230] sm:$0xff]
                %230 = vst [vmem:[%s152 + $0x130] sm:$0xff] %v229
                %v231 = vld [vmem:[%s151 + $0x238] sm:$0xff]
                %232 = vst [vmem:[%s152 + $0x138] sm:$0xff] %v231
                %v233 = vld [vmem:[%s151 + $0x240] sm:$0xff]
                %234 = vst [vmem:[%s152 + $0x140] sm:$0xff] %v233
                %v235 = vld [vmem:[%s151 + $0x248] sm:$0xff]
                %236 = vst [vmem:[%s152 + $0x148] sm:$0xff] %v235
                %v237 = vld [vmem:[%s151 + $0x250] sm:$0xff]
                %238 = vst [vmem:[%s152 + $0x150] sm:$0xff] %v237
                %v239 = vld [vmem:[%s151 + $0x258] sm:$0xff]
                %240 = vst [vmem:[%s152 + $0x158] sm:$0xff] %v239
                %v241 = vld [vmem:[%s151 + $0x260] sm:$0xff]
                %242 = vst [vmem:[%s152 + $0x160] sm:$0xff] %v241
                %v243 = vld [vmem:[%s151 + $0x268] sm:$0xff]
                %244 = vst [vmem:[%s152 + $0x168] sm:$0xff] %v243
                %v245 = vld [vmem:[%s151 + $0x270] sm:$0xff]
                %246 = vst [vmem:[%s152 + $0x170] sm:$0xff] %v245
                %v247 = vld [vmem:[%s151 + $0x278] sm:$0xff]
                %248 = vst [vmem:[%s152 + $0x178] sm:$0xff] %v247
                %v249 = vld [vmem:[%s151 + $0x280] sm:$0xff]
                %250 = vst [vmem:[%s152 + $0x180] sm:$0xff] %v249
                %v251 = vld [vmem:[%s151 + $0x288] sm:$0xff]
                %252 = vst [vmem:[%s152 + $0x188] sm:$0xff] %v251
                %v253 = vld [vmem:[%s151 + $0x290] sm:$0xff]
                %254 = vst [vmem:[%s152 + $0x190] sm:$0xff] %v253
                %v255 = vld [vmem:[%s151 + $0x298] sm:$0xff]
                %256 = vst [vmem:[%s152 + $0x198] sm:$0xff] %v255
                %v257 = vld [vmem:[%s151 + $0x2a0] sm:$0xff]
                %258 = vst [vmem:[%s152 + $0x1a0] sm:$0xff] %v257
                %v259 = vld [vmem:[%s151 + $0x2a8] sm:$0xff]
                %260 = vst [vmem:[%s152 + $0x1a8] sm:$0xff] %v259
                %v261 = vld [vmem:[%s151 + $0x2b0] sm:$0xff]
                %262 = vst [vmem:[%s152 + $0x1b0] sm:$0xff] %v261
                %v263 = vld [vmem:[%s151 + $0x2b8] sm:$0xff]
                %264 = vst [vmem:[%s152 + $0x1b8] sm:$0xff] %v263
                %v265 = vld [vmem:[%s151 + $0x2c0] sm:$0xff]
                %266 = vst [vmem:[%s152 + $0x1c0] sm:$0xff] %v265
                %v267 = vld [vmem:[%s151 + $0x2c8] sm:$0xff]
                %268 = vst [vmem:[%s152 + $0x1c8] sm:$0xff] %v267
                %v269 = vld [vmem:[%s151 + $0x2d0] sm:$0xff]
                %270 = vst [vmem:[%s152 + $0x1d0] sm:$0xff] %v269
                %v271 = vld [vmem:[%s151 + $0x2d8] sm:$0xff]
                %272 = vst [vmem:[%s152 + $0x1d8] sm:$0xff] %v271
                %v273 = vld [vmem:[%s151 + $0x2e0] sm:$0xff]
                %274 = vst [vmem:[%s152 + $0x1e0] sm:$0xff] %v273
                %v275 = vld [vmem:[%s151 + $0x2e8] sm:$0xff]
                %276 = vst [vmem:[%s152 + $0x1e8] sm:$0xff] %v275
                %v277 = vld [vmem:[%s151 + $0x2f0] sm:$0xff]
                %278 = vst [vmem:[%s152 + $0x1f0] sm:$0xff] %v277
                %v279 = vld [vmem:[%s151 + $0x2f8] sm:$0xff]
                %280 = vst [vmem:[%s152 + $0x1f8] sm:$0xff] %v279
                %v281 = vld [vmem:[%s151 + $0x400] sm:$0xff]
                %282 = vst [vmem:[%s152 + $0x200] sm:$0xff] %v281
                %v283 = vld [vmem:[%s151 + $0x408] sm:$0xff]
                %284 = vst [vmem:[%s152 + $0x208] sm:$0xff] %v283
                %v285 = vld [vmem:[%s151 + $0x410] sm:$0xff]
                %286 = vst [vmem:[%s152 + $0x210] sm:$0xff] %v285
                %v287 = vld [vmem:[%s151 + $0x418] sm:$0xff]
                %288 = vst [vmem:[%s152 + $0x218] sm:$0xff] %v287
                %v289 = vld [vmem:[%s151 + $0x420] sm:$0xff]
                %290 = vst [vmem:[%s152 + $0x220] sm:$0xff] %v289
                %v291 = vld [vmem:[%s151 + $0x428] sm:$0xff]
                %292 = vst [vmem:[%s152 + $0x228] sm:$0xff] %v291
                %v293 = vld [vmem:[%s151 + $0x430] sm:$0xff]
                %294 = vst [vmem:[%s152 + $0x230] sm:$0xff] %v293
                %v295 = vld [vmem:[%s151 + $0x438] sm:$0xff]
                %296 = vst [vmem:[%s152 + $0x238] sm:$0xff] %v295
                %v297 = vld [vmem:[%s151 + $0x440] sm:$0xff]
                %298 = vst [vmem:[%s152 + $0x240] sm:$0xff] %v297
                %v299 = vld [vmem:[%s151 + $0x448] sm:$0xff]
                %300 = vst [vmem:[%s152 + $0x248] sm:$0xff] %v299
                %v301 = vld [vmem:[%s151 + $0x450] sm:$0xff]
                %302 = vst [vmem:[%s152 + $0x250] sm:$0xff] %v301
                %v303 = vld [vmem:[%s151 + $0x458] sm:$0xff]
                %304 = vst [vmem:[%s152 + $0x258] sm:$0xff] %v303
                %v305 = vld [vmem:[%s151 + $0x460] sm:$0xff]
                %306 = vst [vmem:[%s152 + $0x260] sm:$0xff] %v305
                %v307 = vld [vmem:[%s151 + $0x468] sm:$0xff]
                %308 = vst [vmem:[%s152 + $0x268] sm:$0xff] %v307
                %v309 = vld [vmem:[%s151 + $0x470] sm:$0xff]
                %310 = vst [vmem:[%s152 + $0x270] sm:$0xff] %v309
                %v311 = vld [vmem:[%s151 + $0x478] sm:$0xff]
                %312 = vst [vmem:[%s152 + $0x278] sm:$0xff] %v311
                %v313 = vld [vmem:[%s151 + $0x480] sm:$0xff]
                %314 = vst [vmem:[%s152 + $0x280] sm:$0xff] %v313
                %v315 = vld [vmem:[%s151 + $0x488] sm:$0xff]
                %316 = vst [vmem:[%s152 + $0x288] sm:$0xff] %v315
                %v317 = vld [vmem:[%s151 + $0x490] sm:$0xff]
                %318 = vst [vmem:[%s152 + $0x290] sm:$0xff] %v317
                %v319 = vld [vmem:[%s151 + $0x498] sm:$0xff]
                %320 = vst [vmem:[%s152 + $0x298] sm:$0xff] %v319
                %v321 = vld [vmem:[%s151 + $0x4a0] sm:$0xff]
                %322 = vst [vmem:[%s152 + $0x2a0] sm:$0xff] %v321
                %v323 = vld [vmem:[%s151 + $0x4a8] sm:$0xff]
                %324 = vst [vmem:[%s152 + $0x2a8] sm:$0xff] %v323
                %v325 = vld [vmem:[%s151 + $0x4b0] sm:$0xff]
                %326 = vst [vmem:[%s152 + $0x2b0] sm:$0xff] %v325
                %v327 = vld [vmem:[%s151 + $0x4b8] sm:$0xff]
                %328 = vst [vmem:[%s152 + $0x2b8] sm:$0xff] %v327
                %v329 = vld [vmem:[%s151 + $0x4c0] sm:$0xff]
                %330 = vst [vmem:[%s152 + $0x2c0] sm:$0xff] %v329
                %v331 = vld [vmem:[%s151 + $0x4c8] sm:$0xff]
                %332 = vst [vmem:[%s152 + $0x2c8] sm:$0xff] %v331
                %v333 = vld [vmem:[%s151 + $0x4d0] sm:$0xff]
                %334 = vst [vmem:[%s152 + $0x2d0] sm:$0xff] %v333
                %v335 = vld [vmem:[%s151 + $0x4d8] sm:$0xff]
                %336 = vst [vmem:[%s152 + $0x2d8] sm:$0xff] %v335
                %v337 = vld [vmem:[%s151 + $0x4e0] sm:$0xff]
                %338 = vst [vmem:[%s152 + $0x2e0] sm:$0xff] %v337
                %v339 = vld [vmem:[%s151 + $0x4e8] sm:$0xff]
                %340 = vst [vmem:[%s152 + $0x2e8] sm:$0xff] %v339
                %v341 = vld [vmem:[%s151 + $0x4f0] sm:$0xff]
                %342 = vst [vmem:[%s152 + $0x2f0] sm:$0xff] %v341
                %v343 = vld [vmem:[%s151 + $0x4f8] sm:$0xff]
                %344 = vst [vmem:[%s152 + $0x2f8] sm:$0xff] %v343
                %v345 = vld [vmem:[%s151 + $0x600] sm:$0xff]
                %346 = vst [vmem:[%s152 + $0x300] sm:$0xff] %v345
                %v347 = vld [vmem:[%s151 + $0x608] sm:$0xff]
                %348 = vst [vmem:[%s152 + $0x308] sm:$0xff] %v347
                %v349 = vld [vmem:[%s151 + $0x610] sm:$0xff]
                %350 = vst [vmem:[%s152 + $0x310] sm:$0xff] %v349
                %v351 = vld [vmem:[%s151 + $0x618] sm:$0xff]
                %352 = vst [vmem:[%s152 + $0x318] sm:$0xff] %v351
                %v353 = vld [vmem:[%s151 + $0x620] sm:$0xff]
                %354 = vst [vmem:[%s152 + $0x320] sm:$0xff] %v353
                %v355 = vld [vmem:[%s151 + $0x628] sm:$0xff]
                %356 = vst [vmem:[%s152 + $0x328] sm:$0xff] %v355
                %v357 = vld [vmem:[%s151 + $0x630] sm:$0xff]
                %358 = vst [vmem:[%s152 + $0x330] sm:$0xff] %v357
                %v359 = vld [vmem:[%s151 + $0x638] sm:$0xff]
                %360 = vst [vmem:[%s152 + $0x338] sm:$0xff] %v359
                %v361 = vld [vmem:[%s151 + $0x640] sm:$0xff]
                %362 = vst [vmem:[%s152 + $0x340] sm:$0xff] %v361
                %v363 = vld [vmem:[%s151 + $0x648] sm:$0xff]
                %364 = vst [vmem:[%s152 + $0x348] sm:$0xff] %v363
                %v365 = vld [vmem:[%s151 + $0x650] sm:$0xff]
                %366 = vst [vmem:[%s152 + $0x350] sm:$0xff] %v365
                %v367 = vld [vmem:[%s151 + $0x658] sm:$0xff]
                %368 = vst [vmem:[%s152 + $0x358] sm:$0xff] %v367
                %v369 = vld [vmem:[%s151 + $0x660] sm:$0xff]
                %370 = vst [vmem:[%s152 + $0x360] sm:$0xff] %v369
                %v371 = vld [vmem:[%s151 + $0x668] sm:$0xff]
                %372 = vst [vmem:[%s152 + $0x368] sm:$0xff] %v371
                %v373 = vld [vmem:[%s151 + $0x670] sm:$0xff]
                %374 = vst [vmem:[%s152 + $0x370] sm:$0xff] %v373
                %v375 = vld [vmem:[%s151 + $0x678] sm:$0xff]
                %376 = vst [vmem:[%s152 + $0x378] sm:$0xff] %v375
                %v377 = vld [vmem:[%s151 + $0x680] sm:$0xff]
                %378 = vst [vmem:[%s152 + $0x380] sm:$0xff] %v377
                %v379 = vld [vmem:[%s151 + $0x688] sm:$0xff]
                %380 = vst [vmem:[%s152 + $0x388] sm:$0xff] %v379
                %v381 = vld [vmem:[%s151 + $0x690] sm:$0xff]
                %382 = vst [vmem:[%s152 + $0x390] sm:$0xff] %v381
                %v383 = vld [vmem:[%s151 + $0x698] sm:$0xff]
                %384 = vst [vmem:[%s152 + $0x398] sm:$0xff] %v383
                %v385 = vld [vmem:[%s151 + $0x6a0] sm:$0xff]
                %386 = vst [vmem:[%s152 + $0x3a0] sm:$0xff] %v385
                %v387 = vld [vmem:[%s151 + $0x6a8] sm:$0xff]
                %388 = vst [vmem:[%s152 + $0x3a8] sm:$0xff] %v387
                %v389 = vld [vmem:[%s151 + $0x6b0] sm:$0xff]
                %390 = vst [vmem:[%s152 + $0x3b0] sm:$0xff] %v389
                %v391 = vld [vmem:[%s151 + $0x6b8] sm:$0xff]
                %392 = vst [vmem:[%s152 + $0x3b8] sm:$0xff] %v391
                %v393 = vld [vmem:[%s151 + $0x6c0] sm:$0xff]
                %394 = vst [vmem:[%s152 + $0x3c0] sm:$0xff] %v393
                %v395 = vld [vmem:[%s151 + $0x6c8] sm:$0xff]
                %396 = vst [vmem:[%s152 + $0x3c8] sm:$0xff] %v395
                %v397 = vld [vmem:[%s151 + $0x6d0] sm:$0xff]
                %398 = vst [vmem:[%s152 + $0x3d0] sm:$0xff] %v397
                %v399 = vld [vmem:[%s151 + $0x6d8] sm:$0xff]
                %400 = vst [vmem:[%s152 + $0x3d8] sm:$0xff] %v399
                %v401 = vld [vmem:[%s151 + $0x6e0] sm:$0xff]
                %402 = vst [vmem:[%s152 + $0x3e0] sm:$0xff] %v401
                %v403 = vld [vmem:[%s151 + $0x6e8] sm:$0xff]
                %404 = vst [vmem:[%s152 + $0x3e8] sm:$0xff] %v403
                %v405 = vld [vmem:[%s151 + $0x6f0] sm:$0xff]
                %406 = vst [vmem:[%s152 + $0x3f0] sm:$0xff] %v405
                %v407 = vld [vmem:[%s151 + $0x6f8] sm:$0xff]
                %408 = vst [vmem:[%s152 + $0x3f8] sm:$0xff] %v407
              $region45: #{cnn_forward.2} parent=39 // loop_footer
                %s150 = sadd.s32 1, %s146
              $region46: #{cnn_forward.2} parent=39 // loop_footer_branch
                %145 = sbr.rel target = $region42
              $region47: #{cnn_forward.2} parent=39 // loop_exit
                _
            $region40: #{cnn_forward.2} parent=31 // pred_fallthru
              _
          $region32: #{cnn_forward.2} parent=27 // pred_fallthru
            _
          %677 = vnop
        $region28: #{cnn_forward.2} parent=23 // pred_fallthru
          _
      $region24: #{cnn_forward.2} parent=5 // pred_fallthru
        _
      %p678 = scmp.le.s32.totalorder 1, %s9
      %p679 = scmp.lt.s32.totalorder %s9, 3
      %p680 = pnand %p678, %p679
      %p681 = pneg %p680
      // Predicated region
      $region63: #{cnn_forward.2} parent=5 // pred_check
        _
      $region64: #{cnn_forward.2} parent=5 // pred_check_branch
        %683 = sbr.rel (%p680) target = $region66
      $region65: #{cnn_forward.2} parent=5 // pred_region
        %s684 = ssub.s32 %s9, 1
        %s685 = sand.u32 %s22, 1
        %s686 = sand.u32 %s22, 1
        %s687 = smul.addr %s686, 1024
        %s688 = scalar_lea.vmem [#allocation2], %s687
        // Predicated region
        $region67: #{cnn_forward.2} parent=65 // pred_check
          %p689 = pneg %p35
        $region68: #{cnn_forward.2} parent=65 // pred_check_branch
          %691 = sbr.rel (%p689) target = $region70
        $region69: #{cnn_forward.2} parent=65 // pred_region
          _
        $region70: #{cnn_forward.2} parent=65 // pred_fallthru
          _
        %s692 = sand.u32 %s22, 1
        %s693 = sand.u32 %s22, 1
        %s694 = smul.addr %s693, 1024
        %s695 = scalar_lea.vmem [#allocation2], %s694
        %p696 = pneg %p35
        %p697 = pneg %p32
        %p698 = pneg %p56
        %p699 = pneg %p53
        %p700 = pneg %p77
        %p701 = pneg %p74
        %p702 = pneg %p103
        %p703 = pneg %p100
        %s704 = smul.u32 32, %s14
        %p705 = scmp.lt.s32.totalorder %s704, 63
        %s706 = scalar_select %p705, %s704, 63
        %s707 = smul.addr %s706, 8
        %s708 = scalar_lea.vmem %s3, %s707
        %s709 = smul.u32 32, %s14
        %s710 = smul.u32 32, %s14
        %p711 = scmp.lt.s32.totalorder %s710, 63
        %s712 = scalar_select %p711, %s710, 63
        %s713 = smul.addr %s712, 8
        %s714 = scalar_lea.vmem %s3, %s713
        %s715 = smul.u32 32, %s14
        %v716 = vld [vmem:[%s688] sm:$0xff]
        %v717 = vld [vmem:[%s688 + $0x8] sm:$0xff]
        %v718 = vld [vmem:[%s688 + $0x10] sm:$0xff]
        %v719 = vld [vmem:[%s688 + $0x18] sm:$0xff]
        %v720 = vld [vmem:[%s688 + $0x20] sm:$0xff]
        %v721 = vld [vmem:[%s688 + $0x28] sm:$0xff]
        %v722 = vld [vmem:[%s688 + $0x30] sm:$0xff]
        %v723 = vld [vmem:[%s688 + $0x38] sm:$0xff]
        %v724 = vld [vmem:[%s688 + $0x40] sm:$0xff]
        %v725 = vld [vmem:[%s688 + $0x48] sm:$0xff]
        %v726 = vld [vmem:[%s688 + $0x50] sm:$0xff]
        %v727 = vld [vmem:[%s688 + $0x58] sm:$0xff]
        %v728 = vld [vmem:[%s688 + $0x60] sm:$0xff]
        %v729 = vld [vmem:[%s688 + $0x68] sm:$0xff]
        %v730 = vld [vmem:[%s688 + $0x70] sm:$0xff]
        %v731 = vld [vmem:[%s688 + $0x78] sm:$0xff]
        %v732 = vld [vmem:[%s688 + $0x80] sm:$0xff]
        %v733 = vld [vmem:[%s688 + $0x88] sm:$0xff]
        %v734 = vld [vmem:[%s688 + $0x90] sm:$0xff]
        %v735 = vld [vmem:[%s688 + $0x98] sm:$0xff]
        %v736 = vld [vmem:[%s688 + $0xa0] sm:$0xff]
        %v737 = vld [vmem:[%s688 + $0xa8] sm:$0xff]
        %v738 = vld [vmem:[%s688 + $0xb0] sm:$0xff]
        %v739 = vld [vmem:[%s688 + $0xb8] sm:$0xff]
        %v740 = vld [vmem:[%s688 + $0xc0] sm:$0xff]
        %v741 = vld [vmem:[%s688 + $0xc8] sm:$0xff]
        %v742 = vld [vmem:[%s688 + $0xd0] sm:$0xff]
        %v743 = vld [vmem:[%s688 + $0xd8] sm:$0xff]
        %v744 = vld [vmem:[%s688 + $0xe0] sm:$0xff]
        %v745 = vld [vmem:[%s688 + $0xe8] sm:$0xff]
        %v746 = vld [vmem:[%s688 + $0xf0] sm:$0xff]
        %v747 = vld [vmem:[%s688 + $0xf8] sm:$0xff]
        %v748 = vld [vmem:[%s688 + $0x100] sm:$0xff]
        %v749 = vld [vmem:[%s688 + $0x108] sm:$0xff]
        %v750 = vld [vmem:[%s688 + $0x110] sm:$0xff]
        %v751 = vld [vmem:[%s688 + $0x118] sm:$0xff]
        %v752 = vld [vmem:[%s688 + $0x120] sm:$0xff]
        %v753 = vld [vmem:[%s688 + $0x128] sm:$0xff]
        %v754 = vld [vmem:[%s688 + $0x130] sm:$0xff]
        %v755 = vld [vmem:[%s688 + $0x138] sm:$0xff]
        %v756 = vld [vmem:[%s688 + $0x140] sm:$0xff]
        %v757 = vld [vmem:[%s688 + $0x148] sm:$0xff]
        %v758 = vld [vmem:[%s688 + $0x150] sm:$0xff]
        %v759 = vld [vmem:[%s688 + $0x158] sm:$0xff]
        %v760 = vld [vmem:[%s688 + $0x160] sm:$0xff]
        %v761 = vld [vmem:[%s688 + $0x168] sm:$0xff]
        %v762 = vld [vmem:[%s688 + $0x170] sm:$0xff]
        %v763 = vld [vmem:[%s688 + $0x178] sm:$0xff]
        %v764 = vld [vmem:[%s688 + $0x180] sm:$0xff]
        %v765 = vld [vmem:[%s688 + $0x188] sm:$0xff]
        %v766 = vld [vmem:[%s688 + $0x190] sm:$0xff]
        %v767 = vld [vmem:[%s688 + $0x198] sm:$0xff]
        %v768 = vld [vmem:[%s688 + $0x1a0] sm:$0xff]
        %v769 = vld [vmem:[%s688 + $0x1a8] sm:$0xff]
        %v770 = vld [vmem:[%s688 + $0x1b0] sm:$0xff]
        %v771 = vld [vmem:[%s688 + $0x1b8] sm:$0xff]
        %v772 = vld [vmem:[%s688 + $0x1c0] sm:$0xff]
        %v773 = vld [vmem:[%s688 + $0x1c8] sm:$0xff]
        %v774 = vld [vmem:[%s688 + $0x1d0] sm:$0xff]
        %v775 = vld [vmem:[%s688 + $0x1d8] sm:$0xff]
        %v776 = vld [vmem:[%s688 + $0x1e0] sm:$0xff]
        %v777 = vld [vmem:[%s688 + $0x1e8] sm:$0xff]
        %v778 = vld [vmem:[%s688 + $0x1f0] sm:$0xff]
        %v779 = vld [vmem:[%s688 + $0x1f8] sm:$0xff]
        %v780 = vld [vmem:[%s688 + $0x200] sm:$0xff]
        %v781 = vld [vmem:[%s688 + $0x208] sm:$0xff]
        %v782 = vld [vmem:[%s688 + $0x210] sm:$0xff]
        %v783 = vld [vmem:[%s688 + $0x218] sm:$0xff]
        %v784 = vld [vmem:[%s688 + $0x220] sm:$0xff]
        %v785 = vld [vmem:[%s688 + $0x228] sm:$0xff]
        %v786 = vld [vmem:[%s688 + $0x230] sm:$0xff]
        %v787 = vld [vmem:[%s688 + $0x238] sm:$0xff]
        %v788 = vld [vmem:[%s688 + $0x240] sm:$0xff]
        %v789 = vld [vmem:[%s688 + $0x248] sm:$0xff]
        %v790 = vld [vmem:[%s688 + $0x250] sm:$0xff]
        %v791 = vld [vmem:[%s688 + $0x258] sm:$0xff]
        %v792 = vld [vmem:[%s688 + $0x260] sm:$0xff]
        %v793 = vld [vmem:[%s688 + $0x268] sm:$0xff]
        %v794 = vld [vmem:[%s688 + $0x270] sm:$0xff]
        %v795 = vld [vmem:[%s688 + $0x278] sm:$0xff]
        %v796 = vld [vmem:[%s688 + $0x280] sm:$0xff]
        %v797 = vld [vmem:[%s688 + $0x288] sm:$0xff]
        %v798 = vld [vmem:[%s688 + $0x290] sm:$0xff]
        %v799 = vld [vmem:[%s688 + $0x298] sm:$0xff]
        %v800 = vld [vmem:[%s688 + $0x2a0] sm:$0xff]
        %v801 = vld [vmem:[%s688 + $0x2a8] sm:$0xff]
        %v802 = vld [vmem:[%s688 + $0x2b0] sm:$0xff]
        %v803 = vld [vmem:[%s688 + $0x2b8] sm:$0xff]
        %v804 = vld [vmem:[%s688 + $0x2c0] sm:$0xff]
        %v805 = vld [vmem:[%s688 + $0x2c8] sm:$0xff]
        %v806 = vld [vmem:[%s688 + $0x2d0] sm:$0xff]
        %v807 = vld [vmem:[%s688 + $0x2d8] sm:$0xff]
        %v808 = vld [vmem:[%s688 + $0x2e0] sm:$0xff]
        %v809 = vld [vmem:[%s688 + $0x2e8] sm:$0xff]
        %v810 = vld [vmem:[%s688 + $0x2f0] sm:$0xff]
        %v811 = vld [vmem:[%s688 + $0x2f8] sm:$0xff]
        %v812 = vld [vmem:[%s688 + $0x300] sm:$0xff]
        %v813 = vld [vmem:[%s688 + $0x308] sm:$0xff]
        %v814 = vld [vmem:[%s688 + $0x310] sm:$0xff]
        %v815 = vld [vmem:[%s688 + $0x318] sm:$0xff]
        %v816 = vld [vmem:[%s688 + $0x320] sm:$0xff]
        %v817 = vld [vmem:[%s688 + $0x328] sm:$0xff]
        %v818 = vld [vmem:[%s688 + $0x330] sm:$0xff]
        %v819 = vld [vmem:[%s688 + $0x338] sm:$0xff]
        %v820 = vld [vmem:[%s688 + $0x340] sm:$0xff]
        %v821 = vld [vmem:[%s688 + $0x348] sm:$0xff]
        %v822 = vld [vmem:[%s688 + $0x350] sm:$0xff]
        %v823 = vld [vmem:[%s688 + $0x358] sm:$0xff]
        %v824 = vld [vmem:[%s688 + $0x360] sm:$0xff]
        %v825 = vld [vmem:[%s688 + $0x368] sm:$0xff]
        %v826 = vld [vmem:[%s688 + $0x370] sm:$0xff]
        %v827 = vld [vmem:[%s688 + $0x378] sm:$0xff]
        %v828 = vld [vmem:[%s688 + $0x380] sm:$0xff]
        %v829 = vld [vmem:[%s688 + $0x388] sm:$0xff]
        %v830 = vld [vmem:[%s688 + $0x390] sm:$0xff]
        %v831 = vld [vmem:[%s688 + $0x398] sm:$0xff]
        %v832 = vld [vmem:[%s688 + $0x3a0] sm:$0xff]
        %v833 = vld [vmem:[%s688 + $0x3a8] sm:$0xff]
        %v834 = vld [vmem:[%s688 + $0x3b0] sm:$0xff]
        %v835 = vld [vmem:[%s688 + $0x3b8] sm:$0xff]
        %v836 = vld [vmem:[%s688 + $0x3c0] sm:$0xff]
        %v837 = vld [vmem:[%s688 + $0x3c8] sm:$0xff]
        %v838 = vld [vmem:[%s688 + $0x3d0] sm:$0xff]
        %v839 = vld [vmem:[%s688 + $0x3d8] sm:$0xff]
        %v840 = vld [vmem:[%s688 + $0x3e0] sm:$0xff]
        %v841 = vld [vmem:[%s688 + $0x3e8] sm:$0xff]
        %v842 = vld [vmem:[%s688 + $0x3f0] sm:$0xff]
        %v843 = vld [vmem:[%s688 + $0x3f8] sm:$0xff]
        %v844 = vld [vmem:[%s1] sm:$0xff]
        %v845 = vld [vmem:[%s1 + $0x8] sm:$0xff]
        %v846 = vld [vmem:[%s1 + $0x10] sm:$0xff]
        %v847 = vld [vmem:[%s1 + $0x18] sm:$0xff]
        %v848 = vld [vmem:[%s1 + $0x20] sm:$0xf]
        %vm849 = vcmask 293888
        %v851 = vsel %vm849, %v716, 0
        %v854 = vsel %vm849, %v717, 0
        %v857 = vsel %vm849, %v718, 0
        %v860 = vsel %vm849, %v719, 0
        %v863 = vsel %vm849, %v720, 0
        %v866 = vsel %vm849, %v721, 0
        %v869 = vsel %vm849, %v722, 0
        %v872 = vsel %vm849, %v723, 0
        %v875 = vsel %vm849, %v724, 0
        %v878 = vsel %vm849, %v725, 0
        %v881 = vsel %vm849, %v726, 0
        %v884 = vsel %vm849, %v727, 0
        %v887 = vsel %vm849, %v728, 0
        %v890 = vsel %vm849, %v729, 0
        %v893 = vsel %vm849, %v730, 0
        %v896 = vsel %vm849, %v731, 0
        %v899 = vsel %vm849, %v732, 0
        %v902 = vsel %vm849, %v733, 0
        %v905 = vsel %vm849, %v734, 0
        %v908 = vsel %vm849, %v735, 0
        %v911 = vsel %vm849, %v736, 0
        %v914 = vsel %vm849, %v737, 0
        %v917 = vsel %vm849, %v738, 0
        %v920 = vsel %vm849, %v739, 0
        %v923 = vsel %vm849, %v740, 0
        %v926 = vsel %vm849, %v741, 0
        %v929 = vsel %vm849, %v742, 0
        %v932 = vsel %vm849, %v743, 0
        %v935 = vsel %vm849, %v744, 0
        %v938 = vsel %vm849, %v745, 0
        %v941 = vsel %vm849, %v746, 0
        %v944 = vsel %vm849, %v747, 0
        %v947 = vsel %vm849, %v748, 0
        %v950 = vsel %vm849, %v749, 0
        %v953 = vsel %vm849, %v750, 0
        %v956 = vsel %vm849, %v751, 0
        %v959 = vsel %vm849, %v752, 0
        %v962 = vsel %vm849, %v753, 0
        %v965 = vsel %vm849, %v754, 0
        %v968 = vsel %vm849, %v755, 0
        %v971 = vsel %vm849, %v756, 0
        %v974 = vsel %vm849, %v757, 0
        %v977 = vsel %vm849, %v758, 0
        %v980 = vsel %vm849, %v759, 0
        %v983 = vsel %vm849, %v760, 0
        %v986 = vsel %vm849, %v761, 0
        %v989 = vsel %vm849, %v762, 0
        %v992 = vsel %vm849, %v763, 0
        %v995 = vsel %vm849, %v764, 0
        %v998 = vsel %vm849, %v765, 0
        %v1001 = vsel %vm849, %v766, 0
        %v1004 = vsel %vm849, %v767, 0
        %v1007 = vsel %vm849, %v768, 0
        %v1010 = vsel %vm849, %v769, 0
        %v1013 = vsel %vm849, %v770, 0
        %v1016 = vsel %vm849, %v771, 0
        %v1019 = vsel %vm849, %v772, 0
        %v1022 = vsel %vm849, %v773, 0
        %v1025 = vsel %vm849, %v774, 0
        %v1028 = vsel %vm849, %v775, 0
        %v1031 = vsel %vm849, %v776, 0
        %v1034 = vsel %vm849, %v777, 0
        %v1037 = vsel %vm849, %v778, 0
        %v1040 = vsel %vm849, %v779, 0
        %v1043 = vsel %vm849, %v780, 0
        %v1046 = vsel %vm849, %v781, 0
        %v1049 = vsel %vm849, %v782, 0
        %v1052 = vsel %vm849, %v783, 0
        %v1055 = vsel %vm849, %v784, 0
        %v1058 = vsel %vm849, %v785, 0
        %v1061 = vsel %vm849, %v786, 0
        %v1064 = vsel %vm849, %v787, 0
        %v1067 = vsel %vm849, %v788, 0
        %v1070 = vsel %vm849, %v789, 0
        %v1073 = vsel %vm849, %v790, 0
        %v1076 = vsel %vm849, %v791, 0
        %v1079 = vsel %vm849, %v792, 0
        %v1082 = vsel %vm849, %v793, 0
        %v1085 = vsel %vm849, %v794, 0
        %v1088 = vsel %vm849, %v795, 0
        %v1091 = vsel %vm849, %v796, 0
        %v1094 = vsel %vm849, %v797, 0
        %v1097 = vsel %vm849, %v798, 0
        %v1100 = vsel %vm849, %v799, 0
        %v1103 = vsel %vm849, %v800, 0
        %v1106 = vsel %vm849, %v801, 0
        %v1109 = vsel %vm849, %v802, 0
        %v1112 = vsel %vm849, %v803, 0
        %v1115 = vsel %vm849, %v804, 0
        %v1118 = vsel %vm849, %v805, 0
        %v1121 = vsel %vm849, %v806, 0
        %v1124 = vsel %vm849, %v807, 0
        %v1127 = vsel %vm849, %v808, 0
        %v1130 = vsel %vm849, %v809, 0
        %v1133 = vsel %vm849, %v810, 0
        %v1136 = vsel %vm849, %v811, 0
        %v1139 = vsel %vm849, %v812, 0
        %v1142 = vsel %vm849, %v813, 0
        %v1145 = vsel %vm849, %v814, 0
        %v1148 = vsel %vm849, %v815, 0
        %v1151 = vsel %vm849, %v816, 0
        %v1154 = vsel %vm849, %v817, 0
        %v1157 = vsel %vm849, %v818, 0
        %v1160 = vsel %vm849, %v819, 0
        %v1163 = vsel %vm849, %v820, 0
        %v1166 = vsel %vm849, %v821, 0
        %v1169 = vsel %vm849, %v822, 0
        %v1172 = vsel %vm849, %v823, 0
        %v1175 = vsel %vm849, %v824, 0
        %v1178 = vsel %vm849, %v825, 0
        %v1181 = vsel %vm849, %v826, 0
        %v1184 = vsel %vm849, %v827, 0
        %v1187 = vsel %vm849, %v828, 0
        %v1190 = vsel %vm849, %v829, 0
        %v1193 = vsel %vm849, %v830, 0
        %v1196 = vsel %vm849, %v831, 0
        %v1199 = vsel %vm849, %v832, 0
        %v1202 = vsel %vm849, %v833, 0
        %v1205 = vsel %vm849, %v834, 0
        %v1208 = vsel %vm849, %v835, 0
        %v1211 = vsel %vm849, %v836, 0
        %v1214 = vsel %vm849, %v837, 0
        %v1217 = vsel %vm849, %v838, 0
        %v1220 = vsel %vm849, %v839, 0
        %v1223 = vsel %vm849, %v840, 0
        %v1226 = vsel %vm849, %v841, 0
        %v1229 = vsel %vm849, %v842, 0
        %v1232 = vsel %vm849, %v843, 0
        %vm1234 = vcmask 1043456
        %v1236 = vsel %vm1234, %v848, 0
        %1238 = vmatprep.subr.mxu0 0.0
        %1239 = vmatpush1.msra.mxu0 %v844
        %1240 = vmatprep.subr.mxu0 0.0
        %1241 = vmatpush1.msra.mxu0 %v845
        %1242 = vmatprep.subr.mxu0 0.0
        %1243 = vmatpush1.msra.mxu0 %v846
        %1244 = vmatprep.subr.mxu0 0.0
        %1245 = vmatpush1.msra.mxu0 %v847
        %1246 = vmatprep.subr.mxu0 0.0
        %1247 = vmatpush1.msra.mxu0 %v1236
        %1248 = vmatprep.subr.mxu0 0.0
        %1249 = vmatpush1.msra.mxu0 0.0
        %1250 = vmatprep.subr.mxu0 0.0
        %1251 = vmatpush1.msra.mxu0 0.0
        %1252 = vmatprep.subr.mxu0 0.0
        %1253 = vmatpush1.msra.mxu0 0.0
        %1254 = vmatprep.subr.mxu0 0.0
        %1255 = vmatpush1.msra.mxu0 0.0
        %1256 = vmatprep.subr.mxu0 0.0
        %1257 = vmatpush1.msra.mxu0 0.0
        %1258 = vmatprep.subr.mxu0 0.0
        %1259 = vmatpush1.msra.mxu0 0.0
        %1260 = vmatprep.subr.mxu0 0.0
        %1261 = vmatpush1.msra.mxu0 0.0
        %1262 = vmatprep.subr.mxu0 0.0
        %1263 = vmatpush1.msra.mxu0 0.0
        %1264 = vmatprep.subr.mxu0 0.0
        %1265 = vmatpush1.msra.mxu0 0.0
        %1266 = vmatprep.subr.mxu0 0.0
        %1267 = vmatpush1.msra.mxu0 0.0
        %1268 = vmatprep.subr.mxu0 0.0
        %1269 = vmatpush1.msra.mxu0 0.0
        %1270 = vmatprep.subr.mxu0 0.0
        %1271 = vmatpush1.msra.mxu0 0.0
        %1272 = vmatprep.subr.mxu0 0.0
        %1273 = vmatpush1.msra.mxu0 0.0
        %1274 = vmatprep.subr.mxu0 0.0
        %1275 = vmatpush1.msra.mxu0 0.0
        %1276 = vmatprep.subr.mxu0 0.0
        %1277 = vmatpush1.msra.mxu0 0.0
        %1278 = vmatprep.subr.mxu0 0.0
        %1279 = vmatpush1.msra.mxu0 0.0
        %1280 = vmatprep.subr.mxu0 0.0
        %1281 = vmatpush1.msra.mxu0 0.0
        %1282 = vmatprep.subr.mxu0 0.0
        %1283 = vmatpush1.msra.mxu0 0.0
        %1284 = vmatprep.subr.mxu0 0.0
        %1285 = vmatpush1.msra.mxu0 0.0
        %1286 = vmatprep.subr.mxu0 0.0
        %1287 = vmatpush1.msra.mxu0 0.0
        %1288 = vmatprep.subr.mxu0 0.0
        %1289 = vmatpush1.msra.mxu0 0.0
        %1290 = vmatprep.subr.mxu0 0.0
        %1291 = vmatpush1.msra.mxu0 0.0
        %1292 = vmatprep.subr.mxu0 0.0
        %1293 = vmatpush1.msra.mxu0 0.0
        %1294 = vmatprep.subr.mxu0 0.0
        %1295 = vmatpush1.msra.mxu0 0.0
        %1296 = vmatprep.subr.mxu0 0.0
        %1297 = vmatpush1.msra.mxu0 0.0
        %1298 = vmatprep.subr.mxu0 0.0
        %1299 = vmatpush1.msra.mxu0 0.0
        %1300 = vmatprep.subr.mxu0 0.0
        %1301 = vmatpush1.msra.mxu0 0.0
        %1302 = vmatprep.mubr.f32.mxu0 0.0
        %1303 = vmatmul.mubr.f32.gmra.mrb[0].mxu0 %v851
        %v1304 = vpop.f32.mrb[0].mxu0
        %v1305 = vadd.f32 0.0, %v1304
        %v1306 = vpop.f32.mrb[0].mxu0
        %1307 = vmatprep.mubr.f32.mxu0 0.0
        %1308 = vmatmul.mubr.f32.gmra.mrb[0].mxu0 %v854
        %v1309 = vpop.f32.mrb[0].mxu0
        %v1310 = vadd.f32 0.0, %v1309
        %v1311 = vpop.f32.mrb[0].mxu0
        %1312 = vmatprep.mubr.f32.mxu0 0.0
        %1313 = vmatmul.mubr.f32.gmra.mrb[0].mxu0 %v857
        %v1314 = vpop.f32.mrb[0].mxu0
        %v1315 = vadd.f32 0.0, %v1314
        %v1316 = vpop.f32.mrb[0].mxu0
        %1317 = vmatprep.mubr.f32.mxu0 0.0
        %1318 = vmatmul.mubr.f32.gmra.mrb[0].mxu0 %v860
        %v1319 = vpop.f32.mrb[0].mxu0
        %v1320 = vadd.f32 0.0, %v1319
        %v1321 = vpop.f32.mrb[0].mxu0
        %1322 = vmatprep.mubr.f32.mxu0 0.0
        %1323 = vmatmul.mubr.f32.gmra.mrb[0].mxu0 %v863
        %v1324 = vpop.f32.mrb[0].mxu0
        %v1325 = vadd.f32 0.0, %v1324
        %v1326 = vpop.f32.mrb[0].mxu0
        %1327 = vmatprep.mubr.f32.mxu0 0.0
        %1328 = vmatmul.mubr.f32.gmra.mrb[0].mxu0 %v866
        %v1329 = vpop.f32.mrb[0].mxu0
        %v1330 = vadd.f32 0.0, %v1329
        %v1331 = vpop.f32.mrb[0].mxu0
        %1332 = vmatprep.mubr.f32.mxu0 0.0
        %1333 = vmatmul.mubr.f32.gmra.mrb[0].mxu0 %v869
        %v1334 = vpop.f32.mrb[0].mxu0
        %v1335 = vadd.f32 0.0, %v1334
        %v1336 = vpop.f32.mrb[0].mxu0
        %1337 = vmatprep.mubr.f32.mxu0 0.0
        %1338 = vmatmul.mubr.f32.gmra.mrb[0].mxu0 %v872
        %v1339 = vpop.f32.mrb[0].mxu0
        %v1340 = vadd.f32 0.0, %v1339
        %v1341 = vpop.f32.mrb[0].mxu0
        %1342 = vmatprep.mubr.f32.mxu0 0.0
        %1343 = vmatmul.mubr.f32.gmra.mrb[0].mxu0 %v875
        %v1344 = vpop.f32.mrb[0].mxu0
        %v1345 = vadd.f32 0.0, %v1344
        %v1346 = vpop.f32.mrb[0].mxu0
        %1347 = vmatprep.mubr.f32.mxu0 0.0
        %1348 = vmatmul.mubr.f32.gmra.mrb[0].mxu0 %v878
        %v1349 = vpop.f32.mrb[0].mxu0
        %v1350 = vadd.f32 0.0, %v1349
        %v1351 = vpop.f32.mrb[0].mxu0
        %1352 = vmatprep.mubr.f32.mxu0 0.0
        %1353 = vmatmul.mubr.f32.gmra.mrb[0].mxu0 %v881
        %v1354 = vpop.f32.mrb[0].mxu0
        %v1355 = vadd.f32 0.0, %v1354
        %v1356 = vpop.f32.mrb[0].mxu0
        %1357 = vmatprep.mubr.f32.mxu0 0.0
        %1358 = vmatmul.mubr.f32.gmra.mrb[0].mxu0 %v884
        %v1359 = vpop.f32.mrb[0].mxu0
        %v1360 = vadd.f32 0.0, %v1359
        %v1361 = vpop.f32.mrb[0].mxu0
        %1362 = vmatprep.mubr.f32.mxu0 0.0
        %1363 = vmatmul.mubr.f32.gmra.mrb[0].mxu0 %v887
        %v1364 = vpop.f32.mrb[0].mxu0
        %v1365 = vadd.f32 0.0, %v1364
        %v1366 = vpop.f32.mrb[0].mxu0
        %1367 = vmatprep.mubr.f32.mxu0 0.0
        %1368 = vmatmul.mubr.f32.gmra.mrb[0].mxu0 %v890
        %v1369 = vpop.f32.mrb[0].mxu0
        %v1370 = vadd.f32 0.0, %v1369
        %v1371 = vpop.f32.mrb[0].mxu0
        %1372 = vmatprep.mubr.f32.mxu0 0.0
        %1373 = vmatmul.mubr.f32.gmra.mrb[0].mxu0 %v893
        %v1374 = vpop.f32.mrb[0].mxu0
        %v1375 = vadd.f32 0.0, %v1374
        %v1376 = vpop.f32.mrb[0].mxu0
        %1377 = vmatprep.mubr.f32.mxu0 0.0
        %1378 = vmatmul.mubr.f32.gmra.mrb[0].mxu0 %v896
        %v1379 = vpop.f32.mrb[0].mxu0
        %v1380 = vadd.f32 0.0, %v1379
        %v1381 = vpop.f32.mrb[0].mxu0
        %1382 = vmatprep.mubr.f32.mxu0 0.0
        %1383 = vmatmul.mubr.f32.gmra.mrb[0].mxu0 %v899
        %v1384 = vpop.f32.mrb[0].mxu0
        %v1385 = vadd.f32 0.0, %v1384
        %v1386 = vpop.f32.mrb[0].mxu0
        %1387 = vmatprep.mubr.f32.mxu0 0.0
        %1388 = vmatmul.mubr.f32.gmra.mrb[0].mxu0 %v902
        %v1389 = vpop.f32.mrb[0].mxu0
        %v1390 = vadd.f32 0.0, %v1389
        %v1391 = vpop.f32.mrb[0].mxu0
        %1392 = vmatprep.mubr.f32.mxu0 0.0
        %1393 = vmatmul.mubr.f32.gmra.mrb[0].mxu0 %v905
        %v1394 = vpop.f32.mrb[0].mxu0
        %v1395 = vadd.f32 0.0, %v1394
        %v1396 = vpop.f32.mrb[0].mxu0
        %1397 = vmatprep.mubr.f32.mxu0 0.0
        %1398 = vmatmul.mubr.f32.gmra.mrb[0].mxu0 %v908
        %v1399 = vpop.f32.mrb[0].mxu0
        %v1400 = vadd.f32 0.0, %v1399
        %v1401 = vpop.f32.mrb[0].mxu0
        %1402 = vmatprep.mubr.f32.mxu0 0.0
        %1403 = vmatmul.mubr.f32.gmra.mrb[0].mxu0 %v911
        %v1404 = vpop.f32.mrb[0].mxu0
        %v1405 = vadd.f32 0.0, %v1404
        %v1406 = vpop.f32.mrb[0].mxu0
        %1407 = vmatprep.mubr.f32.mxu0 0.0
        %1408 = vmatmul.mubr.f32.gmra.mrb[0].mxu0 %v914
        %v1409 = vpop.f32.mrb[0].mxu0
        %v1410 = vadd.f32 0.0, %v1409
        %v1411 = vpop.f32.mrb[0].mxu0
        %1412 = vmatprep.mubr.f32.mxu0 0.0
        %1413 = vmatmul.mubr.f32.gmra.mrb[0].mxu0 %v917
        %v1414 = vpop.f32.mrb[0].mxu0
        %v1415 = vadd.f32 0.0, %v1414
        %v1416 = vpop.f32.mrb[0].mxu0
        %1417 = vmatprep.mubr.f32.mxu0 0.0
        %1418 = vmatmul.mubr.f32.gmra.mrb[0].mxu0 %v920
        %v1419 = vpop.f32.mrb[0].mxu0
        %v1420 = vadd.f32 0.0, %v1419
        %v1421 = vpop.f32.mrb[0].mxu0
        %1422 = vmatprep.mubr.f32.mxu0 0.0
        %1423 = vmatmul.mubr.f32.gmra.mrb[0].mxu0 %v923
        %v1424 = vpop.f32.mrb[0].mxu0
        %v1425 = vadd.f32 0.0, %v1424
        %v1426 = vpop.f32.mrb[0].mxu0
        %1427 = vmatprep.mubr.f32.mxu0 0.0
        %1428 = vmatmul.mubr.f32.gmra.mrb[0].mxu0 %v926
        %v1429 = vpop.f32.mrb[0].mxu0
        %v1430 = vadd.f32 0.0, %v1429
        %v1431 = vpop.f32.mrb[0].mxu0
        %1432 = vmatprep.mubr.f32.mxu0 0.0
        %1433 = vmatmul.mubr.f32.gmra.mrb[0].mxu0 %v929
        %v1434 = vpop.f32.mrb[0].mxu0
        %v1435 = vadd.f32 0.0, %v1434
        %v1436 = vpop.f32.mrb[0].mxu0
        %1437 = vmatprep.mubr.f32.mxu0 0.0
        %1438 = vmatmul.mubr.f32.gmra.mrb[0].mxu0 %v932
        %v1439 = vpop.f32.mrb[0].mxu0
        %v1440 = vadd.f32 0.0, %v1439
        %v1441 = vpop.f32.mrb[0].mxu0
        %1442 = vmatprep.mubr.f32.mxu0 0.0
        %1443 = vmatmul.mubr.f32.gmra.mrb[0].mxu0 %v935
        %v1444 = vpop.f32.mrb[0].mxu0
        %v1445 = vadd.f32 0.0, %v1444
        %v1446 = vpop.f32.mrb[0].mxu0
        %1447 = vmatprep.mubr.f32.mxu0 0.0
        %1448 = vmatmul.mubr.f32.gmra.mrb[0].mxu0 %v938
        %v1449 = vpop.f32.mrb[0].mxu0
        %v1450 = vadd.f32 0.0, %v1449
        %v1451 = vpop.f32.mrb[0].mxu0
        %1452 = vmatprep.mubr.f32.mxu0 0.0
        %1453 = vmatmul.mubr.f32.gmra.mrb[0].mxu0 %v941
        %v1454 = vpop.f32.mrb[0].mxu0
        %v1455 = vadd.f32 0.0, %v1454
        %v1456 = vpop.f32.mrb[0].mxu0
        %1457 = vmatprep.mubr.f32.mxu0 0.0
        %1458 = vmatmul.mubr.f32.gmra.mrb[0].mxu0 %v944
        %v1459 = vpop.f32.mrb[0].mxu0
        %v1460 = vadd.f32 0.0, %v1459
        %v1461 = vpop.f32.mrb[0].mxu0
        %1462 = vmatprep.mubr.f32.mxu0 0.0
        %1463 = vmatmul.mubr.f32.gmra.mrb[0].mxu0 %v947
        %v1464 = vpop.f32.mrb[0].mxu0
        %v1465 = vadd.f32 0.0, %v1464
        %v1466 = vpop.f32.mrb[0].mxu0
        %1467 = vmatprep.mubr.f32.mxu0 0.0
        %1468 = vmatmul.mubr.f32.gmra.mrb[0].mxu0 %v950
        %v1469 = vpop.f32.mrb[0].mxu0
        %v1470 = vadd.f32 0.0, %v1469
        %v1471 = vpop.f32.mrb[0].mxu0
        %1472 = vmatprep.mubr.f32.mxu0 0.0
        %1473 = vmatmul.mubr.f32.gmra.mrb[0].mxu0 %v953
        %v1474 = vpop.f32.mrb[0].mxu0
        %v1475 = vadd.f32 0.0, %v1474
        %v1476 = vpop.f32.mrb[0].mxu0
        %1477 = vmatprep.mubr.f32.mxu0 0.0
        %1478 = vmatmul.mubr.f32.gmra.mrb[0].mxu0 %v956
        %v1479 = vpop.f32.mrb[0].mxu0
        %v1480 = vadd.f32 0.0, %v1479
        %v1481 = vpop.f32.mrb[0].mxu0
        %1482 = vmatprep.mubr.f32.mxu0 0.0
        %1483 = vmatmul.mubr.f32.gmra.mrb[0].mxu0 %v959
        %v1484 = vpop.f32.mrb[0].mxu0
        %v1485 = vadd.f32 0.0, %v1484
        %v1486 = vpop.f32.mrb[0].mxu0
        %1487 = vmatprep.mubr.f32.mxu0 0.0
        %1488 = vmatmul.mubr.f32.gmra.mrb[0].mxu0 %v962
        %v1489 = vpop.f32.mrb[0].mxu0
        %v1490 = vadd.f32 0.0, %v1489
        %v1491 = vpop.f32.mrb[0].mxu0
        %1492 = vmatprep.mubr.f32.mxu0 0.0
        %1493 = vmatmul.mubr.f32.gmra.mrb[0].mxu0 %v965
        %v1494 = vpop.f32.mrb[0].mxu0
        %v1495 = vadd.f32 0.0, %v1494
        %v1496 = vpop.f32.mrb[0].mxu0
        %1497 = vmatprep.mubr.f32.mxu0 0.0
        %1498 = vmatmul.mubr.f32.gmra.mrb[0].mxu0 %v968
        %v1499 = vpop.f32.mrb[0].mxu0
        %v1500 = vadd.f32 0.0, %v1499
        %v1501 = vpop.f32.mrb[0].mxu0
        %1502 = vmatprep.mubr.f32.mxu0 0.0
        %1503 = vmatmul.mubr.f32.gmra.mrb[0].mxu0 %v971
        %v1504 = vpop.f32.mrb[0].mxu0
        %v1505 = vadd.f32 0.0, %v1504
        %v1506 = vpop.f32.mrb[0].mxu0
        %1507 = vmatprep.mubr.f32.mxu0 0.0
        %1508 = vmatmul.mubr.f32.gmra.mrb[0].mxu0 %v974
        %v1509 = vpop.f32.mrb[0].mxu0
        %v1510 = vadd.f32 0.0, %v1509
        %v1511 = vpop.f32.mrb[0].mxu0
        %1512 = vmatprep.mubr.f32.mxu0 0.0
        %1513 = vmatmul.mubr.f32.gmra.mrb[0].mxu0 %v977
        %v1514 = vpop.f32.mrb[0].mxu0
        %v1515 = vadd.f32 0.0, %v1514
        %v1516 = vpop.f32.mrb[0].mxu0
        %1517 = vmatprep.mubr.f32.mxu0 0.0
        %1518 = vmatmul.mubr.f32.gmra.mrb[0].mxu0 %v980
        %v1519 = vpop.f32.mrb[0].mxu0
        %v1520 = vadd.f32 0.0, %v1519
        %v1521 = vpop.f32.mrb[0].mxu0
        %1522 = vmatprep.mubr.f32.mxu0 0.0
        %1523 = vmatmul.mubr.f32.gmra.mrb[0].mxu0 %v983
        %v1524 = vpop.f32.mrb[0].mxu0
        %v1525 = vadd.f32 0.0, %v1524
        %v1526 = vpop.f32.mrb[0].mxu0
        %1527 = vmatprep.mubr.f32.mxu0 0.0
        %1528 = vmatmul.mubr.f32.gmra.mrb[0].mxu0 %v986
        %v1529 = vpop.f32.mrb[0].mxu0
        %v1530 = vadd.f32 0.0, %v1529
        %v1531 = vpop.f32.mrb[0].mxu0
        %1532 = vmatprep.mubr.f32.mxu0 0.0
        %1533 = vmatmul.mubr.f32.gmra.mrb[0].mxu0 %v989
        %v1534 = vpop.f32.mrb[0].mxu0
        %v1535 = vadd.f32 0.0, %v1534
        %v1536 = vpop.f32.mrb[0].mxu0
        %1537 = vmatprep.mubr.f32.mxu0 0.0
        %1538 = vmatmul.mubr.f32.gmra.mrb[0].mxu0 %v992
        %v1539 = vpop.f32.mrb[0].mxu0
        %v1540 = vadd.f32 0.0, %v1539
        %v1541 = vpop.f32.mrb[0].mxu0
        %1542 = vmatprep.mubr.f32.mxu0 0.0
        %1543 = vmatmul.mubr.f32.gmra.mrb[0].mxu0 %v995
        %v1544 = vpop.f32.mrb[0].mxu0
        %v1545 = vadd.f32 0.0, %v1544
        %v1546 = vpop.f32.mrb[0].mxu0
        %1547 = vmatprep.mubr.f32.mxu0 0.0
        %1548 = vmatmul.mubr.f32.gmra.mrb[0].mxu0 %v998
        %v1549 = vpop.f32.mrb[0].mxu0
        %v1550 = vadd.f32 0.0, %v1549
        %v1551 = vpop.f32.mrb[0].mxu0
        %1552 = vmatprep.mubr.f32.mxu0 0.0
        %1553 = vmatmul.mubr.f32.gmra.mrb[0].mxu0 %v1001
        %v1554 = vpop.f32.mrb[0].mxu0
        %v1555 = vadd.f32 0.0, %v1554
        %v1556 = vpop.f32.mrb[0].mxu0
        %1557 = vmatprep.mubr.f32.mxu0 0.0
        %1558 = vmatmul.mubr.f32.gmra.mrb[0].mxu0 %v1004
        %v1559 = vpop.f32.mrb[0].mxu0
        %v1560 = vadd.f32 0.0, %v1559
        %v1561 = vpop.f32.mrb[0].mxu0
        %1562 = vmatprep.mubr.f32.mxu0 0.0
        %1563 = vmatmul.mubr.f32.gmra.mrb[0].mxu0 %v1007
        %v1564 = vpop.f32.mrb[0].mxu0
        %v1565 = vadd.f32 0.0, %v1564
        %v1566 = vpop.f32.mrb[0].mxu0
        %1567 = vmatprep.mubr.f32.mxu0 0.0
        %1568 = vmatmul.mubr.f32.gmra.mrb[0].mxu0 %v1010
        %v1569 = vpop.f32.mrb[0].mxu0
        %v1570 = vadd.f32 0.0, %v1569
        %v1571 = vpop.f32.mrb[0].mxu0
        %1572 = vmatprep.mubr.f32.mxu0 0.0
        %1573 = vmatmul.mubr.f32.gmra.mrb[0].mxu0 %v1013
        %v1574 = vpop.f32.mrb[0].mxu0
        %v1575 = vadd.f32 0.0, %v1574
        %v1576 = vpop.f32.mrb[0].mxu0
        %1577 = vmatprep.mubr.f32.mxu0 0.0
        %1578 = vmatmul.mubr.f32.gmra.mrb[0].mxu0 %v1016
        %v1579 = vpop.f32.mrb[0].mxu0
        %v1580 = vadd.f32 0.0, %v1579
        %v1581 = vpop.f32.mrb[0].mxu0
        %1582 = vmatprep.mubr.f32.mxu0 0.0
        %1583 = vmatmul.mubr.f32.gmra.mrb[0].mxu0 %v1019
        %v1584 = vpop.f32.mrb[0].mxu0
        %v1585 = vadd.f32 0.0, %v1584
        %v1586 = vpop.f32.mrb[0].mxu0
        %1587 = vmatprep.mubr.f32.mxu0 0.0
        %1588 = vmatmul.mubr.f32.gmra.mrb[0].mxu0 %v1022
        %v1589 = vpop.f32.mrb[0].mxu0
        %v1590 = vadd.f32 0.0, %v1589
        %v1591 = vpop.f32.mrb[0].mxu0
        %1592 = vmatprep.mubr.f32.mxu0 0.0
        %1593 = vmatmul.mubr.f32.gmra.mrb[0].mxu0 %v1025
        %v1594 = vpop.f32.mrb[0].mxu0
        %v1595 = vadd.f32 0.0, %v1594
        %v1596 = vpop.f32.mrb[0].mxu0
        %1597 = vmatprep.mubr.f32.mxu0 0.0
        %1598 = vmatmul.mubr.f32.gmra.mrb[0].mxu0 %v1028
        %v1599 = vpop.f32.mrb[0].mxu0
        %v1600 = vadd.f32 0.0, %v1599
        %v1601 = vpop.f32.mrb[0].mxu0
        %1602 = vmatprep.mubr.f32.mxu0 0.0
        %1603 = vmatmul.mubr.f32.gmra.mrb[0].mxu0 %v1031
        %v1604 = vpop.f32.mrb[0].mxu0
        %v1605 = vadd.f32 0.0, %v1604
        %v1606 = vpop.f32.mrb[0].mxu0
        %1607 = vmatprep.mubr.f32.mxu0 0.0
        %1608 = vmatmul.mubr.f32.gmra.mrb[0].mxu0 %v1034
        %v1609 = vpop.f32.mrb[0].mxu0
        %v1610 = vadd.f32 0.0, %v1609
        %v1611 = vpop.f32.mrb[0].mxu0
        %1612 = vmatprep.mubr.f32.mxu0 0.0
        %1613 = vmatmul.mubr.f32.gmra.mrb[0].mxu0 %v1037
        %v1614 = vpop.f32.mrb[0].mxu0
        %v1615 = vadd.f32 0.0, %v1614
        %v1616 = vpop.f32.mrb[0].mxu0
        %1617 = vmatprep.mubr.f32.mxu0 0.0
        %1618 = vmatmul.mubr.f32.gmra.mrb[0].mxu0 %v1040
        %v1619 = vpop.f32.mrb[0].mxu0
        %v1620 = vadd.f32 0.0, %v1619
        %v1621 = vpop.f32.mrb[0].mxu0
        %1622 = vmatprep.mubr.f32.mxu0 0.0
        %1623 = vmatmul.mubr.f32.gmra.mrb[0].mxu0 %v1043
        %v1624 = vpop.f32.mrb[0].mxu0
        %v1625 = vadd.f32 0.0, %v1624
        %v1626 = vpop.f32.mrb[0].mxu0
        %1627 = vmatprep.mubr.f32.mxu0 0.0
        %1628 = vmatmul.mubr.f32.gmra.mrb[0].mxu0 %v1046
        %v1629 = vpop.f32.mrb[0].mxu0
        %v1630 = vadd.f32 0.0, %v1629
        %v1631 = vpop.f32.mrb[0].mxu0
        %1632 = vmatprep.mubr.f32.mxu0 0.0
        %1633 = vmatmul.mubr.f32.gmra.mrb[0].mxu0 %v1049
        %v1634 = vpop.f32.mrb[0].mxu0
        %v1635 = vadd.f32 0.0, %v1634
        %v1636 = vpop.f32.mrb[0].mxu0
        %1637 = vmatprep.mubr.f32.mxu0 0.0
        %1638 = vmatmul.mubr.f32.gmra.mrb[0].mxu0 %v1052
        %v1639 = vpop.f32.mrb[0].mxu0
        %v1640 = vadd.f32 0.0, %v1639
        %v1641 = vpop.f32.mrb[0].mxu0
        %1642 = vmatprep.mubr.f32.mxu0 0.0
        %1643 = vmatmul.mubr.f32.gmra.mrb[0].mxu0 %v1055
        %v1644 = vpop.f32.mrb[0].mxu0
        %v1645 = vadd.f32 0.0, %v1644
        %v1646 = vpop.f32.mrb[0].mxu0
        %1647 = vmatprep.mubr.f32.mxu0 0.0
        %1648 = vmatmul.mubr.f32.gmra.mrb[0].mxu0 %v1058
        %v1649 = vpop.f32.mrb[0].mxu0
        %v1650 = vadd.f32 0.0, %v1649
        %v1651 = vpop.f32.mrb[0].mxu0
        %1652 = vmatprep.mubr.f32.mxu0 0.0
        %1653 = vmatmul.mubr.f32.gmra.mrb[0].mxu0 %v1061
        %v1654 = vpop.f32.mrb[0].mxu0
        %v1655 = vadd.f32 0.0, %v1654
        %v1656 = vpop.f32.mrb[0].mxu0
        %1657 = vmatprep.mubr.f32.mxu0 0.0
        %1658 = vmatmul.mubr.f32.gmra.mrb[0].mxu0 %v1064
        %v1659 = vpop.f32.mrb[0].mxu0
        %v1660 = vadd.f32 0.0, %v1659
        %v1661 = vpop.f32.mrb[0].mxu0
        %1662 = vmatprep.mubr.f32.mxu0 0.0
        %1663 = vmatmul.mubr.f32.gmra.mrb[0].mxu0 %v1067
        %v1664 = vpop.f32.mrb[0].mxu0
        %v1665 = vadd.f32 0.0, %v1664
        %v1666 = vpop.f32.mrb[0].mxu0
        %1667 = vmatprep.mubr.f32.mxu0 0.0
        %1668 = vmatmul.mubr.f32.gmra.mrb[0].mxu0 %v1070
        %v1669 = vpop.f32.mrb[0].mxu0
        %v1670 = vadd.f32 0.0, %v1669
        %v1671 = vpop.f32.mrb[0].mxu0
        %1672 = vmatprep.mubr.f32.mxu0 0.0
        %1673 = vmatmul.mubr.f32.gmra.mrb[0].mxu0 %v1073
        %v1674 = vpop.f32.mrb[0].mxu0
        %v1675 = vadd.f32 0.0, %v1674
        %v1676 = vpop.f32.mrb[0].mxu0
        %1677 = vmatprep.mubr.f32.mxu0 0.0
        %1678 = vmatmul.mubr.f32.gmra.mrb[0].mxu0 %v1076
        %v1679 = vpop.f32.mrb[0].mxu0
        %v1680 = vadd.f32 0.0, %v1679
        %v1681 = vpop.f32.mrb[0].mxu0
        %1682 = vmatprep.mubr.f32.mxu0 0.0
        %1683 = vmatmul.mubr.f32.gmra.mrb[0].mxu0 %v1079
        %v1684 = vpop.f32.mrb[0].mxu0
        %v1685 = vadd.f32 0.0, %v1684
        %v1686 = vpop.f32.mrb[0].mxu0
        %1687 = vmatprep.mubr.f32.mxu0 0.0
        %1688 = vmatmul.mubr.f32.gmra.mrb[0].mxu0 %v1082
        %v1689 = vpop.f32.mrb[0].mxu0
        %v1690 = vadd.f32 0.0, %v1689
        %v1691 = vpop.f32.mrb[0].mxu0
        %1692 = vmatprep.mubr.f32.mxu0 0.0
        %1693 = vmatmul.mubr.f32.gmra.mrb[0].mxu0 %v1085
        %v1694 = vpop.f32.mrb[0].mxu0
        %v1695 = vadd.f32 0.0, %v1694
        %v1696 = vpop.f32.mrb[0].mxu0
        %1697 = vmatprep.mubr.f32.mxu0 0.0
        %1698 = vmatmul.mubr.f32.gmra.mrb[0].mxu0 %v1088
        %v1699 = vpop.f32.mrb[0].mxu0
        %v1700 = vadd.f32 0.0, %v1699
        %v1701 = vpop.f32.mrb[0].mxu0
        %1702 = vmatprep.mubr.f32.mxu0 0.0
        %1703 = vmatmul.mubr.f32.gmra.mrb[0].mxu0 %v1091
        %v1704 = vpop.f32.mrb[0].mxu0
        %v1705 = vadd.f32 0.0, %v1704
        %v1706 = vpop.f32.mrb[0].mxu0
        %1707 = vmatprep.mubr.f32.mxu0 0.0
        %1708 = vmatmul.mubr.f32.gmra.mrb[0].mxu0 %v1094
        %v1709 = vpop.f32.mrb[0].mxu0
        %v1710 = vadd.f32 0.0, %v1709
        %v1711 = vpop.f32.mrb[0].mxu0
        %1712 = vmatprep.mubr.f32.mxu0 0.0
        %1713 = vmatmul.mubr.f32.gmra.mrb[0].mxu0 %v1097
        %v1714 = vpop.f32.mrb[0].mxu0
        %v1715 = vadd.f32 0.0, %v1714
        %v1716 = vpop.f32.mrb[0].mxu0
        %1717 = vmatprep.mubr.f32.mxu0 0.0
        %1718 = vmatmul.mubr.f32.gmra.mrb[0].mxu0 %v1100
        %v1719 = vpop.f32.mrb[0].mxu0
        %v1720 = vadd.f32 0.0, %v1719
        %v1721 = vpop.f32.mrb[0].mxu0
        %1722 = vmatprep.mubr.f32.mxu0 0.0
        %1723 = vmatmul.mubr.f32.gmra.mrb[0].mxu0 %v1103
        %v1724 = vpop.f32.mrb[0].mxu0
        %v1725 = vadd.f32 0.0, %v1724
        %v1726 = vpop.f32.mrb[0].mxu0
        %1727 = vmatprep.mubr.f32.mxu0 0.0
        %1728 = vmatmul.mubr.f32.gmra.mrb[0].mxu0 %v1106
        %v1729 = vpop.f32.mrb[0].mxu0
        %v1730 = vadd.f32 0.0, %v1729
        %v1731 = vpop.f32.mrb[0].mxu0
        %1732 = vmatprep.mubr.f32.mxu0 0.0
        %1733 = vmatmul.mubr.f32.gmra.mrb[0].mxu0 %v1109
        %v1734 = vpop.f32.mrb[0].mxu0
        %v1735 = vadd.f32 0.0, %v1734
        %v1736 = vpop.f32.mrb[0].mxu0
        %1737 = vmatprep.mubr.f32.mxu0 0.0
        %1738 = vmatmul.mubr.f32.gmra.mrb[0].mxu0 %v1112
        %v1739 = vpop.f32.mrb[0].mxu0
        %v1740 = vadd.f32 0.0, %v1739
        %v1741 = vpop.f32.mrb[0].mxu0
        %1742 = vmatprep.mubr.f32.mxu0 0.0
        %1743 = vmatmul.mubr.f32.gmra.mrb[0].mxu0 %v1115
        %v1744 = vpop.f32.mrb[0].mxu0
        %v1745 = vadd.f32 0.0, %v1744
        %v1746 = vpop.f32.mrb[0].mxu0
        %1747 = vmatprep.mubr.f32.mxu0 0.0
        %1748 = vmatmul.mubr.f32.gmra.mrb[0].mxu0 %v1118
        %v1749 = vpop.f32.mrb[0].mxu0
        %v1750 = vadd.f32 0.0, %v1749
        %v1751 = vpop.f32.mrb[0].mxu0
        %1752 = vmatprep.mubr.f32.mxu0 0.0
        %1753 = vmatmul.mubr.f32.gmra.mrb[0].mxu0 %v1121
        %v1754 = vpop.f32.mrb[0].mxu0
        %v1755 = vadd.f32 0.0, %v1754
        %v1756 = vpop.f32.mrb[0].mxu0
        %1757 = vmatprep.mubr.f32.mxu0 0.0
        %1758 = vmatmul.mubr.f32.gmra.mrb[0].mxu0 %v1124
        %v1759 = vpop.f32.mrb[0].mxu0
        %v1760 = vadd.f32 0.0, %v1759
        %v1761 = vpop.f32.mrb[0].mxu0
        %1762 = vmatprep.mubr.f32.mxu0 0.0
        %1763 = vmatmul.mubr.f32.gmra.mrb[0].mxu0 %v1127
        %v1764 = vpop.f32.mrb[0].mxu0
        %v1765 = vadd.f32 0.0, %v1764
        %v1766 = vpop.f32.mrb[0].mxu0
        %1767 = vmatprep.mubr.f32.mxu0 0.0
        %1768 = vmatmul.mubr.f32.gmra.mrb[0].mxu0 %v1130
        %v1769 = vpop.f32.mrb[0].mxu0
        %v1770 = vadd.f32 0.0, %v1769
        %v1771 = vpop.f32.mrb[0].mxu0
        %1772 = vmatprep.mubr.f32.mxu0 0.0
        %1773 = vmatmul.mubr.f32.gmra.mrb[0].mxu0 %v1133
        %v1774 = vpop.f32.mrb[0].mxu0
        %v1775 = vadd.f32 0.0, %v1774
        %v1776 = vpop.f32.mrb[0].mxu0
        %1777 = vmatprep.mubr.f32.mxu0 0.0
        %1778 = vmatmul.mubr.f32.gmra.mrb[0].mxu0 %v1136
        %v1779 = vpop.f32.mrb[0].mxu0
        %v1780 = vadd.f32 0.0, %v1779
        %v1781 = vpop.f32.mrb[0].mxu0
        %1782 = vmatprep.mubr.f32.mxu0 0.0
        %1783 = vmatmul.mubr.f32.gmra.mrb[0].mxu0 %v1139
        %v1784 = vpop.f32.mrb[0].mxu0
        %v1785 = vadd.f32 0.0, %v1784
        %v1786 = vpop.f32.mrb[0].mxu0
        %1787 = vmatprep.mubr.f32.mxu0 0.0
        %1788 = vmatmul.mubr.f32.gmra.mrb[0].mxu0 %v1142
        %v1789 = vpop.f32.mrb[0].mxu0
        %v1790 = vadd.f32 0.0, %v1789
        %v1791 = vpop.f32.mrb[0].mxu0
        %1792 = vmatprep.mubr.f32.mxu0 0.0
        %1793 = vmatmul.mubr.f32.gmra.mrb[0].mxu0 %v1145
        %v1794 = vpop.f32.mrb[0].mxu0
        %v1795 = vadd.f32 0.0, %v1794
        %v1796 = vpop.f32.mrb[0].mxu0
        %1797 = vmatprep.mubr.f32.mxu0 0.0
        %1798 = vmatmul.mubr.f32.gmra.mrb[0].mxu0 %v1148
        %v1799 = vpop.f32.mrb[0].mxu0
        %v1800 = vadd.f32 0.0, %v1799
        %v1801 = vpop.f32.mrb[0].mxu0
        %1802 = vmatprep.mubr.f32.mxu0 0.0
        %1803 = vmatmul.mubr.f32.gmra.mrb[0].mxu0 %v1151
        %v1804 = vpop.f32.mrb[0].mxu0
        %v1805 = vadd.f32 0.0, %v1804
        %v1806 = vpop.f32.mrb[0].mxu0
        %1807 = vmatprep.mubr.f32.mxu0 0.0
        %1808 = vmatmul.mubr.f32.gmra.mrb[0].mxu0 %v1154
        %v1809 = vpop.f32.mrb[0].mxu0
        %v1810 = vadd.f32 0.0, %v1809
        %v1811 = vpop.f32.mrb[0].mxu0
        %1812 = vmatprep.mubr.f32.mxu0 0.0
        %1813 = vmatmul.mubr.f32.gmra.mrb[0].mxu0 %v1157
        %v1814 = vpop.f32.mrb[0].mxu0
        %v1815 = vadd.f32 0.0, %v1814
        %v1816 = vpop.f32.mrb[0].mxu0
        %1817 = vmatprep.mubr.f32.mxu0 0.0
        %1818 = vmatmul.mubr.f32.gmra.mrb[0].mxu0 %v1160
        %v1819 = vpop.f32.mrb[0].mxu0
        %v1820 = vadd.f32 0.0, %v1819
        %v1821 = vpop.f32.mrb[0].mxu0
        %1822 = vmatprep.mubr.f32.mxu0 0.0
        %1823 = vmatmul.mubr.f32.gmra.mrb[0].mxu0 %v1163
        %v1824 = vpop.f32.mrb[0].mxu0
        %v1825 = vadd.f32 0.0, %v1824
        %v1826 = vpop.f32.mrb[0].mxu0
        %1827 = vmatprep.mubr.f32.mxu0 0.0
        %1828 = vmatmul.mubr.f32.gmra.mrb[0].mxu0 %v1166
        %v1829 = vpop.f32.mrb[0].mxu0
        %v1830 = vadd.f32 0.0, %v1829
        %v1831 = vpop.f32.mrb[0].mxu0
        %1832 = vmatprep.mubr.f32.mxu0 0.0
        %1833 = vmatmul.mubr.f32.gmra.mrb[0].mxu0 %v1169
        %v1834 = vpop.f32.mrb[0].mxu0
        %v1835 = vadd.f32 0.0, %v1834
        %v1836 = vpop.f32.mrb[0].mxu0
        %1837 = vmatprep.mubr.f32.mxu0 0.0
        %1838 = vmatmul.mubr.f32.gmra.mrb[0].mxu0 %v1172
        %v1839 = vpop.f32.mrb[0].mxu0
        %v1840 = vadd.f32 0.0, %v1839
        %v1841 = vpop.f32.mrb[0].mxu0
        %1842 = vmatprep.mubr.f32.mxu0 0.0
        %1843 = vmatmul.mubr.f32.gmra.mrb[0].mxu0 %v1175
        %v1844 = vpop.f32.mrb[0].mxu0
        %v1845 = vadd.f32 0.0, %v1844
        %v1846 = vpop.f32.mrb[0].mxu0
        %1847 = vmatprep.mubr.f32.mxu0 0.0
        %1848 = vmatmul.mubr.f32.gmra.mrb[0].mxu0 %v1178
        %v1849 = vpop.f32.mrb[0].mxu0
        %v1850 = vadd.f32 0.0, %v1849
        %v1851 = vpop.f32.mrb[0].mxu0
        %1852 = vmatprep.mubr.f32.mxu0 0.0
        %1853 = vmatmul.mubr.f32.gmra.mrb[0].mxu0 %v1181
        %v1854 = vpop.f32.mrb[0].mxu0
        %v1855 = vadd.f32 0.0, %v1854
        %v1856 = vpop.f32.mrb[0].mxu0
        %1857 = vmatprep.mubr.f32.mxu0 0.0
        %1858 = vmatmul.mubr.f32.gmra.mrb[0].mxu0 %v1184
        %v1859 = vpop.f32.mrb[0].mxu0
        %v1860 = vadd.f32 0.0, %v1859
        %v1861 = vpop.f32.mrb[0].mxu0
        %1862 = vmatprep.mubr.f32.mxu0 0.0
        %1863 = vmatmul.mubr.f32.gmra.mrb[0].mxu0 %v1187
        %v1864 = vpop.f32.mrb[0].mxu0
        %v1865 = vadd.f32 0.0, %v1864
        %v1866 = vpop.f32.mrb[0].mxu0
        %1867 = vmatprep.mubr.f32.mxu0 0.0
        %1868 = vmatmul.mubr.f32.gmra.mrb[0].mxu0 %v1190
        %v1869 = vpop.f32.mrb[0].mxu0
        %v1870 = vadd.f32 0.0, %v1869
        %v1871 = vpop.f32.mrb[0].mxu0
        %1872 = vmatprep.mubr.f32.mxu0 0.0
        %1873 = vmatmul.mubr.f32.gmra.mrb[0].mxu0 %v1193
        %v1874 = vpop.f32.mrb[0].mxu0
        %v1875 = vadd.f32 0.0, %v1874
        %v1876 = vpop.f32.mrb[0].mxu0
        %1877 = vmatprep.mubr.f32.mxu0 0.0
        %1878 = vmatmul.mubr.f32.gmra.mrb[0].mxu0 %v1196
        %v1879 = vpop.f32.mrb[0].mxu0
        %v1880 = vadd.f32 0.0, %v1879
        %v1881 = vpop.f32.mrb[0].mxu0
        %1882 = vmatprep.mubr.f32.mxu0 0.0
        %1883 = vmatmul.mubr.f32.gmra.mrb[0].mxu0 %v1199
        %v1884 = vpop.f32.mrb[0].mxu0
        %v1885 = vadd.f32 0.0, %v1884
        %v1886 = vpop.f32.mrb[0].mxu0
        %1887 = vmatprep.mubr.f32.mxu0 0.0
        %1888 = vmatmul.mubr.f32.gmra.mrb[0].mxu0 %v1202
        %v1889 = vpop.f32.mrb[0].mxu0
        %v1890 = vadd.f32 0.0, %v1889
        %v1891 = vpop.f32.mrb[0].mxu0
        %1892 = vmatprep.mubr.f32.mxu0 0.0
        %1893 = vmatmul.mubr.f32.gmra.mrb[0].mxu0 %v1205
        %v1894 = vpop.f32.mrb[0].mxu0
        %v1895 = vadd.f32 0.0, %v1894
        %v1896 = vpop.f32.mrb[0].mxu0
        %1897 = vmatprep.mubr.f32.mxu0 0.0
        %1898 = vmatmul.mubr.f32.gmra.mrb[0].mxu0 %v1208
        %v1899 = vpop.f32.mrb[0].mxu0
        %v1900 = vadd.f32 0.0, %v1899
        %v1901 = vpop.f32.mrb[0].mxu0
        %1902 = vmatprep.mubr.f32.mxu0 0.0
        %1903 = vmatmul.mubr.f32.gmra.mrb[0].mxu0 %v1211
        %v1904 = vpop.f32.mrb[0].mxu0
        %v1905 = vadd.f32 0.0, %v1904
        %v1906 = vpop.f32.mrb[0].mxu0
        %1907 = vmatprep.mubr.f32.mxu0 0.0
        %1908 = vmatmul.mubr.f32.gmra.mrb[0].mxu0 %v1214
        %v1909 = vpop.f32.mrb[0].mxu0
        %v1910 = vadd.f32 0.0, %v1909
        %v1911 = vpop.f32.mrb[0].mxu0
        %1912 = vmatprep.mubr.f32.mxu0 0.0
        %1913 = vmatmul.mubr.f32.gmra.mrb[0].mxu0 %v1217
        %v1914 = vpop.f32.mrb[0].mxu0
        %v1915 = vadd.f32 0.0, %v1914
        %v1916 = vpop.f32.mrb[0].mxu0
        %1917 = vmatprep.mubr.f32.mxu0 0.0
        %1918 = vmatmul.mubr.f32.gmra.mrb[0].mxu0 %v1220
        %v1919 = vpop.f32.mrb[0].mxu0
        %v1920 = vadd.f32 0.0, %v1919
        %v1921 = vpop.f32.mrb[0].mxu0
        %1922 = vmatprep.mubr.f32.mxu0 0.0
        %1923 = vmatmul.mubr.f32.gmra.mrb[0].mxu0 %v1223
        %v1924 = vpop.f32.mrb[0].mxu0
        %v1925 = vadd.f32 0.0, %v1924
        %v1926 = vpop.f32.mrb[0].mxu0
        %1927 = vmatprep.mubr.f32.mxu0 0.0
        %1928 = vmatmul.mubr.f32.gmra.mrb[0].mxu0 %v1226
        %v1929 = vpop.f32.mrb[0].mxu0
        %v1930 = vadd.f32 0.0, %v1929
        %v1931 = vpop.f32.mrb[0].mxu0
        %1932 = vmatprep.mubr.f32.mxu0 0.0
        %1933 = vmatmul.mubr.f32.gmra.mrb[0].mxu0 %v1229
        %v1934 = vpop.f32.mrb[0].mxu0
        %v1935 = vadd.f32 0.0, %v1934
        %v1936 = vpop.f32.mrb[0].mxu0
        %1937 = vmatprep.mubr.f32.mxu0 0.0
        %1938 = vmatmul.mubr.f32.gmra.mrb[0].mxu0 %v1232
        %v1939 = vpop.f32.mrb[0].mxu0
        %v1940 = vadd.f32 0.0, %v1939
        %v1941 = vpop.f32.mrb[0].mxu0
        %1942 = vdwg.mxu0
        %v1943 = vmax.f32 %v1305, %v1465
        %v1944 = vmax.f32 %v1310, %v1470
        %v1945 = vmax.f32 %v1315, %v1475
        %v1946 = vmax.f32 %v1320, %v1480
        %v1947 = vmax.f32 %v1325, %v1485
        %v1948 = vmax.f32 %v1330, %v1490
        %v1949 = vmax.f32 %v1335, %v1495
        %v1950 = vmax.f32 %v1340, %v1500
        %v1951 = vmax.f32 %v1345, %v1505
        %v1952 = vmax.f32 %v1350, %v1510
        %v1953 = vmax.f32 %v1355, %v1515
        %v1954 = vmax.f32 %v1360, %v1520
        %v1955 = vmax.f32 %v1365, %v1525
        %v1956 = vmax.f32 %v1370, %v1530
        %v1957 = vmax.f32 %v1375, %v1535
        %v1958 = vmax.f32 %v1380, %v1540
        %v1959 = vmax.f32 %v1385, %v1545
        %v1960 = vmax.f32 %v1390, %v1550
        %v1961 = vmax.f32 %v1395, %v1555
        %v1962 = vmax.f32 %v1400, %v1560
        %v1963 = vmax.f32 %v1405, %v1565
        %v1964 = vmax.f32 %v1410, %v1570
        %v1965 = vmax.f32 %v1415, %v1575
        %v1966 = vmax.f32 %v1420, %v1580
        %v1967 = vmax.f32 %v1425, %v1585
        %v1968 = vmax.f32 %v1430, %v1590
        %v1969 = vmax.f32 %v1435, %v1595
        %v1970 = vmax.f32 %v1440, %v1600
        %v1971 = vmax.f32 %v1445, %v1605
        %v1972 = vmax.f32 %v1450, %v1610
        %v1973 = vmax.f32 %v1455, %v1615
        %v1974 = vmax.f32 %v1460, %v1620
        %v1975 = vmax.f32 %v1625, %v1785
        %v1976 = vmax.f32 %v1630, %v1790
        %v1977 = vmax.f32 %v1635, %v1795
        %v1978 = vmax.f32 %v1640, %v1800
        %v1979 = vmax.f32 %v1645, %v1805
        %v1980 = vmax.f32 %v1650, %v1810
        %v1981 = vmax.f32 %v1655, %v1815
        %v1982 = vmax.f32 %v1660, %v1820
        %v1983 = vmax.f32 %v1665, %v1825
        %v1984 = vmax.f32 %v1670, %v1830
        %v1985 = vmax.f32 %v1675, %v1835
        %v1986 = vmax.f32 %v1680, %v1840
        %v1987 = vmax.f32 %v1685, %v1845
        %v1988 = vmax.f32 %v1690, %v1850
        %v1989 = vmax.f32 %v1695, %v1855
        %v1990 = vmax.f32 %v1700, %v1860
        %v1991 = vmax.f32 %v1705, %v1865
        %v1992 = vmax.f32 %v1710, %v1870
        %v1993 = vmax.f32 %v1715, %v1875
        %v1994 = vmax.f32 %v1720, %v1880
        %v1995 = vmax.f32 %v1725, %v1885
        %v1996 = vmax.f32 %v1730, %v1890
        %v1997 = vmax.f32 %v1735, %v1895
        %v1998 = vmax.f32 %v1740, %v1900
        %v1999 = vmax.f32 %v1745, %v1905
        %v2000 = vmax.f32 %v1750, %v1910
        %v2001 = vmax.f32 %v1755, %v1915
        %v2002 = vmax.f32 %v1760, %v1920
        %v2003 = vmax.f32 %v1765, %v1925
        %v2004 = vmax.f32 %v1770, %v1930
        %v2005 = vmax.f32 %v1775, %v1935
        %v2006 = vmax.f32 %v1780, %v1940
        %v2007 = vmax.f32 %v1943, %v1975
        %v2008 = vmax.f32 %v1944, %v1976
        %v2009 = vmax.f32 %v1945, %v1977
        %v2010 = vmax.f32 %v1946, %v1978
        %v2011 = vmax.f32 %v1947, %v1979
        %v2012 = vmax.f32 %v1948, %v1980
        %v2013 = vmax.f32 %v1949, %v1981
        %v2014 = vmax.f32 %v1950, %v1982
        %v2015 = vmax.f32 %v1951, %v1983
        %v2016 = vmax.f32 %v1952, %v1984
        %v2017 = vmax.f32 %v1953, %v1985
        %v2018 = vmax.f32 %v1954, %v1986
        %v2019 = vmax.f32 %v1955, %v1987
        %v2020 = vmax.f32 %v1956, %v1988
        %v2021 = vmax.f32 %v1957, %v1989
        %v2022 = vmax.f32 %v1958, %v1990
        %v2023 = vmax.f32 %v1959, %v1991
        %v2024 = vmax.f32 %v1960, %v1992
        %v2025 = vmax.f32 %v1961, %v1993
        %v2026 = vmax.f32 %v1962, %v1994
        %v2027 = vmax.f32 %v1963, %v1995
        %v2028 = vmax.f32 %v1964, %v1996
        %v2029 = vmax.f32 %v1965, %v1997
        %v2030 = vmax.f32 %v1966, %v1998
        %v2031 = vmax.f32 %v1967, %v1999
        %v2032 = vmax.f32 %v1968, %v2000
        %v2033 = vmax.f32 %v1969, %v2001
        %v2034 = vmax.f32 %v1970, %v2002
        %v2035 = vmax.f32 %v1971, %v2003
        %v2036 = vmax.f32 %v1972, %v2004
        %v2037 = vmax.f32 %v1973, %v2005
        %v2038 = vmax.f32 %v1974, %v2006
        %v2039 = vld [vmem:[%s2] sm:$0x1]
        %v2041 = vlaneseq
        %v2042 = vshrl.u32 %v2041, 7
        %v2043 = vsub.s32 0, %v2042
        %v2044 = vrot.slane %v2039, %v2043
        %v2046 = vadd.f32 %v2007, %v2044
        %v2047 = vadd.f32 %v2008, %v2044
        %v2048 = vadd.f32 %v2009, %v2044
        %v2049 = vadd.f32 %v2010, %v2044
        %v2050 = vadd.f32 %v2011, %v2044
        %v2051 = vadd.f32 %v2012, %v2044
        %v2052 = vadd.f32 %v2013, %v2044
        %v2053 = vadd.f32 %v2014, %v2044
        %v2054 = vadd.f32 %v2015, %v2044
        %v2055 = vadd.f32 %v2016, %v2044
        %v2056 = vadd.f32 %v2017, %v2044
        %v2057 = vadd.f32 %v2018, %v2044
        %v2058 = vadd.f32 %v2019, %v2044
        %v2059 = vadd.f32 %v2020, %v2044
        %v2060 = vadd.f32 %v2021, %v2044
        %v2061 = vadd.f32 %v2022, %v2044
        %v2062 = vadd.f32 %v2023, %v2044
        %v2063 = vadd.f32 %v2024, %v2044
        %v2064 = vadd.f32 %v2025, %v2044
        %v2065 = vadd.f32 %v2026, %v2044
        %v2066 = vadd.f32 %v2027, %v2044
        %v2067 = vadd.f32 %v2028, %v2044
        %v2068 = vadd.f32 %v2029, %v2044
        %v2069 = vadd.f32 %v2030, %v2044
        %v2070 = vadd.f32 %v2031, %v2044
        %v2071 = vadd.f32 %v2032, %v2044
        %v2072 = vadd.f32 %v2033, %v2044
        %v2073 = vadd.f32 %v2034, %v2044
        %v2074 = vadd.f32 %v2035, %v2044
        %v2075 = vadd.f32 %v2036, %v2044
        %v2076 = vadd.f32 %v2037, %v2044
        %v2077 = vadd.f32 %v2038, %v2044
        %v2078 = vmax.f32 %v2046, 0.0
        %v2079 = vmax.f32 %v2047, 0.0
        %v2080 = vmax.f32 %v2048, 0.0
        %v2081 = vmax.f32 %v2049, 0.0
        %v2082 = vmax.f32 %v2050, 0.0
        %v2083 = vmax.f32 %v2051, 0.0
        %v2084 = vmax.f32 %v2052, 0.0
        %v2085 = vmax.f32 %v2053, 0.0
        %v2086 = vmax.f32 %v2054, 0.0
        %v2087 = vmax.f32 %v2055, 0.0
        %v2088 = vmax.f32 %v2056, 0.0
        %v2089 = vmax.f32 %v2057, 0.0
        %v2090 = vmax.f32 %v2058, 0.0
        %v2091 = vmax.f32 %v2059, 0.0
        %v2092 = vmax.f32 %v2060, 0.0
        %v2093 = vmax.f32 %v2061, 0.0
        %v2094 = vmax.f32 %v2062, 0.0
        %v2095 = vmax.f32 %v2063, 0.0
        %v2096 = vmax.f32 %v2064, 0.0
        %v2097 = vmax.f32 %v2065, 0.0
        %v2098 = vmax.f32 %v2066, 0.0
        %v2099 = vmax.f32 %v2067, 0.0
        %v2100 = vmax.f32 %v2068, 0.0
        %v2101 = vmax.f32 %v2069, 0.0
        %v2102 = vmax.f32 %v2070, 0.0
        %v2103 = vmax.f32 %v2071, 0.0
        %v2104 = vmax.f32 %v2072, 0.0
        %v2105 = vmax.f32 %v2073, 0.0
        %v2106 = vmax.f32 %v2074, 0.0
        %v2107 = vmax.f32 %v2075, 0.0
        %v2108 = vmax.f32 %v2076, 0.0
        %v2109 = vmax.f32 %v2077, 0.0
        %vm2110 = vcmask 64512
        %2111 = vst.msk [vmem:[%s714] sm:$0xff] %vm2110, %v2078
        %2112 = vst.msk [vmem:[%s714 + $0x8] sm:$0xff] %vm2110, %v2079
        %2113 = vst.msk [vmem:[%s714 + $0x10] sm:$0xff] %vm2110, %v2080
        %2114 = vst.msk [vmem:[%s714 + $0x18] sm:$0xff] %vm2110, %v2081
        %2115 = vst.msk [vmem:[%s714 + $0x20] sm:$0xff] %vm2110, %v2082
        %2116 = vst.msk [vmem:[%s714 + $0x28] sm:$0xff] %vm2110, %v2083
        %2117 = vst.msk [vmem:[%s714 + $0x30] sm:$0xff] %vm2110, %v2084
        %2118 = vst.msk [vmem:[%s714 + $0x38] sm:$0xff] %vm2110, %v2085
        %2119 = vst.msk [vmem:[%s714 + $0x40] sm:$0xff] %vm2110, %v2086
        %2120 = vst.msk [vmem:[%s714 + $0x48] sm:$0xff] %vm2110, %v2087
        %2121 = vst.msk [vmem:[%s714 + $0x50] sm:$0xff] %vm2110, %v2088
        %2122 = vst.msk [vmem:[%s714 + $0x58] sm:$0xff] %vm2110, %v2089
        %2123 = vst.msk [vmem:[%s714 + $0x60] sm:$0xff] %vm2110, %v2090
        %2124 = vst.msk [vmem:[%s714 + $0x68] sm:$0xff] %vm2110, %v2091
        %2125 = vst.msk [vmem:[%s714 + $0x70] sm:$0xff] %vm2110, %v2092
        %2126 = vst.msk [vmem:[%s714 + $0x78] sm:$0xff] %vm2110, %v2093
        %2127 = vst.msk [vmem:[%s714 + $0x80] sm:$0xff] %vm2110, %v2094
        %2128 = vst.msk [vmem:[%s714 + $0x88] sm:$0xff] %vm2110, %v2095
        %2129 = vst.msk [vmem:[%s714 + $0x90] sm:$0xff] %vm2110, %v2096
        %2130 = vst.msk [vmem:[%s714 + $0x98] sm:$0xff] %vm2110, %v2097
        %2131 = vst.msk [vmem:[%s714 + $0xa0] sm:$0xff] %vm2110, %v2098
        %2132 = vst.msk [vmem:[%s714 + $0xa8] sm:$0xff] %vm2110, %v2099
        %2133 = vst.msk [vmem:[%s714 + $0xb0] sm:$0xff] %vm2110, %v2100
        %2134 = vst.msk [vmem:[%s714 + $0xb8] sm:$0xff] %vm2110, %v2101
        %2135 = vst.msk [vmem:[%s714 + $0xc0] sm:$0xff] %vm2110, %v2102
        %2136 = vst.msk [vmem:[%s714 + $0xc8] sm:$0xff] %vm2110, %v2103
        %2137 = vst.msk [vmem:[%s714 + $0xd0] sm:$0xff] %vm2110, %v2104
        %2138 = vst.msk [vmem:[%s714 + $0xd8] sm:$0xff] %vm2110, %v2105
        %2139 = vst.msk [vmem:[%s714 + $0xe0] sm:$0xff] %vm2110, %v2106
        %2140 = vst.msk [vmem:[%s714 + $0xe8] sm:$0xff] %vm2110, %v2107
        %2141 = vst.msk [vmem:[%s714 + $0xf0] sm:$0xff] %vm2110, %v2108
        %2142 = vst.msk [vmem:[%s714 + $0xf8] sm:$0xff] %vm2110, %v2109
        %s2143 = smul.u32 32, %s14
        %p2144 = scmp.lt.s32.totalorder %s2143, 63
        %s2145 = scalar_select %p2144, %s2143, 63
        %s2146 = smul.addr %s2145, 8
        %s2147 = scalar_lea.vmem %s3, %s2146
        // Predicated region
        $region71: #{cnn_forward.2} parent=65 // pred_check
          %p2148 = pneg %p100
        $region72: #{cnn_forward.2} parent=65 // pred_check_branch
          %2150 = sbr.rel (%p2148) target = $region74
        $region73: #{cnn_forward.2} parent=65 // pred_region
          %s2151 = smul.u32 32, %s14
        $region74: #{cnn_forward.2} parent=65 // pred_fallthru
          _
      $region66: #{cnn_forward.2} parent=5 // pred_fallthru
        _
      %p2152 = scmp.le.s32.totalorder 2, %s9
      // Predicated region
      $region75: #{cnn_forward.2} parent=5 // pred_check
        %p2153 = pneg %p2152
      $region76: #{cnn_forward.2} parent=5 // pred_check_branch
        %2155 = sbr.rel (%p2153) target = $region78
      $region77: #{cnn_forward.2} parent=5 // pred_region
        %s2156 = ssub.s32 %s9, 2
        // Predicated region
        $region79: #{cnn_forward.2} parent=77 // pred_check
          %p2157 = pneg %p106
        $region80: #{cnn_forward.2} parent=77 // pred_check_branch
          %2159 = sbr.rel (%p2157) target = $region82
        $region81: #{cnn_forward.2} parent=77 // pred_region
          %s2160 = smul.u32 32, %s15
          %p2161 = scmp.lt.s32.totalorder %s2160, 63
          %s2162 = scalar_select %p2161, %s2160, 63
          %s2163 = smul.addr %s2162, 8
          %s2164 = scalar_lea.vmem %s3, %s2163
        $region82: #{cnn_forward.2} parent=77 // pred_fallthru
          _
      $region78: #{cnn_forward.2} parent=5 // pred_fallthru
        _
    $region6: #{cnn_forward.2} parent=1 // loop_footer
      %s13 = sadd.s32 1, %s9
    $region7: #{cnn_forward.2} parent=1 // loop_footer_branch
      %8 = sbr.rel target = $region3
    $region8: #{cnn_forward.2} parent=1 // loop_exit
      _

// kernel: cnn_forward.3
$region0: #{cnn_forward.3}
  #allocation0 [shape = 'u32[]', space=smem, size = 0x4, offset = 0x4, fixed_abs, tag = 'smem constant byte address 0x4 - core index']
  #allocation1 [shape = 'u32[144,128]{1,0:T(1,128)}', space=vmem, size = 0x12000, scoped, tag = 'internal scratch']
  %s0 = inlined_call_operand.vmem [shape: f32[2,2048], index: 0, kind: input, shape index: {}]
  %s1 = inlined_call_operand.vmem [shape: f32[2048,10], index: 1, kind: input, shape index: {}]
  %s2 = inlined_call_operand.vmem [shape: f32[1,10], index: 2, kind: input, shape index: {}]
  %s3 = inlined_call_operand.hbm [shape: f32[2,10], index: 3, kind: output, shape index: {}]
  %s4 = sld [smem:[#allocation0]]
  $region22: #{cnn_forward.3} parent=0
    _
  %s6 = ssub.s32 1, %s4
  %s7 = scalar_select 0, %s6, %s4
  $region1: #{cnn_forward.3} parent=0
    #allocation2 [shape = 'u8[1024]{0}', space=vmem, size = 0x400, scoped, tag = 'output window, operand 0, single buffered']
    #allocation3 [shape = 's32[1]{0}', space=sflag, size = 0x4, scoped, tag = 'scoped memory for cnn_forward.3']
    %8 = vsyncpa [#allocation3], 0
    // Predicated region
    $region2: #{cnn_forward.3} parent=1 // pred_check
      _
    $region3: #{cnn_forward.3} parent=1 // pred_check_branch
      %10 = sbr.rel (0) target = $region5
    $region4: #{cnn_forward.3} parent=1 // pred_region
      _
    $region5: #{cnn_forward.3} parent=1 // pred_fallthru
      _
    // Predicated region
    $region6: #{cnn_forward.3} parent=1 // pred_check
      _
    $region7: #{cnn_forward.3} parent=1 // pred_check_branch
      %12 = sbr.rel (0) target = $region9
    $region8: #{cnn_forward.3} parent=1 // pred_region
      _
    $region9: #{cnn_forward.3} parent=1 // pred_fallthru
      _
    // Predicated region
    $region10: #{cnn_forward.3} parent=1 // pred_check
      _
    $region11: #{cnn_forward.3} parent=1 // pred_check_branch
      %14 = sbr.rel (0) target = $region13
    $region12: #{cnn_forward.3} parent=1 // pred_region
      _
    $region13: #{cnn_forward.3} parent=1 // pred_fallthru
      _
    %v15 = vld [vmem:[%s0] sm:$0xff]
    %v16 = vld [vmem:[%s0 + $0x8] sm:$0xff]
    %v17 = vld [vmem:[%s0 + $0x10] sm:$0xff]
    %v18 = vld [vmem:[%s0 + $0x18] sm:$0xff]
    %v19 = vld [vmem:[%s1] sm:$0xff]
    %v20 = vld [vmem:[%s1 + $0x8] sm:$0xff]
    %v21 = vld [vmem:[%s1 + $0x10] sm:$0xff]
    %v22 = vld [vmem:[%s1 + $0x18] sm:$0xff]
    %v23 = vld [vmem:[%s1 + $0x20] sm:$0xff]
    %v24 = vld [vmem:[%s1 + $0x28] sm:$0xff]
    %v25 = vld [vmem:[%s1 + $0x30] sm:$0xff]
    %v26 = vld [vmem:[%s1 + $0x38] sm:$0xff]
    %v27 = vld [vmem:[%s1 + $0x40] sm:$0xff]
    %v28 = vld [vmem:[%s1 + $0x48] sm:$0xff]
    %v29 = vld [vmem:[%s1 + $0x50] sm:$0xff]
    %v30 = vld [vmem:[%s1 + $0x58] sm:$0xff]
    %v31 = vld [vmem:[%s1 + $0x60] sm:$0xff]
    %v32 = vld [vmem:[%s1 + $0x68] sm:$0xff]
    %v33 = vld [vmem:[%s1 + $0x70] sm:$0xff]
    %v34 = vld [vmem:[%s1 + $0x78] sm:$0xff]
    %v35 = vld [vmem:[%s1 + $0x80] sm:$0xff]
    %v36 = vld [vmem:[%s1 + $0x88] sm:$0xff]
    %v37 = vld [vmem:[%s1 + $0x90] sm:$0xff]
    %v38 = vld [vmem:[%s1 + $0x98] sm:$0xff]
    %v39 = vld [vmem:[%s1 + $0xa0] sm:$0xff]
    %v40 = vld [vmem:[%s1 + $0xa8] sm:$0xff]
    %v41 = vld [vmem:[%s1 + $0xb0] sm:$0xff]
    %v42 = vld [vmem:[%s1 + $0xb8] sm:$0xff]
    %v43 = vld [vmem:[%s1 + $0xc0] sm:$0xff]
    %v44 = vld [vmem:[%s1 + $0xc8] sm:$0xff]
    %v45 = vld [vmem:[%s1 + $0xd0] sm:$0xff]
    %v46 = vld [vmem:[%s1 + $0xd8] sm:$0xff]
    %v47 = vld [vmem:[%s1 + $0xe0] sm:$0xff]
    %v48 = vld [vmem:[%s1 + $0xe8] sm:$0xff]
    %v49 = vld [vmem:[%s1 + $0xf0] sm:$0xff]
    %v50 = vld [vmem:[%s1 + $0xf8] sm:$0xff]
    %v51 = vld [vmem:[%s1 + $0x100] sm:$0xff]
    %v52 = vld [vmem:[%s1 + $0x108] sm:$0xff]
    %v53 = vld [vmem:[%s1 + $0x110] sm:$0xff]
    %v54 = vld [vmem:[%s1 + $0x118] sm:$0xff]
    %v55 = vld [vmem:[%s1 + $0x120] sm:$0xff]
    %v56 = vld [vmem:[%s1 + $0x128] sm:$0xff]
    %v57 = vld [vmem:[%s1 + $0x130] sm:$0xff]
    %v58 = vld [vmem:[%s1 + $0x138] sm:$0xff]
    %v59 = vld [vmem:[%s1 + $0x140] sm:$0xff]
    %v60 = vld [vmem:[%s1 + $0x148] sm:$0xff]
    %v61 = vld [vmem:[%s1 + $0x150] sm:$0xff]
    %v62 = vld [vmem:[%s1 + $0x158] sm:$0xff]
    %v63 = vld [vmem:[%s1 + $0x160] sm:$0xff]
    %v64 = vld [vmem:[%s1 + $0x168] sm:$0xff]
    %v65 = vld [vmem:[%s1 + $0x170] sm:$0xff]
    %v66 = vld [vmem:[%s1 + $0x178] sm:$0xff]
    %v67 = vld [vmem:[%s1 + $0x180] sm:$0xff]
    %v68 = vld [vmem:[%s1 + $0x188] sm:$0xff]
    %v69 = vld [vmem:[%s1 + $0x190] sm:$0xff]
    %v70 = vld [vmem:[%s1 + $0x198] sm:$0xff]
    %v71 = vld [vmem:[%s1 + $0x1a0] sm:$0xff]
    %v72 = vld [vmem:[%s1 + $0x1a8] sm:$0xff]
    %v73 = vld [vmem:[%s1 + $0x1b0] sm:$0xff]
    %v74 = vld [vmem:[%s1 + $0x1b8] sm:$0xff]
    %v75 = vld [vmem:[%s1 + $0x1c0] sm:$0xff]
    %v76 = vld [vmem:[%s1 + $0x1c8] sm:$0xff]
    %v77 = vld [vmem:[%s1 + $0x1d0] sm:$0xff]
    %v78 = vld [vmem:[%s1 + $0x1d8] sm:$0xff]
    %v79 = vld [vmem:[%s1 + $0x1e0] sm:$0xff]
    %v80 = vld [vmem:[%s1 + $0x1e8] sm:$0xff]
    %v81 = vld [vmem:[%s1 + $0x1f0] sm:$0xff]
    %v82 = vld [vmem:[%s1 + $0x1f8] sm:$0xff]
    %v83 = vld [vmem:[%s1 + $0x200] sm:$0xff]
    %v84 = vld [vmem:[%s1 + $0x208] sm:$0xff]
    %v85 = vld [vmem:[%s1 + $0x210] sm:$0xff]
    %v86 = vld [vmem:[%s1 + $0x218] sm:$0xff]
    %v87 = vld [vmem:[%s1 + $0x220] sm:$0xff]
    %v88 = vld [vmem:[%s1 + $0x228] sm:$0xff]
    %v89 = vld [vmem:[%s1 + $0x230] sm:$0xff]
    %v90 = vld [vmem:[%s1 + $0x238] sm:$0xff]
    %v91 = vld [vmem:[%s1 + $0x240] sm:$0xff]
    %v92 = vld [vmem:[%s1 + $0x248] sm:$0xff]
    %v93 = vld [vmem:[%s1 + $0x250] sm:$0xff]
    %v94 = vld [vmem:[%s1 + $0x258] sm:$0xff]
    %v95 = vld [vmem:[%s1 + $0x260] sm:$0xff]
    %v96 = vld [vmem:[%s1 + $0x268] sm:$0xff]
    %v97 = vld [vmem:[%s1 + $0x270] sm:$0xff]
    %v98 = vld [vmem:[%s1 + $0x278] sm:$0xff]
    %v99 = vld [vmem:[%s1 + $0x280] sm:$0xff]
    %v100 = vld [vmem:[%s1 + $0x288] sm:$0xff]
    %v101 = vld [vmem:[%s1 + $0x290] sm:$0xff]
    %v102 = vld [vmem:[%s1 + $0x298] sm:$0xff]
    %v103 = vld [vmem:[%s1 + $0x2a0] sm:$0xff]
    %v104 = vld [vmem:[%s1 + $0x2a8] sm:$0xff]
    %v105 = vld [vmem:[%s1 + $0x2b0] sm:$0xff]
    %v106 = vld [vmem:[%s1 + $0x2b8] sm:$0xff]
    %v107 = vld [vmem:[%s1 + $0x2c0] sm:$0xff]
    %v108 = vld [vmem:[%s1 + $0x2c8] sm:$0xff]
    %v109 = vld [vmem:[%s1 + $0x2d0] sm:$0xff]
    %v110 = vld [vmem:[%s1 + $0x2d8] sm:$0xff]
    %v111 = vld [vmem:[%s1 + $0x2e0] sm:$0xff]
    %v112 = vld [vmem:[%s1 + $0x2e8] sm:$0xff]
    %v113 = vld [vmem:[%s1 + $0x2f0] sm:$0xff]
    %v114 = vld [vmem:[%s1 + $0x2f8] sm:$0xff]
    %v115 = vld [vmem:[%s1 + $0x300] sm:$0xff]
    %v116 = vld [vmem:[%s1 + $0x308] sm:$0xff]
    %v117 = vld [vmem:[%s1 + $0x310] sm:$0xff]
    %v118 = vld [vmem:[%s1 + $0x318] sm:$0xff]
    %v119 = vld [vmem:[%s1 + $0x320] sm:$0xff]
    %v120 = vld [vmem:[%s1 + $0x328] sm:$0xff]
    %v121 = vld [vmem:[%s1 + $0x330] sm:$0xff]
    %v122 = vld [vmem:[%s1 + $0x338] sm:$0xff]
    %v123 = vld [vmem:[%s1 + $0x340] sm:$0xff]
    %v124 = vld [vmem:[%s1 + $0x348] sm:$0xff]
    %v125 = vld [vmem:[%s1 + $0x350] sm:$0xff]
    %v126 = vld [vmem:[%s1 + $0x358] sm:$0xff]
    %v127 = vld [vmem:[%s1 + $0x360] sm:$0xff]
    %v128 = vld [vmem:[%s1 + $0x368] sm:$0xff]
    %v129 = vld [vmem:[%s1 + $0x370] sm:$0xff]
    %v130 = vld [vmem:[%s1 + $0x378] sm:$0xff]
    %v131 = vld [vmem:[%s1 + $0x380] sm:$0xff]
    %v132 = vld [vmem:[%s1 + $0x388] sm:$0xff]
    %v133 = vld [vmem:[%s1 + $0x390] sm:$0xff]
    %v134 = vld [vmem:[%s1 + $0x398] sm:$0xff]
    %v135 = vld [vmem:[%s1 + $0x3a0] sm:$0xff]
    %v136 = vld [vmem:[%s1 + $0x3a8] sm:$0xff]
    %v137 = vld [vmem:[%s1 + $0x3b0] sm:$0xff]
    %v138 = vld [vmem:[%s1 + $0x3b8] sm:$0xff]
    %v139 = vld [vmem:[%s1 + $0x3c0] sm:$0xff]
    %v140 = vld [vmem:[%s1 + $0x3c8] sm:$0xff]
    %v141 = vld [vmem:[%s1 + $0x3d0] sm:$0xff]
    %v142 = vld [vmem:[%s1 + $0x3d8] sm:$0xff]
    %v143 = vld [vmem:[%s1 + $0x3e0] sm:$0xff]
    %v144 = vld [vmem:[%s1 + $0x3e8] sm:$0xff]
    %v145 = vld [vmem:[%s1 + $0x3f0] sm:$0xff]
    %v146 = vld [vmem:[%s1 + $0x3f8] sm:$0xff]
    %v147 = vld [vmem:[%s1 + $0x400] sm:$0xff]
    %v148 = vld [vmem:[%s1 + $0x408] sm:$0xff]
    %v149 = vld [vmem:[%s1 + $0x410] sm:$0xff]
    %v150 = vld [vmem:[%s1 + $0x418] sm:$0xff]
    %v151 = vld [vmem:[%s1 + $0x420] sm:$0xff]
    %v152 = vld [vmem:[%s1 + $0x428] sm:$0xff]
    %v153 = vld [vmem:[%s1 + $0x430] sm:$0xff]
    %v154 = vld [vmem:[%s1 + $0x438] sm:$0xff]
    %v155 = vld [vmem:[%s1 + $0x440] sm:$0xff]
    %v156 = vld [vmem:[%s1 + $0x448] sm:$0xff]
    %v157 = vld [vmem:[%s1 + $0x450] sm:$0xff]
    %v158 = vld [vmem:[%s1 + $0x458] sm:$0xff]
    %v159 = vld [vmem:[%s1 + $0x460] sm:$0xff]
    %v160 = vld [vmem:[%s1 + $0x468] sm:$0xff]
    %v161 = vld [vmem:[%s1 + $0x470] sm:$0xff]
    %v162 = vld [vmem:[%s1 + $0x478] sm:$0xff]
    %v163 = vld [vmem:[%s1 + $0x480] sm:$0xff]
    %v164 = vld [vmem:[%s1 + $0x488] sm:$0xff]
    %v165 = vld [vmem:[%s1 + $0x490] sm:$0xff]
    %v166 = vld [vmem:[%s1 + $0x498] sm:$0xff]
    %v167 = vld [vmem:[%s1 + $0x4a0] sm:$0xff]
    %v168 = vld [vmem:[%s1 + $0x4a8] sm:$0xff]
    %v169 = vld [vmem:[%s1 + $0x4b0] sm:$0xff]
    %v170 = vld [vmem:[%s1 + $0x4b8] sm:$0xff]
    %v171 = vld [vmem:[%s1 + $0x4c0] sm:$0xff]
    %v172 = vld [vmem:[%s1 + $0x4c8] sm:$0xff]
    %v173 = vld [vmem:[%s1 + $0x4d0] sm:$0xff]
    %v174 = vld [vmem:[%s1 + $0x4d8] sm:$0xff]
    %v175 = vld [vmem:[%s1 + $0x4e0] sm:$0xff]
    %v176 = vld [vmem:[%s1 + $0x4e8] sm:$0xff]
    %v177 = vld [vmem:[%s1 + $0x4f0] sm:$0xff]
    %v178 = vld [vmem:[%s1 + $0x4f8] sm:$0xff]
    %v179 = vld [vmem:[%s1 + $0x500] sm:$0xff]
    %v180 = vld [vmem:[%s1 + $0x508] sm:$0xff]
    %v181 = vld [vmem:[%s1 + $0x510] sm:$0xff]
    %v182 = vld [vmem:[%s1 + $0x518] sm:$0xff]
    %v183 = vld [vmem:[%s1 + $0x520] sm:$0xff]
    %v184 = vld [vmem:[%s1 + $0x528] sm:$0xff]
    %v185 = vld [vmem:[%s1 + $0x530] sm:$0xff]
    %v186 = vld [vmem:[%s1 + $0x538] sm:$0xff]
    %v187 = vld [vmem:[%s1 + $0x540] sm:$0xff]
    %v188 = vld [vmem:[%s1 + $0x548] sm:$0xff]
    %v189 = vld [vmem:[%s1 + $0x550] sm:$0xff]
    %v190 = vld [vmem:[%s1 + $0x558] sm:$0xff]
    %v191 = vld [vmem:[%s1 + $0x560] sm:$0xff]
    %v192 = vld [vmem:[%s1 + $0x568] sm:$0xff]
    %v193 = vld [vmem:[%s1 + $0x570] sm:$0xff]
    %v194 = vld [vmem:[%s1 + $0x578] sm:$0xff]
    %v195 = vld [vmem:[%s1 + $0x580] sm:$0xff]
    %v196 = vld [vmem:[%s1 + $0x588] sm:$0xff]
    %v197 = vld [vmem:[%s1 + $0x590] sm:$0xff]
    %v198 = vld [vmem:[%s1 + $0x598] sm:$0xff]
    %v199 = vld [vmem:[%s1 + $0x5a0] sm:$0xff]
    %v200 = vld [vmem:[%s1 + $0x5a8] sm:$0xff]
    %v201 = vld [vmem:[%s1 + $0x5b0] sm:$0xff]
    %v202 = vld [vmem:[%s1 + $0x5b8] sm:$0xff]
    %v203 = vld [vmem:[%s1 + $0x5c0] sm:$0xff]
    %v204 = vld [vmem:[%s1 + $0x5c8] sm:$0xff]
    %v205 = vld [vmem:[%s1 + $0x5d0] sm:$0xff]
    %v206 = vld [vmem:[%s1 + $0x5d8] sm:$0xff]
    %v207 = vld [vmem:[%s1 + $0x5e0] sm:$0xff]
    %v208 = vld [vmem:[%s1 + $0x5e8] sm:$0xff]
    %v209 = vld [vmem:[%s1 + $0x5f0] sm:$0xff]
    %v210 = vld [vmem:[%s1 + $0x5f8] sm:$0xff]
    %v211 = vld [vmem:[%s1 + $0x600] sm:$0xff]
    %v212 = vld [vmem:[%s1 + $0x608] sm:$0xff]
    %v213 = vld [vmem:[%s1 + $0x610] sm:$0xff]
    %v214 = vld [vmem:[%s1 + $0x618] sm:$0xff]
    %v215 = vld [vmem:[%s1 + $0x620] sm:$0xff]
    %v216 = vld [vmem:[%s1 + $0x628] sm:$0xff]
    %v217 = vld [vmem:[%s1 + $0x630] sm:$0xff]
    %v218 = vld [vmem:[%s1 + $0x638] sm:$0xff]
    %v219 = vld [vmem:[%s1 + $0x640] sm:$0xff]
    %v220 = vld [vmem:[%s1 + $0x648] sm:$0xff]
    %v221 = vld [vmem:[%s1 + $0x650] sm:$0xff]
    %v222 = vld [vmem:[%s1 + $0x658] sm:$0xff]
    %v223 = vld [vmem:[%s1 + $0x660] sm:$0xff]
    %v224 = vld [vmem:[%s1 + $0x668] sm:$0xff]
    %v225 = vld [vmem:[%s1 + $0x670] sm:$0xff]
    %v226 = vld [vmem:[%s1 + $0x678] sm:$0xff]
    %v227 = vld [vmem:[%s1 + $0x680] sm:$0xff]
    %v228 = vld [vmem:[%s1 + $0x688] sm:$0xff]
    %v229 = vld [vmem:[%s1 + $0x690] sm:$0xff]
    %v230 = vld [vmem:[%s1 + $0x698] sm:$0xff]
    %v231 = vld [vmem:[%s1 + $0x6a0] sm:$0xff]
    %v232 = vld [vmem:[%s1 + $0x6a8] sm:$0xff]
    %v233 = vld [vmem:[%s1 + $0x6b0] sm:$0xff]
    %v234 = vld [vmem:[%s1 + $0x6b8] sm:$0xff]
    %v235 = vld [vmem:[%s1 + $0x6c0] sm:$0xff]
    %v236 = vld [vmem:[%s1 + $0x6c8] sm:$0xff]
    %v237 = vld [vmem:[%s1 + $0x6d0] sm:$0xff]
    %v238 = vld [vmem:[%s1 + $0x6d8] sm:$0xff]
    %v239 = vld [vmem:[%s1 + $0x6e0] sm:$0xff]
    %v240 = vld [vmem:[%s1 + $0x6e8] sm:$0xff]
    %v241 = vld [vmem:[%s1 + $0x6f0] sm:$0xff]
    %v242 = vld [vmem:[%s1 + $0x6f8] sm:$0xff]
    %v243 = vld [vmem:[%s1 + $0x700] sm:$0xff]
    %v244 = vld [vmem:[%s1 + $0x708] sm:$0xff]
    %v245 = vld [vmem:[%s1 + $0x710] sm:$0xff]
    %v246 = vld [vmem:[%s1 + $0x718] sm:$0xff]
    %v247 = vld [vmem:[%s1 + $0x720] sm:$0xff]
    %v248 = vld [vmem:[%s1 + $0x728] sm:$0xff]
    %v249 = vld [vmem:[%s1 + $0x730] sm:$0xff]
    %v250 = vld [vmem:[%s1 + $0x738] sm:$0xff]
    %v251 = vld [vmem:[%s1 + $0x740] sm:$0xff]
    %v252 = vld [vmem:[%s1 + $0x748] sm:$0xff]
    %v253 = vld [vmem:[%s1 + $0x750] sm:$0xff]
    %v254 = vld [vmem:[%s1 + $0x758] sm:$0xff]
    %v255 = vld [vmem:[%s1 + $0x760] sm:$0xff]
    %v256 = vld [vmem:[%s1 + $0x768] sm:$0xff]
    %v257 = vld [vmem:[%s1 + $0x770] sm:$0xff]
    %v258 = vld [vmem:[%s1 + $0x778] sm:$0xff]
    %v259 = vld [vmem:[%s1 + $0x780] sm:$0xff]
    %v260 = vld [vmem:[%s1 + $0x788] sm:$0xff]
    %v261 = vld [vmem:[%s1 + $0x790] sm:$0xff]
    %v262 = vld [vmem:[%s1 + $0x798] sm:$0xff]
    %v263 = vld [vmem:[%s1 + $0x7a0] sm:$0xff]
    %v264 = vld [vmem:[%s1 + $0x7a8] sm:$0xff]
    %v265 = vld [vmem:[%s1 + $0x7b0] sm:$0xff]
    %v266 = vld [vmem:[%s1 + $0x7b8] sm:$0xff]
    %v267 = vld [vmem:[%s1 + $0x7c0] sm:$0xff]
    %v268 = vld [vmem:[%s1 + $0x7c8] sm:$0xff]
    %v269 = vld [vmem:[%s1 + $0x7d0] sm:$0xff]
    %v270 = vld [vmem:[%s1 + $0x7d8] sm:$0xff]
    %v271 = vld [vmem:[%s1 + $0x7e0] sm:$0xff]
    %v272 = vld [vmem:[%s1 + $0x7e8] sm:$0xff]
    %v273 = vld [vmem:[%s1 + $0x7f0] sm:$0xff]
    %v274 = vld [vmem:[%s1 + $0x7f8] sm:$0xff]
    %v275 = vld [vmem:[%s2] sm:$0x1]
    %v277 = vlaneseq
    %v278 = vshrl.u32 %v277, 7
    %v279 = vsub.s32 0, %v278
    %v280 = vrot.slane %v275, %v279
    %v286 = vcombine.high %v15, %v15
    %v288 = vunpack.c.l.s4 1983009808
    %v289 = vunpack.c.0.s8 %v288
    %v290 = vlaneseq
    %v291 = vshrl.u32 %v290, 7
    %v292 = vsub.s32 %v289, %v291
    %v293 = vrot.slane %v15, %v292
    %v295 = vunpack.c.l.s4 1983009808
    %v296 = vunpack.c.0.s8 %v295
    %v297 = vlaneseq
    %v298 = vshrl.u32 %v297, 7
    %v299 = vsub.s32 %v296, %v298
    %v300 = vrot.slane %v286, %v299
    %v301 = vcombine.high %v293, %v293
    %v302 = vcombine.high %v300, %v300
    %v303 = vcombine.high %v16, %v16
    %v305 = vunpack.c.l.s4 1983009808
    %v306 = vunpack.c.0.s8 %v305
    %v307 = vlaneseq
    %v308 = vshrl.u32 %v307, 7
    %v309 = vsub.s32 %v306, %v308
    %v310 = vrot.slane %v16, %v309
    %v312 = vunpack.c.l.s4 1983009808
    %v313 = vunpack.c.0.s8 %v312
    %v314 = vlaneseq
    %v315 = vshrl.u32 %v314, 7
    %v316 = vsub.s32 %v313, %v315
    %v317 = vrot.slane %v303, %v316
    %v318 = vcombine.high %v310, %v310
    %v319 = vcombine.high %v317, %v317
    %v320 = vcombine.high %v17, %v17
    %v322 = vunpack.c.l.s4 1983009808
    %v323 = vunpack.c.0.s8 %v322
    %v324 = vlaneseq
    %v325 = vshrl.u32 %v324, 7
    %v326 = vsub.s32 %v323, %v325
    %v327 = vrot.slane %v17, %v326
    %v329 = vunpack.c.l.s4 1983009808
    %v330 = vunpack.c.0.s8 %v329
    %v331 = vlaneseq
    %v332 = vshrl.u32 %v331, 7
    %v333 = vsub.s32 %v330, %v332
    %v334 = vrot.slane %v320, %v333
    %v335 = vcombine.high %v327, %v327
    %v336 = vcombine.high %v334, %v334
    %v337 = vcombine.high %v18, %v18
    %v339 = vunpack.c.l.s4 1983009808
    %v340 = vunpack.c.0.s8 %v339
    %v341 = vlaneseq
    %v342 = vshrl.u32 %v341, 7
    %v343 = vsub.s32 %v340, %v342
    %v344 = vrot.slane %v18, %v343
    %v346 = vunpack.c.l.s4 1983009808
    %v347 = vunpack.c.0.s8 %v346
    %v348 = vlaneseq
    %v349 = vshrl.u32 %v348, 7
    %v350 = vsub.s32 %v347, %v349
    %v351 = vrot.slane %v337, %v350
    %v352 = vcombine.high %v344, %v344
    %v353 = vcombine.high %v351, %v351
    %370 = vmatprep.subr.mxu0 0.0
    %371 = vmatpush1.msra.mxu0 %v19
    %372 = vmatprep.subr.mxu0 0.0
    %373 = vmatpush1.msra.mxu0 %v20
    %374 = vmatprep.subr.mxu0 0.0
    %375 = vmatpush1.msra.mxu0 %v21
    %376 = vmatprep.subr.mxu0 0.0
    %377 = vmatpush1.msra.mxu0 %v22
    %378 = vmatprep.subr.mxu0 0.0
    %379 = vmatpush1.msra.mxu0 %v23
    %380 = vmatprep.subr.mxu0 0.0
    %381 = vmatpush1.msra.mxu0 %v24
    %382 = vmatprep.subr.mxu0 0.0
    %383 = vmatpush1.msra.mxu0 %v25
    %384 = vmatprep.subr.mxu0 0.0
    %385 = vmatpush1.msra.mxu0 %v26
    %386 = vmatprep.subr.mxu0 0.0
    %387 = vmatpush1.msra.mxu0 %v27
    %388 = vmatprep.subr.mxu0 0.0
    %389 = vmatpush1.msra.mxu0 %v28
    %390 = vmatprep.subr.mxu0 0.0
    %391 = vmatpush1.msra.mxu0 %v29
    %392 = vmatprep.subr.mxu0 0.0
    %393 = vmatpush1.msra.mxu0 %v30
    %394 = vmatprep.subr.mxu0 0.0
    %395 = vmatpush1.msra.mxu0 %v31
    %396 = vmatprep.subr.mxu0 0.0
    %397 = vmatpush1.msra.mxu0 %v32
    %398 = vmatprep.subr.mxu0 0.0
    %399 = vmatpush1.msra.mxu0 %v33
    %400 = vmatprep.subr.mxu0 0.0
    %401 = vmatpush1.msra.mxu0 %v34
    %402 = vmatprep.subr.mxu0 0.0
    %403 = vmatpush1.msra.mxu0 %v35
    %404 = vmatprep.subr.mxu0 0.0
    %405 = vmatpush1.msra.mxu0 %v36
    %406 = vmatprep.subr.mxu0 0.0
    %407 = vmatpush1.msra.mxu0 %v37
    %408 = vmatprep.subr.mxu0 0.0
    %409 = vmatpush1.msra.mxu0 %v38
    %410 = vmatprep.subr.mxu0 0.0
    %411 = vmatpush1.msra.mxu0 %v39
    %412 = vmatprep.subr.mxu0 0.0
    %413 = vmatpush1.msra.mxu0 %v40
    %414 = vmatprep.subr.mxu0 0.0
    %415 = vmatpush1.msra.mxu0 %v41
    %416 = vmatprep.subr.mxu0 0.0
    %417 = vmatpush1.msra.mxu0 %v42
    %418 = vmatprep.subr.mxu0 0.0
    %419 = vmatpush1.msra.mxu0 %v43
    %420 = vmatprep.subr.mxu0 0.0
    %421 = vmatpush1.msra.mxu0 %v44
    %422 = vmatprep.subr.mxu0 0.0
    %423 = vmatpush1.msra.mxu0 %v45
    %424 = vmatprep.subr.mxu0 0.0
    %425 = vmatpush1.msra.mxu0 %v46
    %426 = vmatprep.subr.mxu0 0.0
    %427 = vmatpush1.msra.mxu0 %v47
    %428 = vmatprep.subr.mxu0 0.0
    %429 = vmatpush1.msra.mxu0 %v48
    %430 = vmatprep.subr.mxu0 0.0
    %431 = vmatpush1.msra.mxu0 %v49
    %432 = vmatprep.subr.mxu0 0.0
    %433 = vmatpush1.msra.mxu0 %v50
    %434 = vmatprep.mubr.f32.mxu0 %v301
    %435 = vmatmul.mubr.f32.gmra.mrb[0].mxu0 %v293
    %v436 = vpop.f32.mrb[0].mxu0
    %v437 = vadd.f32 %v280, %v436
    %v438 = vpop.f32.mrb[0].mxu0
    %439 = vdwg.mxu0
    %440 = vmatprep.subr.mxu0 0.0
    %441 = vmatpush1.msra.mxu0 %v51
    %442 = vmatprep.subr.mxu0 0.0
    %443 = vmatpush1.msra.mxu0 %v52
    %444 = vmatprep.subr.mxu0 0.0
    %445 = vmatpush1.msra.mxu0 %v53
    %446 = vmatprep.subr.mxu0 0.0
    %447 = vmatpush1.msra.mxu0 %v54
    %448 = vmatprep.subr.mxu0 0.0
    %449 = vmatpush1.msra.mxu0 %v55
    %450 = vmatprep.subr.mxu0 0.0
    %451 = vmatpush1.msra.mxu0 %v56
    %452 = vmatprep.subr.mxu0 0.0
    %453 = vmatpush1.msra.mxu0 %v57
    %454 = vmatprep.subr.mxu0 0.0
    %455 = vmatpush1.msra.mxu0 %v58
    %456 = vmatprep.subr.mxu0 0.0
    %457 = vmatpush1.msra.mxu0 %v59
    %458 = vmatprep.subr.mxu0 0.0
    %459 = vmatpush1.msra.mxu0 %v60
    %460 = vmatprep.subr.mxu0 0.0
    %461 = vmatpush1.msra.mxu0 %v61
    %462 = vmatprep.subr.mxu0 0.0
    %463 = vmatpush1.msra.mxu0 %v62
    %464 = vmatprep.subr.mxu0 0.0
    %465 = vmatpush1.msra.mxu0 %v63
    %466 = vmatprep.subr.mxu0 0.0
    %467 = vmatpush1.msra.mxu0 %v64
    %468 = vmatprep.subr.mxu0 0.0
    %469 = vmatpush1.msra.mxu0 %v65
    %470 = vmatprep.subr.mxu0 0.0
    %471 = vmatpush1.msra.mxu0 %v66
    %472 = vmatprep.subr.mxu0 0.0
    %473 = vmatpush1.msra.mxu0 %v67
    %474 = vmatprep.subr.mxu0 0.0
    %475 = vmatpush1.msra.mxu0 %v68
    %476 = vmatprep.subr.mxu0 0.0
    %477 = vmatpush1.msra.mxu0 %v69
    %478 = vmatprep.subr.mxu0 0.0
    %479 = vmatpush1.msra.mxu0 %v70
    %480 = vmatprep.subr.mxu0 0.0
    %481 = vmatpush1.msra.mxu0 %v71
    %482 = vmatprep.subr.mxu0 0.0
    %483 = vmatpush1.msra.mxu0 %v72
    %484 = vmatprep.subr.mxu0 0.0
    %485 = vmatpush1.msra.mxu0 %v73
    %486 = vmatprep.subr.mxu0 0.0
    %487 = vmatpush1.msra.mxu0 %v74
    %488 = vmatprep.subr.mxu0 0.0
    %489 = vmatpush1.msra.mxu0 %v75
    %490 = vmatprep.subr.mxu0 0.0
    %491 = vmatpush1.msra.mxu0 %v76
    %492 = vmatprep.subr.mxu0 0.0
    %493 = vmatpush1.msra.mxu0 %v77
    %494 = vmatprep.subr.mxu0 0.0
    %495 = vmatpush1.msra.mxu0 %v78
    %496 = vmatprep.subr.mxu0 0.0
    %497 = vmatpush1.msra.mxu0 %v79
    %498 = vmatprep.subr.mxu0 0.0
    %499 = vmatpush1.msra.mxu0 %v80
    %500 = vmatprep.subr.mxu0 0.0
    %501 = vmatpush1.msra.mxu0 %v81
    %502 = vmatprep.subr.mxu0 0.0
    %503 = vmatpush1.msra.mxu0 %v82
    %504 = vmatprep.mubr.f32.mxu0 %v302
    %505 = vmatmul.mubr.f32.gmra.mrb[0].mxu0 %v300
    %v506 = vpop.f32.mrb[0].mxu0
    %v507 = vadd.f32 %v437, %v506
    %v508 = vpop.f32.mrb[0].mxu0
    %509 = vdwg.mxu0
    %510 = vmatprep.subr.mxu0 0.0
    %511 = vmatpush1.msra.mxu0 %v83
    %512 = vmatprep.subr.mxu0 0.0
    %513 = vmatpush1.msra.mxu0 %v84
    %514 = vmatprep.subr.mxu0 0.0
    %515 = vmatpush1.msra.mxu0 %v85
    %516 = vmatprep.subr.mxu0 0.0
    %517 = vmatpush1.msra.mxu0 %v86
    %518 = vmatprep.subr.mxu0 0.0
    %519 = vmatpush1.msra.mxu0 %v87
    %520 = vmatprep.subr.mxu0 0.0
    %521 = vmatpush1.msra.mxu0 %v88
    %522 = vmatprep.subr.mxu0 0.0
    %523 = vmatpush1.msra.mxu0 %v89
    %524 = vmatprep.subr.mxu0 0.0
    %525 = vmatpush1.msra.mxu0 %v90
    %526 = vmatprep.subr.mxu0 0.0
    %527 = vmatpush1.msra.mxu0 %v91
    %528 = vmatprep.subr.mxu0 0.0
    %529 = vmatpush1.msra.mxu0 %v92
    %530 = vmatprep.subr.mxu0 0.0
    %531 = vmatpush1.msra.mxu0 %v93
    %532 = vmatprep.subr.mxu0 0.0
    %533 = vmatpush1.msra.mxu0 %v94
    %534 = vmatprep.subr.mxu0 0.0
    %535 = vmatpush1.msra.mxu0 %v95
    %536 = vmatprep.subr.mxu0 0.0
    %537 = vmatpush1.msra.mxu0 %v96
    %538 = vmatprep.subr.mxu0 0.0
    %539 = vmatpush1.msra.mxu0 %v97
    %540 = vmatprep.subr.mxu0 0.0
    %541 = vmatpush1.msra.mxu0 %v98
    %542 = vmatprep.subr.mxu0 0.0
    %543 = vmatpush1.msra.mxu0 %v99
    %544 = vmatprep.subr.mxu0 0.0
    %545 = vmatpush1.msra.mxu0 %v100
    %546 = vmatprep.subr.mxu0 0.0
    %547 = vmatpush1.msra.mxu0 %v101
    %548 = vmatprep.subr.mxu0 0.0
    %549 = vmatpush1.msra.mxu0 %v102
    %550 = vmatprep.subr.mxu0 0.0
    %551 = vmatpush1.msra.mxu0 %v103
    %552 = vmatprep.subr.mxu0 0.0
    %553 = vmatpush1.msra.mxu0 %v104
    %554 = vmatprep.subr.mxu0 0.0
    %555 = vmatpush1.msra.mxu0 %v105
    %556 = vmatprep.subr.mxu0 0.0
    %557 = vmatpush1.msra.mxu0 %v106
    %558 = vmatprep.subr.mxu0 0.0
    %559 = vmatpush1.msra.mxu0 %v107
    %560 = vmatprep.subr.mxu0 0.0
    %561 = vmatpush1.msra.mxu0 %v108
    %562 = vmatprep.subr.mxu0 0.0
    %563 = vmatpush1.msra.mxu0 %v109
    %564 = vmatprep.subr.mxu0 0.0
    %565 = vmatpush1.msra.mxu0 %v110
    %566 = vmatprep.subr.mxu0 0.0
    %567 = vmatpush1.msra.mxu0 %v111
    %568 = vmatprep.subr.mxu0 0.0
    %569 = vmatpush1.msra.mxu0 %v112
    %570 = vmatprep.subr.mxu0 0.0
    %571 = vmatpush1.msra.mxu0 %v113
    %572 = vmatprep.subr.mxu0 0.0
    %573 = vmatpush1.msra.mxu0 %v114
    %574 = vmatprep.mubr.f32.mxu0 %v318
    %575 = vmatmul.mubr.f32.gmra.mrb[0].mxu0 %v310
    %v576 = vpop.f32.mrb[0].mxu0
    %v577 = vadd.f32 %v507, %v576
    %v578 = vpop.f32.mrb[0].mxu0
    %579 = vdwg.mxu0
    %580 = vmatprep.subr.mxu0 0.0
    %581 = vmatpush1.msra.mxu0 %v115
    %582 = vmatprep.subr.mxu0 0.0
    %583 = vmatpush1.msra.mxu0 %v116
    %584 = vmatprep.subr.mxu0 0.0
    %585 = vmatpush1.msra.mxu0 %v117
    %586 = vmatprep.subr.mxu0 0.0
    %587 = vmatpush1.msra.mxu0 %v118
    %588 = vmatprep.subr.mxu0 0.0
    %589 = vmatpush1.msra.mxu0 %v119
    %590 = vmatprep.subr.mxu0 0.0
    %591 = vmatpush1.msra.mxu0 %v120
    %592 = vmatprep.subr.mxu0 0.0
    %593 = vmatpush1.msra.mxu0 %v121
    %594 = vmatprep.subr.mxu0 0.0
    %595 = vmatpush1.msra.mxu0 %v122
    %596 = vmatprep.subr.mxu0 0.0
    %597 = vmatpush1.msra.mxu0 %v123
    %598 = vmatprep.subr.mxu0 0.0
    %599 = vmatpush1.msra.mxu0 %v124
    %600 = vmatprep.subr.mxu0 0.0
    %601 = vmatpush1.msra.mxu0 %v125
    %602 = vmatprep.subr.mxu0 0.0
    %603 = vmatpush1.msra.mxu0 %v126
    %604 = vmatprep.subr.mxu0 0.0
    %605 = vmatpush1.msra.mxu0 %v127
    %606 = vmatprep.subr.mxu0 0.0
    %607 = vmatpush1.msra.mxu0 %v128
    %608 = vmatprep.subr.mxu0 0.0
    %609 = vmatpush1.msra.mxu0 %v129
    %610 = vmatprep.subr.mxu0 0.0
    %611 = vmatpush1.msra.mxu0 %v130
    %612 = vmatprep.subr.mxu0 0.0
    %613 = vmatpush1.msra.mxu0 %v131
    %614 = vmatprep.subr.mxu0 0.0
    %615 = vmatpush1.msra.mxu0 %v132
    %616 = vmatprep.subr.mxu0 0.0
    %617 = vmatpush1.msra.mxu0 %v133
    %618 = vmatprep.subr.mxu0 0.0
    %619 = vmatpush1.msra.mxu0 %v134
    %620 = vmatprep.subr.mxu0 0.0
    %621 = vmatpush1.msra.mxu0 %v135
    %622 = vmatprep.subr.mxu0 0.0
    %623 = vmatpush1.msra.mxu0 %v136
    %624 = vmatprep.subr.mxu0 0.0
    %625 = vmatpush1.msra.mxu0 %v137
    %626 = vmatprep.subr.mxu0 0.0
    %627 = vmatpush1.msra.mxu0 %v138
    %628 = vmatprep.subr.mxu0 0.0
    %629 = vmatpush1.msra.mxu0 %v139
    %630 = vmatprep.subr.mxu0 0.0
    %631 = vmatpush1.msra.mxu0 %v140
    %632 = vmatprep.subr.mxu0 0.0
    %633 = vmatpush1.msra.mxu0 %v141
    %634 = vmatprep.subr.mxu0 0.0
    %635 = vmatpush1.msra.mxu0 %v142
    %636 = vmatprep.subr.mxu0 0.0
    %637 = vmatpush1.msra.mxu0 %v143
    %638 = vmatprep.subr.mxu0 0.0
    %639 = vmatpush1.msra.mxu0 %v144
    %640 = vmatprep.subr.mxu0 0.0
    %641 = vmatpush1.msra.mxu0 %v145
    %642 = vmatprep.subr.mxu0 0.0
    %643 = vmatpush1.msra.mxu0 %v146
    %644 = vmatprep.mubr.f32.mxu0 %v319
    %645 = vmatmul.mubr.f32.gmra.mrb[0].mxu0 %v317
    %v646 = vpop.f32.mrb[0].mxu0
    %v647 = vadd.f32 %v577, %v646
    %v648 = vpop.f32.mrb[0].mxu0
    %649 = vdwg.mxu0
    %650 = vmatprep.subr.mxu0 0.0
    %651 = vmatpush1.msra.mxu0 %v147
    %652 = vmatprep.subr.mxu0 0.0
    %653 = vmatpush1.msra.mxu0 %v148
    %654 = vmatprep.subr.mxu0 0.0
    %655 = vmatpush1.msra.mxu0 %v149
    %656 = vmatprep.subr.mxu0 0.0
    %657 = vmatpush1.msra.mxu0 %v150
    %658 = vmatprep.subr.mxu0 0.0
    %659 = vmatpush1.msra.mxu0 %v151
    %660 = vmatprep.subr.mxu0 0.0
    %661 = vmatpush1.msra.mxu0 %v152
    %662 = vmatprep.subr.mxu0 0.0
    %663 = vmatpush1.msra.mxu0 %v153
    %664 = vmatprep.subr.mxu0 0.0
    %665 = vmatpush1.msra.mxu0 %v154
    %666 = vmatprep.subr.mxu0 0.0
    %667 = vmatpush1.msra.mxu0 %v155
    %668 = vmatprep.subr.mxu0 0.0
    %669 = vmatpush1.msra.mxu0 %v156
    %670 = vmatprep.subr.mxu0 0.0
    %671 = vmatpush1.msra.mxu0 %v157
    %672 = vmatprep.subr.mxu0 0.0
    %673 = vmatpush1.msra.mxu0 %v158
    %674 = vmatprep.subr.mxu0 0.0
    %675 = vmatpush1.msra.mxu0 %v159
    %676 = vmatprep.subr.mxu0 0.0
    %677 = vmatpush1.msra.mxu0 %v160
    %678 = vmatprep.subr.mxu0 0.0
    %679 = vmatpush1.msra.mxu0 %v161
    %680 = vmatprep.subr.mxu0 0.0
    %681 = vmatpush1.msra.mxu0 %v162
    %682 = vmatprep.subr.mxu0 0.0
    %683 = vmatpush1.msra.mxu0 %v163
    %684 = vmatprep.subr.mxu0 0.0
    %685 = vmatpush1.msra.mxu0 %v164
    %686 = vmatprep.subr.mxu0 0.0
    %687 = vmatpush1.msra.mxu0 %v165
    %688 = vmatprep.subr.mxu0 0.0
    %689 = vmatpush1.msra.mxu0 %v166
    %690 = vmatprep.subr.mxu0 0.0
    %691 = vmatpush1.msra.mxu0 %v167
    %692 = vmatprep.subr.mxu0 0.0
    %693 = vmatpush1.msra.mxu0 %v168
    %694 = vmatprep.subr.mxu0 0.0
    %695 = vmatpush1.msra.mxu0 %v169
    %696 = vmatprep.subr.mxu0 0.0
    %697 = vmatpush1.msra.mxu0 %v170
    %698 = vmatprep.subr.mxu0 0.0
    %699 = vmatpush1.msra.mxu0 %v171
    %700 = vmatprep.subr.mxu0 0.0
    %701 = vmatpush1.msra.mxu0 %v172
    %702 = vmatprep.subr.mxu0 0.0
    %703 = vmatpush1.msra.mxu0 %v173
    %704 = vmatprep.subr.mxu0 0.0
    %705 = vmatpush1.msra.mxu0 %v174
    %706 = vmatprep.subr.mxu0 0.0
    %707 = vmatpush1.msra.mxu0 %v175
    %708 = vmatprep.subr.mxu0 0.0
    %709 = vmatpush1.msra.mxu0 %v176
    %710 = vmatprep.subr.mxu0 0.0
    %711 = vmatpush1.msra.mxu0 %v177
    %712 = vmatprep.subr.mxu0 0.0
    %713 = vmatpush1.msra.mxu0 %v178
    %714 = vmatprep.mubr.f32.mxu0 %v335
    %715 = vmatmul.mubr.f32.gmra.mrb[0].mxu0 %v327
    %v716 = vpop.f32.mrb[0].mxu0
    %v717 = vadd.f32 %v647, %v716
    %v718 = vpop.f32.mrb[0].mxu0
    %719 = vdwg.mxu0
    %720 = vmatprep.subr.mxu0 0.0
    %721 = vmatpush1.msra.mxu0 %v179
    %722 = vmatprep.subr.mxu0 0.0
    %723 = vmatpush1.msra.mxu0 %v180
    %724 = vmatprep.subr.mxu0 0.0
    %725 = vmatpush1.msra.mxu0 %v181
    %726 = vmatprep.subr.mxu0 0.0
    %727 = vmatpush1.msra.mxu0 %v182
    %728 = vmatprep.subr.mxu0 0.0
    %729 = vmatpush1.msra.mxu0 %v183
    %730 = vmatprep.subr.mxu0 0.0
    %731 = vmatpush1.msra.mxu0 %v184
    %732 = vmatprep.subr.mxu0 0.0
    %733 = vmatpush1.msra.mxu0 %v185
    %734 = vmatprep.subr.mxu0 0.0
    %735 = vmatpush1.msra.mxu0 %v186
    %736 = vmatprep.subr.mxu0 0.0
    %737 = vmatpush1.msra.mxu0 %v187
    %738 = vmatprep.subr.mxu0 0.0
    %739 = vmatpush1.msra.mxu0 %v188
    %740 = vmatprep.subr.mxu0 0.0
    %741 = vmatpush1.msra.mxu0 %v189
    %742 = vmatprep.subr.mxu0 0.0
    %743 = vmatpush1.msra.mxu0 %v190
    %744 = vmatprep.subr.mxu0 0.0
    %745 = vmatpush1.msra.mxu0 %v191
    %746 = vmatprep.subr.mxu0 0.0
    %747 = vmatpush1.msra.mxu0 %v192
    %748 = vmatprep.subr.mxu0 0.0
    %749 = vmatpush1.msra.mxu0 %v193
    %750 = vmatprep.subr.mxu0 0.0
    %751 = vmatpush1.msra.mxu0 %v194
    %752 = vmatprep.subr.mxu0 0.0
    %753 = vmatpush1.msra.mxu0 %v195
    %754 = vmatprep.subr.mxu0 0.0
    %755 = vmatpush1.msra.mxu0 %v196
    %756 = vmatprep.subr.mxu0 0.0
    %757 = vmatpush1.msra.mxu0 %v197
    %758 = vmatprep.subr.mxu0 0.0
    %759 = vmatpush1.msra.mxu0 %v198
    %760 = vmatprep.subr.mxu0 0.0
    %761 = vmatpush1.msra.mxu0 %v199
    %762 = vmatprep.subr.mxu0 0.0
    %763 = vmatpush1.msra.mxu0 %v200
    %764 = vmatprep.subr.mxu0 0.0
    %765 = vmatpush1.msra.mxu0 %v201
    %766 = vmatprep.subr.mxu0 0.0
    %767 = vmatpush1.msra.mxu0 %v202
    %768 = vmatprep.subr.mxu0 0.0
    %769 = vmatpush1.msra.mxu0 %v203
    %770 = vmatprep.subr.mxu0 0.0
    %771 = vmatpush1.msra.mxu0 %v204
    %772 = vmatprep.subr.mxu0 0.0
    %773 = vmatpush1.msra.mxu0 %v205
    %774 = vmatprep.subr.mxu0 0.0
    %775 = vmatpush1.msra.mxu0 %v206
    %776 = vmatprep.subr.mxu0 0.0
    %777 = vmatpush1.msra.mxu0 %v207
    %778 = vmatprep.subr.mxu0 0.0
    %779 = vmatpush1.msra.mxu0 %v208
    %780 = vmatprep.subr.mxu0 0.0
    %781 = vmatpush1.msra.mxu0 %v209
    %782 = vmatprep.subr.mxu0 0.0
    %783 = vmatpush1.msra.mxu0 %v210
    %784 = vmatprep.mubr.f32.mxu0 %v336
    %785 = vmatmul.mubr.f32.gmra.mrb[0].mxu0 %v334
    %v786 = vpop.f32.mrb[0].mxu0
    %v787 = vadd.f32 %v717, %v786
    %v788 = vpop.f32.mrb[0].mxu0
    %789 = vdwg.mxu0
    %790 = vmatprep.subr.mxu0 0.0
    %791 = vmatpush1.msra.mxu0 %v211
    %792 = vmatprep.subr.mxu0 0.0
    %793 = vmatpush1.msra.mxu0 %v212
    %794 = vmatprep.subr.mxu0 0.0
    %795 = vmatpush1.msra.mxu0 %v213
    %796 = vmatprep.subr.mxu0 0.0
    %797 = vmatpush1.msra.mxu0 %v214
    %798 = vmatprep.subr.mxu0 0.0
    %799 = vmatpush1.msra.mxu0 %v215
    %800 = vmatprep.subr.mxu0 0.0
    %801 = vmatpush1.msra.mxu0 %v216
    %802 = vmatprep.subr.mxu0 0.0
    %803 = vmatpush1.msra.mxu0 %v217
    %804 = vmatprep.subr.mxu0 0.0
    %805 = vmatpush1.msra.mxu0 %v218
    %806 = vmatprep.subr.mxu0 0.0
    %807 = vmatpush1.msra.mxu0 %v219
    %808 = vmatprep.subr.mxu0 0.0
    %809 = vmatpush1.msra.mxu0 %v220
    %810 = vmatprep.subr.mxu0 0.0
    %811 = vmatpush1.msra.mxu0 %v221
    %812 = vmatprep.subr.mxu0 0.0
    %813 = vmatpush1.msra.mxu0 %v222
    %814 = vmatprep.subr.mxu0 0.0
    %815 = vmatpush1.msra.mxu0 %v223
    %816 = vmatprep.subr.mxu0 0.0
    %817 = vmatpush1.msra.mxu0 %v224
    %818 = vmatprep.subr.mxu0 0.0
    %819 = vmatpush1.msra.mxu0 %v225
    %820 = vmatprep.subr.mxu0 0.0
    %821 = vmatpush1.msra.mxu0 %v226
    %822 = vmatprep.subr.mxu0 0.0
    %823 = vmatpush1.msra.mxu0 %v227
    %824 = vmatprep.subr.mxu0 0.0
    %825 = vmatpush1.msra.mxu0 %v228
    %826 = vmatprep.subr.mxu0 0.0
    %827 = vmatpush1.msra.mxu0 %v229
    %828 = vmatprep.subr.mxu0 0.0
    %829 = vmatpush1.msra.mxu0 %v230
    %830 = vmatprep.subr.mxu0 0.0
    %831 = vmatpush1.msra.mxu0 %v231
    %832 = vmatprep.subr.mxu0 0.0
    %833 = vmatpush1.msra.mxu0 %v232
    %834 = vmatprep.subr.mxu0 0.0
    %835 = vmatpush1.msra.mxu0 %v233
    %836 = vmatprep.subr.mxu0 0.0
    %837 = vmatpush1.msra.mxu0 %v234
    %838 = vmatprep.subr.mxu0 0.0
    %839 = vmatpush1.msra.mxu0 %v235
    %840 = vmatprep.subr.mxu0 0.0
    %841 = vmatpush1.msra.mxu0 %v236
    %842 = vmatprep.subr.mxu0 0.0
    %843 = vmatpush1.msra.mxu0 %v237
    %844 = vmatprep.subr.mxu0 0.0
    %845 = vmatpush1.msra.mxu0 %v238
    %846 = vmatprep.subr.mxu0 0.0
    %847 = vmatpush1.msra.mxu0 %v239
    %848 = vmatprep.subr.mxu0 0.0
    %849 = vmatpush1.msra.mxu0 %v240
    %850 = vmatprep.subr.mxu0 0.0
    %851 = vmatpush1.msra.mxu0 %v241
    %852 = vmatprep.subr.mxu0 0.0
    %853 = vmatpush1.msra.mxu0 %v242
    %854 = vmatprep.mubr.f32.mxu0 %v352
    %855 = vmatmul.mubr.f32.gmra.mrb[0].mxu0 %v344
    %v856 = vpop.f32.mrb[0].mxu0
    %v857 = vadd.f32 %v787, %v856
    %v858 = vpop.f32.mrb[0].mxu0
    %859 = vdwg.mxu0
    %860 = vmatprep.subr.mxu0 0.0
    %861 = vmatpush1.msra.mxu0 %v243
    %862 = vmatprep.subr.mxu0 0.0
    %863 = vmatpush1.msra.mxu0 %v244
    %864 = vmatprep.subr.mxu0 0.0
    %865 = vmatpush1.msra.mxu0 %v245
    %866 = vmatprep.subr.mxu0 0.0
    %867 = vmatpush1.msra.mxu0 %v246
    %868 = vmatprep.subr.mxu0 0.0
    %869 = vmatpush1.msra.mxu0 %v247
    %870 = vmatprep.subr.mxu0 0.0
    %871 = vmatpush1.msra.mxu0 %v248
    %872 = vmatprep.subr.mxu0 0.0
    %873 = vmatpush1.msra.mxu0 %v249
    %874 = vmatprep.subr.mxu0 0.0
    %875 = vmatpush1.msra.mxu0 %v250
    %876 = vmatprep.subr.mxu0 0.0
    %877 = vmatpush1.msra.mxu0 %v251
    %878 = vmatprep.subr.mxu0 0.0
    %879 = vmatpush1.msra.mxu0 %v252
    %880 = vmatprep.subr.mxu0 0.0
    %881 = vmatpush1.msra.mxu0 %v253
    %882 = vmatprep.subr.mxu0 0.0
    %883 = vmatpush1.msra.mxu0 %v254
    %884 = vmatprep.subr.mxu0 0.0
    %885 = vmatpush1.msra.mxu0 %v255
    %886 = vmatprep.subr.mxu0 0.0
    %887 = vmatpush1.msra.mxu0 %v256
    %888 = vmatprep.subr.mxu0 0.0
    %889 = vmatpush1.msra.mxu0 %v257
    %890 = vmatprep.subr.mxu0 0.0
    %891 = vmatpush1.msra.mxu0 %v258
    %892 = vmatprep.subr.mxu0 0.0
    %893 = vmatpush1.msra.mxu0 %v259
    %894 = vmatprep.subr.mxu0 0.0
    %895 = vmatpush1.msra.mxu0 %v260
    %896 = vmatprep.subr.mxu0 0.0
    %897 = vmatpush1.msra.mxu0 %v261
    %898 = vmatprep.subr.mxu0 0.0
    %899 = vmatpush1.msra.mxu0 %v262
    %900 = vmatprep.subr.mxu0 0.0
    %901 = vmatpush1.msra.mxu0 %v263
    %902 = vmatprep.subr.mxu0 0.0
    %903 = vmatpush1.msra.mxu0 %v264
    %904 = vmatprep.subr.mxu0 0.0
    %905 = vmatpush1.msra.mxu0 %v265
    %906 = vmatprep.subr.mxu0 0.0
    %907 = vmatpush1.msra.mxu0 %v266
    %908 = vmatprep.subr.mxu0 0.0
    %909 = vmatpush1.msra.mxu0 %v267
    %910 = vmatprep.subr.mxu0 0.0
    %911 = vmatpush1.msra.mxu0 %v268
    %912 = vmatprep.subr.mxu0 0.0
    %913 = vmatpush1.msra.mxu0 %v269
    %914 = vmatprep.subr.mxu0 0.0
    %915 = vmatpush1.msra.mxu0 %v270
    %916 = vmatprep.subr.mxu0 0.0
    %917 = vmatpush1.msra.mxu0 %v271
    %918 = vmatprep.subr.mxu0 0.0
    %919 = vmatpush1.msra.mxu0 %v272
    %920 = vmatprep.subr.mxu0 0.0
    %921 = vmatpush1.msra.mxu0 %v273
    %922 = vmatprep.subr.mxu0 0.0
    %923 = vmatpush1.msra.mxu0 %v274
    %924 = vmatprep.mubr.f32.mxu0 %v353
    %925 = vmatmul.mubr.f32.gmra.mrb[0].mxu0 %v351
    %v926 = vpop.f32.mrb[0].mxu0
    %v927 = vadd.f32 %v857, %v926
    %v928 = vpop.f32.mrb[0].mxu0
    %929 = vdwg.mxu0
    %vm930 = vcmask 74752
    %931 = vst.msk [vmem:[#allocation2] sm:$0x3] %vm930, %v927
    // Predicated region
    $region14: #{cnn_forward.3} parent=1 // pred_check
      _
    $region15: #{cnn_forward.3} parent=1 // pred_check_branch
      %933 = sbr.rel (0) target = $region17
    $region16: #{cnn_forward.3} parent=1 // pred_region
      %s935 = ssub.s32 32, 32
      %936 = vsyncadd [#allocation3], %s935
      %s938 = sshll.u32 [#allocation2], 4
      %s939 = int_to_ptr.vmem [resolvable:$true] %s938
      %941 = dma.vmem_to_hbm [thread:$0]  %s939, 32, %s3, [#allocation3]
    $region17: #{cnn_forward.3} parent=1 // pred_fallthru
      _
    // Predicated region
    $region18: #{cnn_forward.3} parent=1 // pred_check
      _
    $region19: #{cnn_forward.3} parent=1 // pred_check_branch
      %943 = sbr.rel (0) target = $region21
    $region20: #{cnn_forward.3} parent=1 // pred_region
      %944 = dma.done [#allocation3], 32
    $region21: #{cnn_forward.3} parent=1 // pred_fallthru
      _
    %945 = vsyncpa [#allocation3], 1

</llo_original>
